<compile_context>
chip_gen: v7x
topology: tpu7x:2x2x1
jax: 0.10.0
libtpu: 0.0.40
codegen_flags: <defaults>
</compile_context>

<pallas_src>
import jax
import jax.numpy as jnp
from jax.experimental import pallas as pl
from jax.experimental.pallas import tpu as pltpu

IN_FEATURES = 27 * 512 + 181   # 14005
HIDDEN = 256
OUT_FEATURES = 181

M_PAD = 8                                      # padded batch (sublane multiple)
K_TILE = 7168                                  # contraction tile (multiple of 128)
N_K = (IN_FEATURES + K_TILE - 1) // K_TILE     # 2 grid steps
K_PAD = N_K * K_TILE                           # 14336


def _mlp_kernel(x_ref, w1_ref, b1_ref, w2_ref, b2_ref, o_ref, acc_ref):
    # x_ref:  (M_PAD, K_PAD)  bf16  (whole-array resident)
    # w1_ref: (K_TILE, HIDDEN) bf16 (streamed per grid step)
    # b1_ref: (1, HIDDEN) f32   w2_ref: (HIDDEN, OUT) bf16   b2_ref: (1, OUT) f32
    # o_ref:  (M_PAD, OUT) f32  acc_ref: (M_PAD, HIDDEN) f32 scratch
    k = pl.program_id(0)

    @pl.when(k == 0)
    def _():
        acc_ref[...] = jnp.zeros_like(acc_ref)

    # fc1 partial product on the MXU: bf16 inputs, f32 accumulation.
    start = pl.multiple_of(k * K_TILE, 128)
    x_chunk = x_ref[:, pl.ds(start, K_TILE)]
    acc_ref[...] += jnp.dot(
        x_chunk, w1_ref[...], preferred_element_type=jnp.float32
    )

    @pl.when(k == pl.num_programs(0) - 1)
    def _():
        h = jnp.maximum(acc_ref[...] + b1_ref[...], 0.0)        # bias + ReLU (f32)
        y = jnp.dot(h.astype(jnp.bfloat16), w2_ref[...],
                    preferred_element_type=jnp.float32)
        o_ref[...] = (y + b2_ref[...]).astype(o_ref.dtype)      # fc2 bias + store


def prepare_params(w1, b1, w2, b2):
    """One-time layout conversion (do at init, NOT per call).

    w1: (256, 14005), b1: (256,), w2: (181, 256), b2: (181,)  (PyTorch layout)
    Returns kernel-layout params:
      w1_t: (K_PAD, 256) bf16 (transposed, zero-padded along K)
      b1_r: (1, 256) f32, w2_t: (256, 181) bf16, b2_r: (1, 181) f32
    """
    w1_t = jnp.zeros((K_PAD, HIDDEN), jnp.bfloat16)
    w1_t = w1_t.at[:IN_FEATURES, :].set(w1.T.astype(jnp.bfloat16))
    b1_r = b1.astype(jnp.float32).reshape(1, HIDDEN)
    w2_t = w2.T.astype(jnp.bfloat16)
    b2_r = b2.astype(jnp.float32).reshape(1, OUT_FEATURES)
    return w1_t, b1_r, w2_t, b2_r


def enc_deca_au_forward(x, prepared):
    """x: (B, ...) flattening to (B, 14005) -> (B, 181).  Requires B <= M_PAD."""
    w1_t, b1_r, w2_t, b2_r = prepared
    B = x.shape[0]
    x_flat = x.reshape(B, -1)
    assert x_flat.shape[1] == IN_FEATURES
    assert B <= M_PAD, f"batch {B} exceeds kernel M_PAD={M_PAD}"

    # Single pad op for the tiny activation: batch -> M_PAD, K -> K_PAD.
    # Zero K padding meets zero weight rows; padded batch rows are sliced off.
    x_pad = jnp.pad(
        x_flat.astype(jnp.bfloat16),
        ((0, M_PAD - B), (0, K_PAD - IN_FEATURES)),
    )

    cost = pl.CostEstimate(
        flops=2 * M_PAD * K_PAD * HIDDEN + 2 * M_PAD * HIDDEN * OUT_FEATURES,
        transcendentals=0,
        bytes_accessed=(
            K_PAD * HIDDEN * 2            # fc1 weights (bf16) — dominant stream
            + M_PAD * K_PAD * 2           # activation (bf16)
            + HIDDEN * OUT_FEATURES * 2   # fc2 weights (bf16)
            + HIDDEN * 4 + OUT_FEATURES * 4
            + M_PAD * OUT_FEATURES * 4
        ),
    )

    out = pl.pallas_call(
        _mlp_kernel,
        out_shape=jax.ShapeDtypeStruct((M_PAD, OUT_FEATURES), jnp.float32),
        grid_spec=pltpu.PrefetchScalarGridSpec(
            num_scalar_prefetch=0,
            grid=(N_K,),
            in_specs=[
                pl.BlockSpec((M_PAD, K_PAD), lambda k: (0, 0)),          # x resident
                pl.BlockSpec((K_TILE, HIDDEN), lambda k: (k, 0)),        # fc1 W chunk
                pl.BlockSpec((1, HIDDEN), lambda k: (0, 0)),             # fc1 bias
                pl.BlockSpec((HIDDEN, OUT_FEATURES), lambda k: (0, 0)),  # fc2 W
                pl.BlockSpec((1, OUT_FEATURES), lambda k: (0, 0)),       # fc2 bias
            ],
            out_specs=pl.BlockSpec((M_PAD, OUT_FEATURES), lambda k: (0, 0)),
            scratch_shapes=[pltpu.VMEM((M_PAD, HIDDEN), jnp.float32)],
        ),
        compiler_params=pltpu.CompilerParams(
            dimension_semantics=("arbitrary",),   # K is a reduction axis
        ),
        cost_estimate=cost,
    )(x_pad, w1_t, b1_r, w2_t, b2_r)

    return out[:B, :]


def init_params(key):
    """Deterministic nn.Linear-style init: U(-1/sqrt(fan_in), 1/sqrt(fan_in))."""
    k1w, k1b, k2w, k2b = jax.random.split(key, 4)
    b1_bound = 1.0 / jnp.sqrt(jnp.float32(IN_FEATURES))
    b2_bound = 1.0 / jnp.sqrt(jnp.float32(HIDDEN))
    w1 = jax.random.uniform(k1w, (HIDDEN, IN_FEATURES), jnp.float32, -b1_bound, b1_bound)
    b1 = jax.random.uniform(k1b, (HIDDEN,), jnp.float32, -b1_bound, b1_bound)
    w2 = jax.random.uniform(k2w, (OUT_FEATURES, HIDDEN), jnp.float32, -b2_bound, b2_bound)
    b2 = jax.random.uniform(k2b, (OUT_FEATURES,), jnp.float32, -b2_bound, b2_bound)
    return w1, b1, w2, b2


if __name__ == "__main__":
    key = jax.random.PRNGKey(0)
    k_x, k_p = jax.random.split(key)

    B = 2
    x = jax.random.normal(k_x, (B, IN_FEATURES), jnp.float32)
    w1, b1, w2, b2 = init_params(k_p)

    # One-time weight staging (transpose / pad / bf16 cast) outside the forward.
    prepared = jax.tree_util.tree_map(jax.block_until_ready, prepare_params(w1, b1, w2, b2))

    fwd = jax.jit(enc_deca_au_forward)
    out = jax.block_until_ready(fwd(x, prepared))

    # Reference (same math as the PyTorch forward, full f32).
    h_ref = jnp.maximum(x.reshape(B, -1) @ w1.T + b1, 0.0)
    ref = h_ref @ w2.T + b2

    assert out.shape == (B, OUT_FEATURES)
    # bf16 weights/activations (f32 accumulation) => small numeric drift.
    assert jnp.allclose(out, ref, atol=5e-2, rtol=5e-2), (
        float(jnp.max(jnp.abs(out - ref)))
    )

    print("KERNEL_OK")
</pallas_src>

<mosaic_0001>
module attributes {stable_mosaic.version = 11 : i64} {
  func.func @_mlp_kernel(%arg0: i32, %arg1: memref<8x14336xbf16, #tpu.memory_space<vmem>>, %arg2: memref<7168x256xbf16, #tpu.memory_space<vmem>>, %arg3: memref<1x256xf32, #tpu.memory_space<vmem>>, %arg4: memref<256x181xbf16, #tpu.memory_space<vmem>>, %arg5: memref<1x181xf32, #tpu.memory_space<vmem>>, %arg6: memref<8x181xf32, #tpu.memory_space<vmem>>, %arg7: memref<8x256xf32, #tpu.memory_space<vmem>>) attributes {dimension_semantics = [#tpu.dimension_semantics<arbitrary>], iteration_bounds = array<i64: 2>, scalar_prefetch = 0 : i64, scratch_operands = 1 : i64, tpu.core_type = #tpu.core_type<tc>, window_params = [{pipeline_mode = #tpu.pipeline_mode<synchronous>, transform_indices = @transform_0, window_bounds = array<i64: 8, 14336>}, {transform_indices = @transform_1, window_bounds = array<i64: 7168, 256>}, {pipeline_mode = #tpu.pipeline_mode<synchronous>, transform_indices = @transform_2, window_bounds = array<i64: 1, 256>}, {pipeline_mode = #tpu.pipeline_mode<synchronous>, transform_indices = @transform_3, window_bounds = array<i64: 256, 181>}, {pipeline_mode = #tpu.pipeline_mode<synchronous>, transform_indices = @transform_4, window_bounds = array<i64: 1, 181>}, {pipeline_mode = #tpu.pipeline_mode<synchronous>, transform_indices = @transform_5, window_bounds = array<i64: 8, 181>}]} {
    %c0_i32 = arith.constant 0 : i32
    %0 = arith.cmpi eq, %arg0, %c0_i32 : i32
    %1 = arith.extui %0 : i1 to i32
    %c0_i32_0 = arith.constant 0 : i32
    %2 = arith.cmpi ne, %1, %c0_i32_0 : i32
    scf.if %2 {
      %cst_8 = arith.constant 0.000000e+00 : f32
      %15 = vector.broadcast %cst_8 : f32 to vector<8x256xf32>
      %c0_9 = arith.constant 0 : index
      %c0_10 = arith.constant 0 : index
      %16 = vector.load %arg7[%c0_9, %c0_10] : memref<8x256xf32, #tpu.memory_space<vmem>>, vector<8x256xf32>
      tpu.vector_store %arg7[%c0_9, %c0_10], %15 {strides = array<i32>} : memref<8x256xf32, #tpu.memory_space<vmem>>, vector<8x256xf32>,
    } else {
    }
    %c7168_i32 = arith.constant 7168 : i32
    %3 = arith.muli %arg0, %c7168_i32 : i32
    %4 = tpu.assume_multiple %3, 128 : i32
    %c0 = arith.constant 0 : index
    %5 = arith.index_cast %4 : i32 to index
    %6 = vector.load %arg1[%c0, %5] : memref<8x14336xbf16, #tpu.memory_space<vmem>>, vector<8x7168xbf16>
    %c0_1 = arith.constant 0 : index
    %c0_2 = arith.constant 0 : index
    %7 = vector.load %arg7[%c0_1, %c0_2] : memref<8x256xf32, #tpu.memory_space<vmem>>, vector<8x256xf32>
    %c0_3 = arith.constant 0 : index
    %c0_4 = arith.constant 0 : index
    %8 = vector.load %arg2[%c0_3, %c0_4] : memref<7168x256xbf16, #tpu.memory_space<vmem>>, vector<7168x256xbf16>
    %cst = arith.constant dense<0.000000e+00> : vector<8x256xf32>
    %9 = tpu.matmul %6, %8, %cst {dimension_numbers = #tpu.dot_dimension_numbers<[1], [0], [0], [1], [0, 0, 1, 1], [], []>} : vector<8x7168xbf16>, vector<7168x256xbf16>, vector<8x256xf32> -> vector<8x256xf32>
    %10 = arith.addf %7, %9 : vector<8x256xf32>
    %c0_5 = arith.constant 0 : index
    %c0_6 = arith.constant 0 : index
    %11 = vector.load %arg7[%c0_5, %c0_6] : memref<8x256xf32, #tpu.memory_space<vmem>>, vector<8x256xf32>
    tpu.vector_store %arg7[%c0_5, %c0_6], %10 {strides = array<i32>} : memref<8x256xf32, #tpu.memory_space<vmem>>, vector<8x256xf32>,
    %c1_i32 = arith.constant 1 : i32
    %12 = arith.cmpi eq, %arg0, %c1_i32 : i32
    %13 = arith.extui %12 : i1 to i32
    %c0_i32_7 = arith.constant 0 : i32
    %14 = arith.cmpi ne, %13, %c0_i32_7 : i32
    scf.if %14 {
      %c0_8 = arith.constant 0 : index
      %c0_9 = arith.constant 0 : index
      %15 = vector.load %arg7[%c0_8, %c0_9] : memref<8x256xf32, #tpu.memory_space<vmem>>, vector<8x256xf32>
      %c0_10 = arith.constant 0 : index
      %c0_11 = arith.constant 0 : index
      %16 = vector.load %arg3[%c0_10, %c0_11] : memref<1x256xf32, #tpu.memory_space<vmem>>, vector<1x256xf32>
      %17 = vector.broadcast %16 : vector<1x256xf32> to vector<8x256xf32>
      %18 = arith.addf %15, %17 : vector<8x256xf32>
      %cst_12 = arith.constant 0.000000e+00 : f32
      %19 = vector.broadcast %cst_12 : f32 to vector<8x256xf32>
      %20 = arith.maximumf %18, %19 : vector<8x256xf32>
      %21 = arith.truncf %20 : vector<8x256xf32> to vector<8x256xbf16>
      %c0_13 = arith.constant 0 : index
      %c0_14 = arith.constant 0 : index
      %22 = vector.load %arg4[%c0_13, %c0_14] : memref<256x181xbf16, #tpu.memory_space<vmem>>, vector<256x181xbf16>
      %cst_15 = arith.constant dense<0.000000e+00> : vector<8x181xf32>
      %23 = tpu.matmul %21, %22, %cst_15 {dimension_numbers = #tpu.dot_dimension_numbers<[1], [0], [0], [1], [0, 0, 1, 1], [], []>} : vector<8x256xbf16>, vector<256x181xbf16>, vector<8x181xf32> -> vector<8x181xf32>
      %c0_16 = arith.constant 0 : index
      %c0_17 = arith.constant 0 : index
      %24 = vector.load %arg5[%c0_16, %c0_17] : memref<1x181xf32, #tpu.memory_space<vmem>>, vector<1x181xf32>
      %25 = vector.broadcast %24 : vector<1x181xf32> to vector<8x181xf32>
      %26 = arith.addf %23, %25 : vector<8x181xf32>
      %c0_18 = arith.constant 0 : index
      %c0_19 = arith.constant 0 : index
      %27 = vector.load %arg6[%c0_18, %c0_19] : memref<8x181xf32, #tpu.memory_space<vmem>>, vector<8x181xf32>
      tpu.vector_store %arg6[%c0_18, %c0_19], %26 {strides = array<i32>} : memref<8x181xf32, #tpu.memory_space<vmem>>, vector<8x181xf32>,
    } else {
    }
    return
  }
  func.func @transform_0(%arg0: i32) -> (i32, i32) {
    %c0_i32 = arith.constant 0 : i32
    %c0_i32_0 = arith.constant 0 : i32
    %c0_i32_1 = arith.constant 0 : i32
    return %c0_i32, %c0_i32_0 : i32, i32
  }
  func.func @transform_1(%arg0: i32) -> (i32, i32) {
    %c0_i32 = arith.constant 0 : i32
    %c0_i32_0 = arith.constant 0 : i32
    return %arg0, %c0_i32 : i32, i32
  }
  func.func @transform_2(%arg0: i32) -> (i32, i32) {
    %c0_i32 = arith.constant 0 : i32
    %c0_i32_0 = arith.constant 0 : i32
    %c0_i32_1 = arith.constant 0 : i32
    return %c0_i32, %c0_i32_0 : i32, i32
  }
  func.func @transform_3(%arg0: i32) -> (i32, i32) {
    %c0_i32 = arith.constant 0 : i32
    %c0_i32_0 = arith.constant 0 : i32
    %c0_i32_1 = arith.constant 0 : i32
    return %c0_i32, %c0_i32_0 : i32, i32
  }
  func.func @transform_4(%arg0: i32) -> (i32, i32) {
    %c0_i32 = arith.constant 0 : i32
    %c0_i32_0 = arith.constant 0 : i32
    %c0_i32_1 = arith.constant 0 : i32
    return %c0_i32, %c0_i32_0 : i32, i32
  }
  func.func @transform_5(%arg0: i32) -> (i32, i32) {
    %c0_i32 = arith.constant 0 : i32
    %c0_i32_0 = arith.constant 0 : i32
    %c0_i32_1 = arith.constant 0 : i32
    return %c0_i32, %c0_i32_0 : i32, i32
  }
}

</mosaic_0001>

<llo_original>
// kernel: enc_deca_au_forward.1
$region0: #{enc_deca_au_forward.1}
  #allocation0 [shape = 'u32[]', space=smem, size = 0x4, offset = 0x4, fixed_abs, tag = 'smem constant byte address 0x4 - core index']
  #allocation1 [shape = 'u32[144,128]{1,0:T(1,128)}', space=vmem, size = 0x12000, scoped, tag = 'internal scratch']
  #allocation2 [shape = 'f32[8,256]{1,0:T(8,128)}', space=vmem, size = 0x2000, scoped, tag = 'scratch operand']
  %s0 = inlined_call_operand.vmem [shape: bf16[8,14336], index: 0, kind: input, shape index: {}]
  %s1 = inlined_call_operand.hbm [shape: bf16[14336,256], index: 1, kind: input, shape index: {}]
  %s2 = inlined_call_operand.hbm [shape: f32[1,256], index: 2, kind: input, shape index: {}]
  %s3 = inlined_call_operand.vmem [shape: bf16[256,181], index: 3, kind: input, shape index: {}]
  %s4 = inlined_call_operand.hbm [shape: f32[1,181], index: 4, kind: input, shape index: {}]
  %s5 = inlined_call_operand.vmem [shape: f32[8,181], index: 5, kind: output, shape index: {}]
  %s6 = sld [smem:[#allocation0]]
  $region73: #{enc_deca_au_forward.1} parent=0
    _
  %s8 = ssub.s32 1, %s6
  %s9 = scalar_select 0, %s8, %s6
  $region1: #{enc_deca_au_forward.1} parent=0
    #allocation3 [shape = 'u8[7340032]{0}', space=vmem, size = 0x700000, scoped, tag = 'input window, operand 1']
    #allocation4 [shape = 's32[2]{0}', space=sflag, size = 0x8, scoped, tag = 'scoped memory for enc_deca_au_forward.1']
    #allocation5 [shape = 'u8[1024]{0}', space=vmem, size = 0x400, scoped, tag = 'input window, operand 2, single buffered']
    #allocation6 [shape = 's32[1]{0}', space=sflag, size = 0x4, scoped, tag = 'scoped memory for enc_deca_au_forward.1']
    #allocation7 [shape = 'u8[1024]{0}', space=vmem, size = 0x400, scoped, tag = 'input window, operand 4, single buffered']
    %10 = vsyncpa [#allocation4], 0
    %s11 = scalar_lea.sflag [#allocation4], 1
    %12 = vsyncpa %s11, 0
    %13 = vsyncpa [#allocation6], 0
    loop: start=0, step=1, limit=4
    $region2: #{enc_deca_au_forward.1} parent=1 // loop_pre_header
      _
    $region3: #{enc_deca_au_forward.1} parent=1 // loop_header
      %s15 = sphi 0, %s19
      %p16 = scmp.ge.s32.totalorder %s15, 4
      %s23 = sphi 0, %s23
      %s25 = sphi 0, %s23
      %s26 = sphi 0, %s25
      %s40 = sphi 0, %s26
      %s46 = sphi 0, %s48
      %s49 = sphi 0, %s46
      %s50 = sphi 0, %s49
      %s66 = sphi 0, %s50
      %s70 = sphi 0, %s70
      %s72 = sphi 0, %s70
      %s73 = sphi 0, %s72
      %s87 = sphi 0, %s73
      %s91 = sphi 0, %s91
      %s93 = sphi 0, %s91
      %s94 = sphi 0, %s93
      %s108 = sphi 0, %s94
      %s112 = sphi 0, %s112
      %s114 = sphi 0, %s112
      %s115 = sphi 0, %s114
      %s129 = sphi 0, %s115
      %s133 = sphi 0, %s133
      %s135 = sphi 0, %s133
      %s136 = sphi 0, %s135
      %s150 = sphi 0, %s136
    $region4: #{enc_deca_au_forward.1} parent=1 // loop_header_branch
      %18 = sbr.rel (%p16) target = $region8
    $region5: #{enc_deca_au_forward.1} parent=1 // loop_body
      %s20 = ssub.s32 %s15, 1
      %s21 = ssub.s32 %s15, 2
      %s22 = sadd.s32 %s15, 1
      %s24 = sadd.s32 %s23, 1
      %p27 = scmp.eq.s32.totalorder %s15, 1
      %p28 = scmp.ne.s32.totalorder %s23, %s25
      %p29 = scmp.eq.s32.totalorder %s15, 0
      %p30 = por %p28, %p29
      %p31 = scmp.ne.s32.totalorder %s23, %s25
      %p32 = scmp.eq.s32.totalorder %s20, 1
      %p33 = por %p31, %p32
      %p34 = scmp.ne.s32.totalorder %s25, %s26
      %p35 = scmp.eq.s32.totalorder %s20, 0
      %p36 = por %p34, %p35
      %p37 = scmp.ne.s32.totalorder %s25, %s26
      %p38 = scmp.eq.s32.totalorder %s21, 1
      %p39 = por %p37, %p38
      %p41 = scmp.ne.s32.totalorder %s26, %s40
      %p42 = scmp.eq.s32.totalorder %s21, 0
      %p43 = por %p41, %p42
      %s44 = ssub.s32 %s15, %s22
      %p45 = scmp.eq.s32.totalorder %s44, 0
      %s47 = sadd.s32 %s46, 1
      %s48 = scalar_select %p45, %s46, %s47
      %p51 = pneg %p45
      %p52 = scmp.eq.s32.totalorder %s15, 1
      %p53 = por %p51, %p52
      %p54 = scmp.ne.s32.totalorder %s46, %s49
      %p55 = scmp.eq.s32.totalorder %s15, 0
      %p56 = por %p54, %p55
      %p57 = scmp.ne.s32.totalorder %s46, %s49
      %p58 = scmp.eq.s32.totalorder %s20, 1
      %p59 = por %p57, %p58
      %p60 = scmp.ne.s32.totalorder %s49, %s50
      %p61 = scmp.eq.s32.totalorder %s20, 0
      %p62 = por %p60, %p61
      %p63 = scmp.ne.s32.totalorder %s49, %s50
      %p64 = scmp.eq.s32.totalorder %s21, 1
      %p65 = por %p63, %p64
      %p67 = scmp.ne.s32.totalorder %s50, %s66
      %p68 = scmp.eq.s32.totalorder %s21, 0
      %p69 = por %p67, %p68
      %s71 = sadd.s32 %s70, 1
      %p74 = scmp.eq.s32.totalorder %s15, 1
      %p75 = scmp.ne.s32.totalorder %s70, %s72
      %p76 = scmp.eq.s32.totalorder %s15, 0
      %p77 = por %p75, %p76
      %p78 = scmp.ne.s32.totalorder %s70, %s72
      %p79 = scmp.eq.s32.totalorder %s20, 1
      %p80 = por %p78, %p79
      %p81 = scmp.ne.s32.totalorder %s72, %s73
      %p82 = scmp.eq.s32.totalorder %s20, 0
      %p83 = por %p81, %p82
      %p84 = scmp.ne.s32.totalorder %s72, %s73
      %p85 = scmp.eq.s32.totalorder %s21, 1
      %p86 = por %p84, %p85
      %p88 = scmp.ne.s32.totalorder %s73, %s87
      %p89 = scmp.eq.s32.totalorder %s21, 0
      %p90 = por %p88, %p89
      %s92 = sadd.s32 %s91, 1
      %p95 = scmp.eq.s32.totalorder %s15, 1
      %p96 = scmp.ne.s32.totalorder %s91, %s93
      %p97 = scmp.eq.s32.totalorder %s15, 0
      %p98 = por %p96, %p97
      %p99 = scmp.ne.s32.totalorder %s91, %s93
      %p100 = scmp.eq.s32.totalorder %s20, 1
      %p101 = por %p99, %p100
      %p102 = scmp.ne.s32.totalorder %s93, %s94
      %p103 = scmp.eq.s32.totalorder %s20, 0
      %p104 = por %p102, %p103
      %p105 = scmp.ne.s32.totalorder %s93, %s94
      %p106 = scmp.eq.s32.totalorder %s21, 1
      %p107 = por %p105, %p106
      %p109 = scmp.ne.s32.totalorder %s94, %s108
      %p110 = scmp.eq.s32.totalorder %s21, 0
      %p111 = por %p109, %p110
      %s113 = sadd.s32 %s112, 1
      %p116 = scmp.eq.s32.totalorder %s15, 1
      %p117 = scmp.ne.s32.totalorder %s112, %s114
      %p118 = scmp.eq.s32.totalorder %s15, 0
      %p119 = por %p117, %p118
      %p120 = scmp.ne.s32.totalorder %s112, %s114
      %p121 = scmp.eq.s32.totalorder %s20, 1
      %p122 = por %p120, %p121
      %p123 = scmp.ne.s32.totalorder %s114, %s115
      %p124 = scmp.eq.s32.totalorder %s20, 0
      %p125 = por %p123, %p124
      %p126 = scmp.ne.s32.totalorder %s114, %s115
      %p127 = scmp.eq.s32.totalorder %s21, 1
      %p128 = por %p126, %p127
      %p130 = scmp.ne.s32.totalorder %s115, %s129
      %p131 = scmp.eq.s32.totalorder %s21, 0
      %p132 = por %p130, %p131
      %s134 = sadd.s32 %s133, 1
      %p137 = scmp.eq.s32.totalorder %s15, 1
      %p138 = scmp.ne.s32.totalorder %s133, %s135
      %p139 = scmp.eq.s32.totalorder %s15, 0
      %p140 = por %p138, %p139
      %p141 = scmp.ne.s32.totalorder %s133, %s135
      %p142 = scmp.eq.s32.totalorder %s20, 1
      %p143 = por %p141, %p142
      %p144 = scmp.ne.s32.totalorder %s135, %s136
      %p145 = scmp.eq.s32.totalorder %s20, 0
      %p146 = por %p144, %p145
      %p147 = scmp.ne.s32.totalorder %s135, %s136
      %p148 = scmp.eq.s32.totalorder %s21, 1
      %p149 = por %p147, %p148
      %p151 = scmp.ne.s32.totalorder %s136, %s150
      %p152 = scmp.eq.s32.totalorder %s21, 0
      %p153 = por %p151, %p152
      %p154 = scmp.le.s32.totalorder 1, %s15
      %p155 = scmp.lt.s32.totalorder %s15, 3
      %p156 = pnand %p154, %p155
      %p157 = pneg %p156
      // Predicated region
      $region9: #{enc_deca_au_forward.1} parent=5 // pred_check
        _
      $region10: #{enc_deca_au_forward.1} parent=5 // pred_check_branch
        %159 = sbr.rel (%p156) target = $region12
      $region11: #{enc_deca_au_forward.1} parent=5 // pred_region
        %s160 = ssub.s32 %s15, 1
        // Predicated region
        $region13: #{enc_deca_au_forward.1} parent=11 // pred_check
          %p161 = pneg %p36
        $region14: #{enc_deca_au_forward.1} parent=11 // pred_check_branch
          %163 = sbr.rel (%p161) target = $region16
        $region15: #{enc_deca_au_forward.1} parent=11 // pred_region
          _
        $region16: #{enc_deca_au_forward.1} parent=11 // pred_fallthru
          _
        // Predicated region
        $region17: #{enc_deca_au_forward.1} parent=11 // pred_check
          %p164 = pneg %p83
        $region18: #{enc_deca_au_forward.1} parent=11 // pred_check_branch
          %166 = sbr.rel (%p164) target = $region20
        $region19: #{enc_deca_au_forward.1} parent=11 // pred_region
          %s168 = ssub.s32 32, 32
          %169 = vsyncadd [#allocation6], %s168
          %s171 = sshll.u32 [#allocation5], 4
          %s172 = int_to_ptr.vmem [resolvable:$true] %s171
          %174 = dma.hbm_to_vmem [thread:$0]  %s2, 32, %s172, [#allocation6]
        $region20: #{enc_deca_au_forward.1} parent=11 // pred_fallthru
          _
        // Predicated region
        $region21: #{enc_deca_au_forward.1} parent=11 // pred_check
          %p175 = pneg %p104
        $region22: #{enc_deca_au_forward.1} parent=11 // pred_check_branch
          %177 = sbr.rel (%p175) target = $region24
        $region23: #{enc_deca_au_forward.1} parent=11 // pred_region
          _
        $region24: #{enc_deca_au_forward.1} parent=11 // pred_fallthru
          _
        // Predicated region
        $region25: #{enc_deca_au_forward.1} parent=11 // pred_check
          %p178 = pneg %p125
        $region26: #{enc_deca_au_forward.1} parent=11 // pred_check_branch
          %180 = sbr.rel (%p178) target = $region28
        $region27: #{enc_deca_au_forward.1} parent=11 // pred_region
          %s182 = ssub.s32 32, 32
          %183 = vsyncadd [#allocation6], %s182
          %s185 = sshll.u32 [#allocation7], 4
          %s186 = int_to_ptr.vmem [resolvable:$true] %s185
          %188 = dma.hbm_to_vmem [thread:$0]  %s4, 32, %s186, [#allocation6]
        $region28: #{enc_deca_au_forward.1} parent=11 // pred_fallthru
          _
      $region12: #{enc_deca_au_forward.1} parent=5 // pred_fallthru
        _
      %p189 = scmp.lt.s32.totalorder %s15, 2
      // Predicated region
      $region29: #{enc_deca_au_forward.1} parent=5 // pred_check
        %p190 = pneg %p189
      $region30: #{enc_deca_au_forward.1} parent=5 // pred_check_branch
        %192 = sbr.rel (%p190) target = $region32
      $region31: #{enc_deca_au_forward.1} parent=5 // pred_region
        // Predicated region
        $region33: #{enc_deca_au_forward.1} parent=31 // pred_check
          %p193 = pneg %p56
        $region34: #{enc_deca_au_forward.1} parent=31 // pred_check_branch
          %195 = sbr.rel (%p193) target = $region36
        $region35: #{enc_deca_au_forward.1} parent=31 // pred_region
          %s196 = sand.u32 %s46, 1
          %s197 = scalar_lea.sflag [#allocation4], %s196
          %s198 = sand.u32 %s46, 1
          %s199 = smul.addr %s198, 7168
          %s200 = scalar_lea.vmem [#allocation3], %s199
          %s201 = smul.u32 896, %s15
          %s203 = ssub.s32 114688, 114688
          %204 = vsyncadd %s197, %s203
          %s205 = smul.addr %s201, 2
          %s206 = smul.addr %s205, 64
          %s207 = scalar_lea.hbm %s1, %s206
          %s208 = sshll.u32 %s200, 4
          %s209 = int_to_ptr.vmem [resolvable:$true] %s208
          %214 = dma.hbm_to_vmem [thread:$0]  %s207, 114688, %s209, %s197, 128, 128, 8
        $region36: #{enc_deca_au_forward.1} parent=31 // pred_fallthru
          _
      $region32: #{enc_deca_au_forward.1} parent=5 // pred_fallthru
        _
      %p215 = scmp.le.s32.totalorder 1, %s15
      %p216 = scmp.lt.s32.totalorder %s15, 3
      %p217 = pnand %p215, %p216
      %p218 = pneg %p217
      // Predicated region
      $region37: #{enc_deca_au_forward.1} parent=5 // pred_check
        _
      $region38: #{enc_deca_au_forward.1} parent=5 // pred_check_branch
        %220 = sbr.rel (%p217) target = $region40
      $region39: #{enc_deca_au_forward.1} parent=5 // pred_region
        %s221 = ssub.s32 %s15, 1
        %s222 = sand.u32 %s49, 1
        %s223 = scalar_lea.sflag [#allocation4], %s222
        %s224 = sand.u32 %s49, 1
        %s225 = smul.addr %s224, 7168
        %s226 = scalar_lea.vmem [#allocation3], %s225
        // Predicated region
        $region41: #{enc_deca_au_forward.1} parent=39 // pred_check
          %p227 = pneg %p62
        $region42: #{enc_deca_au_forward.1} parent=39 // pred_check_branch
          %229 = sbr.rel (%p227) target = $region44
        $region43: #{enc_deca_au_forward.1} parent=39 // pred_region
          %230 = dma.done %s223, 114688
        $region44: #{enc_deca_au_forward.1} parent=39 // pred_fallthru
          _
        // Predicated region
        $region45: #{enc_deca_au_forward.1} parent=39 // pred_check
          %p231 = pneg %p83
        $region46: #{enc_deca_au_forward.1} parent=39 // pred_check_branch
          %233 = sbr.rel (%p231) target = $region48
        $region47: #{enc_deca_au_forward.1} parent=39 // pred_region
          %234 = dma.done [#allocation6], 32
        $region48: #{enc_deca_au_forward.1} parent=39 // pred_fallthru
          _
        // Predicated region
        $region49: #{enc_deca_au_forward.1} parent=39 // pred_check
          %p235 = pneg %p125
        $region50: #{enc_deca_au_forward.1} parent=39 // pred_check_branch
          %237 = sbr.rel (%p235) target = $region52
        $region51: #{enc_deca_au_forward.1} parent=39 // pred_region
          %238 = dma.done [#allocation6], 32
        $region52: #{enc_deca_au_forward.1} parent=39 // pred_fallthru
          _
        %p239 = pneg %p36
        %p240 = pneg %p33
        %s241 = sand.u32 %s49, 1
        %s242 = scalar_lea.sflag [#allocation4], %s241
        %s243 = sand.u32 %s49, 1
        %s244 = smul.addr %s243, 7168
        %s245 = scalar_lea.vmem [#allocation3], %s244
        %p246 = pneg %p62
        %p247 = pneg %p59
        %p248 = pneg %p83
        %p249 = pneg %p80
        %p250 = pneg %p104
        %p251 = pneg %p101
        %p252 = pneg %p125
        %p253 = pneg %p122
        %p254 = pneg %p146
        %p255 = pneg %p143
        %s256 = smul.u32 896, %s20
        %p257 = scmp.eq.s32.totalorder %s20, 0
        // Predicated region
        $region53: #{enc_deca_au_forward.1} parent=39 // pred_check
          %p258 = pneg %p257
        $region54: #{enc_deca_au_forward.1} parent=39 // pred_check_branch
          %260 = sbr.rel (%p258) target = $region56
        $region55: #{enc_deca_au_forward.1} parent=39 // pred_region
          %261 = vst [vmem:[#allocation2] sm:$0xff] 0.0
          %262 = vst [vmem:[#allocation2 + $0x8] sm:$0xff] 0.0
        $region56: #{enc_deca_au_forward.1} parent=39 // pred_fallthru
          _
        %s263 = smul.u32 %s20, 7168
        %s264 = sshra.s32 %s263, 7
        %s265 = sand.u32 %s263, 127
        %s266 = smul.addr %s264, 4
        %s267 = scalar_lea.vmem %s0, %s266
        %v268 = vld [vmem:[%s267] sm:$0xff]
        %v269 = vld [vmem:[%s267 + $0x8] sm:$0xff]
        %v270 = vld [vmem:[%s267 + $0x10] sm:$0xff]
        %v271 = vld [vmem:[%s267 + $0x18] sm:$0xff]
        %v272 = vld [vmem:[%s267 + $0x20] sm:$0xff]
        %v273 = vld [vmem:[%s267 + $0x28] sm:$0xff]
        %v274 = vld [vmem:[%s267 + $0x30] sm:$0xff]
        %v275 = vld [vmem:[%s267 + $0x38] sm:$0xff]
        %v276 = vld [vmem:[%s267 + $0x40] sm:$0xff]
        %v277 = vld [vmem:[%s267 + $0x48] sm:$0xff]
        %v278 = vld [vmem:[%s267 + $0x50] sm:$0xff]
        %v279 = vld [vmem:[%s267 + $0x58] sm:$0xff]
        %v280 = vld [vmem:[%s267 + $0x60] sm:$0xff]
        %v281 = vld [vmem:[%s267 + $0x68] sm:$0xff]
        %v282 = vld [vmem:[%s267 + $0x70] sm:$0xff]
        %v283 = vld [vmem:[%s267 + $0x78] sm:$0xff]
        %v284 = vld [vmem:[%s267 + $0x80] sm:$0xff]
        %v285 = vld [vmem:[%s267 + $0x88] sm:$0xff]
        %v286 = vld [vmem:[%s267 + $0x90] sm:$0xff]
        %v287 = vld [vmem:[%s267 + $0x98] sm:$0xff]
        %v288 = vld [vmem:[%s267 + $0xa0] sm:$0xff]
        %v289 = vld [vmem:[%s267 + $0xa8] sm:$0xff]
        %v290 = vld [vmem:[%s267 + $0xb0] sm:$0xff]
        %v291 = vld [vmem:[%s267 + $0xb8] sm:$0xff]
        %v292 = vld [vmem:[%s267 + $0xc0] sm:$0xff]
        %v293 = vld [vmem:[%s267 + $0xc8] sm:$0xff]
        %v294 = vld [vmem:[%s267 + $0xd0] sm:$0xff]
        %v295 = vld [vmem:[%s267 + $0xd8] sm:$0xff]
        %v296 = vld [vmem:[#allocation2] sm:$0xff]
        %v297 = vld [vmem:[#allocation2 + $0x8] sm:$0xff]
        %v298 = vld [vmem:[%s226] sm:$0xff]
        %v299 = vld [vmem:[%s226 + $0x8] sm:$0xff]
        %v300 = vld [vmem:[%s226 + $0x10] sm:$0xff]
        %v301 = vld [vmem:[%s226 + $0x18] sm:$0xff]
        %v302 = vld [vmem:[%s226 + $0x20] sm:$0xff]
        %v303 = vld [vmem:[%s226 + $0x28] sm:$0xff]
        %v304 = vld [vmem:[%s226 + $0x30] sm:$0xff]
        %v305 = vld [vmem:[%s226 + $0x38] sm:$0xff]
        %v306 = vld [vmem:[%s226 + $0x40] sm:$0xff]
        %v307 = vld [vmem:[%s226 + $0x48] sm:$0xff]
        %v308 = vld [vmem:[%s226 + $0x50] sm:$0xff]
        %v309 = vld [vmem:[%s226 + $0x58] sm:$0xff]
        %v310 = vld [vmem:[%s226 + $0x60] sm:$0xff]
        %v311 = vld [vmem:[%s226 + $0x68] sm:$0xff]
        %v312 = vld [vmem:[%s226 + $0x70] sm:$0xff]
        %v313 = vld [vmem:[%s226 + $0x78] sm:$0xff]
        %v314 = vld [vmem:[%s226 + $0x80] sm:$0xff]
        %v315 = vld [vmem:[%s226 + $0x88] sm:$0xff]
        %v316 = vld [vmem:[%s226 + $0x90] sm:$0xff]
        %v317 = vld [vmem:[%s226 + $0x98] sm:$0xff]
        %v318 = vld [vmem:[%s226 + $0xa0] sm:$0xff]
        %v319 = vld [vmem:[%s226 + $0xa8] sm:$0xff]
        %v320 = vld [vmem:[%s226 + $0xb0] sm:$0xff]
        %v321 = vld [vmem:[%s226 + $0xb8] sm:$0xff]
        %v322 = vld [vmem:[%s226 + $0xc0] sm:$0xff]
        %v323 = vld [vmem:[%s226 + $0xc8] sm:$0xff]
        %v324 = vld [vmem:[%s226 + $0xd0] sm:$0xff]
        %v325 = vld [vmem:[%s226 + $0xd8] sm:$0xff]
        %v326 = vld [vmem:[%s226 + $0xe0] sm:$0xff]
        %v327 = vld [vmem:[%s226 + $0xe8] sm:$0xff]
        %v328 = vld [vmem:[%s226 + $0xf0] sm:$0xff]
        %v329 = vld [vmem:[%s226 + $0xf8] sm:$0xff]
        %v330 = vld [vmem:[%s226 + $0x100] sm:$0xff]
        %v331 = vld [vmem:[%s226 + $0x108] sm:$0xff]
        %v332 = vld [vmem:[%s226 + $0x110] sm:$0xff]
        %v333 = vld [vmem:[%s226 + $0x118] sm:$0xff]
        %v334 = vld [vmem:[%s226 + $0x120] sm:$0xff]
        %v335 = vld [vmem:[%s226 + $0x128] sm:$0xff]
        %v336 = vld [vmem:[%s226 + $0x130] sm:$0xff]
        %v337 = vld [vmem:[%s226 + $0x138] sm:$0xff]
        %v338 = vld [vmem:[%s226 + $0x140] sm:$0xff]
        %v339 = vld [vmem:[%s226 + $0x148] sm:$0xff]
        %v340 = vld [vmem:[%s226 + $0x150] sm:$0xff]
        %v341 = vld [vmem:[%s226 + $0x158] sm:$0xff]
        %v342 = vld [vmem:[%s226 + $0x160] sm:$0xff]
        %v343 = vld [vmem:[%s226 + $0x168] sm:$0xff]
        %v344 = vld [vmem:[%s226 + $0x170] sm:$0xff]
        %v345 = vld [vmem:[%s226 + $0x178] sm:$0xff]
        %v346 = vld [vmem:[%s226 + $0x180] sm:$0xff]
        %v347 = vld [vmem:[%s226 + $0x188] sm:$0xff]
        %v348 = vld [vmem:[%s226 + $0x190] sm:$0xff]
        %v349 = vld [vmem:[%s226 + $0x198] sm:$0xff]
        %v350 = vld [vmem:[%s226 + $0x1a0] sm:$0xff]
        %v351 = vld [vmem:[%s226 + $0x1a8] sm:$0xff]
        %v352 = vld [vmem:[%s226 + $0x1b0] sm:$0xff]
        %v353 = vld [vmem:[%s226 + $0x1b8] sm:$0xff]
        %v354 = vld [vmem:[%s226 + $0x1c0] sm:$0xff]
        %v355 = vld [vmem:[%s226 + $0x1c8] sm:$0xff]
        %v356 = vld [vmem:[%s226 + $0x1d0] sm:$0xff]
        %v357 = vld [vmem:[%s226 + $0x1d8] sm:$0xff]
        %v358 = vld [vmem:[%s226 + $0x1e0] sm:$0xff]
        %v359 = vld [vmem:[%s226 + $0x1e8] sm:$0xff]
        %v360 = vld [vmem:[%s226 + $0x1f0] sm:$0xff]
        %v361 = vld [vmem:[%s226 + $0x1f8] sm:$0xff]
        %v362 = vld [vmem:[%s226 + $0x200] sm:$0xff]
        %v363 = vld [vmem:[%s226 + $0x208] sm:$0xff]
        %v364 = vld [vmem:[%s226 + $0x210] sm:$0xff]
        %v365 = vld [vmem:[%s226 + $0x218] sm:$0xff]
        %v366 = vld [vmem:[%s226 + $0x220] sm:$0xff]
        %v367 = vld [vmem:[%s226 + $0x228] sm:$0xff]
        %v368 = vld [vmem:[%s226 + $0x230] sm:$0xff]
        %v369 = vld [vmem:[%s226 + $0x238] sm:$0xff]
        %v370 = vld [vmem:[%s226 + $0x240] sm:$0xff]
        %v371 = vld [vmem:[%s226 + $0x248] sm:$0xff]
        %v372 = vld [vmem:[%s226 + $0x250] sm:$0xff]
        %v373 = vld [vmem:[%s226 + $0x258] sm:$0xff]
        %v374 = vld [vmem:[%s226 + $0x260] sm:$0xff]
        %v375 = vld [vmem:[%s226 + $0x268] sm:$0xff]
        %v376 = vld [vmem:[%s226 + $0x270] sm:$0xff]
        %v377 = vld [vmem:[%s226 + $0x278] sm:$0xff]
        %v378 = vld [vmem:[%s226 + $0x280] sm:$0xff]
        %v379 = vld [vmem:[%s226 + $0x288] sm:$0xff]
        %v380 = vld [vmem:[%s226 + $0x290] sm:$0xff]
        %v381 = vld [vmem:[%s226 + $0x298] sm:$0xff]
        %v382 = vld [vmem:[%s226 + $0x2a0] sm:$0xff]
        %v383 = vld [vmem:[%s226 + $0x2a8] sm:$0xff]
        %v384 = vld [vmem:[%s226 + $0x2b0] sm:$0xff]
        %v385 = vld [vmem:[%s226 + $0x2b8] sm:$0xff]
        %v386 = vld [vmem:[%s226 + $0x2c0] sm:$0xff]
        %v387 = vld [vmem:[%s226 + $0x2c8] sm:$0xff]
        %v388 = vld [vmem:[%s226 + $0x2d0] sm:$0xff]
        %v389 = vld [vmem:[%s226 + $0x2d8] sm:$0xff]
        %v390 = vld [vmem:[%s226 + $0x2e0] sm:$0xff]
        %v391 = vld [vmem:[%s226 + $0x2e8] sm:$0xff]
        %v392 = vld [vmem:[%s226 + $0x2f0] sm:$0xff]
        %v393 = vld [vmem:[%s226 + $0x2f8] sm:$0xff]
        %v394 = vld [vmem:[%s226 + $0x300] sm:$0xff]
        %v395 = vld [vmem:[%s226 + $0x308] sm:$0xff]
        %v396 = vld [vmem:[%s226 + $0x310] sm:$0xff]
        %v397 = vld [vmem:[%s226 + $0x318] sm:$0xff]
        %v398 = vld [vmem:[%s226 + $0x320] sm:$0xff]
        %v399 = vld [vmem:[%s226 + $0x328] sm:$0xff]
        %v400 = vld [vmem:[%s226 + $0x330] sm:$0xff]
        %v401 = vld [vmem:[%s226 + $0x338] sm:$0xff]
        %v402 = vld [vmem:[%s226 + $0x340] sm:$0xff]
        %v403 = vld [vmem:[%s226 + $0x348] sm:$0xff]
        %v404 = vld [vmem:[%s226 + $0x350] sm:$0xff]
        %v405 = vld [vmem:[%s226 + $0x358] sm:$0xff]
        %v406 = vld [vmem:[%s226 + $0x360] sm:$0xff]
        %v407 = vld [vmem:[%s226 + $0x368] sm:$0xff]
        %v408 = vld [vmem:[%s226 + $0x370] sm:$0xff]
        %v409 = vld [vmem:[%s226 + $0x378] sm:$0xff]
        %v410 = vld [vmem:[%s226 + $0x380] sm:$0xff]
        %v411 = vld [vmem:[%s226 + $0x388] sm:$0xff]
        %v412 = vld [vmem:[%s226 + $0x390] sm:$0xff]
        %v413 = vld [vmem:[%s226 + $0x398] sm:$0xff]
        %v414 = vld [vmem:[%s226 + $0x3a0] sm:$0xff]
        %v415 = vld [vmem:[%s226 + $0x3a8] sm:$0xff]
        %v416 = vld [vmem:[%s226 + $0x3b0] sm:$0xff]
        %v417 = vld [vmem:[%s226 + $0x3b8] sm:$0xff]
        %v418 = vld [vmem:[%s226 + $0x3c0] sm:$0xff]
        %v419 = vld [vmem:[%s226 + $0x3c8] sm:$0xff]
        %v420 = vld [vmem:[%s226 + $0x3d0] sm:$0xff]
        %v421 = vld [vmem:[%s226 + $0x3d8] sm:$0xff]
        %v422 = vld [vmem:[%s226 + $0x3e0] sm:$0xff]
        %v423 = vld [vmem:[%s226 + $0x3e8] sm:$0xff]
        %v424 = vld [vmem:[%s226 + $0x3f0] sm:$0xff]
        %v425 = vld [vmem:[%s226 + $0x3f8] sm:$0xff]
        %v426 = vld [vmem:[%s226 + $0x400] sm:$0xff]
        %v427 = vld [vmem:[%s226 + $0x408] sm:$0xff]
        %v428 = vld [vmem:[%s226 + $0x410] sm:$0xff]
        %v429 = vld [vmem:[%s226 + $0x418] sm:$0xff]
        %v430 = vld [vmem:[%s226 + $0x420] sm:$0xff]
        %v431 = vld [vmem:[%s226 + $0x428] sm:$0xff]
        %v432 = vld [vmem:[%s226 + $0x430] sm:$0xff]
        %v433 = vld [vmem:[%s226 + $0x438] sm:$0xff]
        %v434 = vld [vmem:[%s226 + $0x440] sm:$0xff]
        %v435 = vld [vmem:[%s226 + $0x448] sm:$0xff]
        %v436 = vld [vmem:[%s226 + $0x450] sm:$0xff]
        %v437 = vld [vmem:[%s226 + $0x458] sm:$0xff]
        %v438 = vld [vmem:[%s226 + $0x460] sm:$0xff]
        %v439 = vld [vmem:[%s226 + $0x468] sm:$0xff]
        %v440 = vld [vmem:[%s226 + $0x470] sm:$0xff]
        %v441 = vld [vmem:[%s226 + $0x478] sm:$0xff]
        %v442 = vld [vmem:[%s226 + $0x480] sm:$0xff]
        %v443 = vld [vmem:[%s226 + $0x488] sm:$0xff]
        %v444 = vld [vmem:[%s226 + $0x490] sm:$0xff]
        %v445 = vld [vmem:[%s226 + $0x498] sm:$0xff]
        %v446 = vld [vmem:[%s226 + $0x4a0] sm:$0xff]
        %v447 = vld [vmem:[%s226 + $0x4a8] sm:$0xff]
        %v448 = vld [vmem:[%s226 + $0x4b0] sm:$0xff]
        %v449 = vld [vmem:[%s226 + $0x4b8] sm:$0xff]
        %v450 = vld [vmem:[%s226 + $0x4c0] sm:$0xff]
        %v451 = vld [vmem:[%s226 + $0x4c8] sm:$0xff]
        %v452 = vld [vmem:[%s226 + $0x4d0] sm:$0xff]
        %v453 = vld [vmem:[%s226 + $0x4d8] sm:$0xff]
        %v454 = vld [vmem:[%s226 + $0x4e0] sm:$0xff]
        %v455 = vld [vmem:[%s226 + $0x4e8] sm:$0xff]
        %v456 = vld [vmem:[%s226 + $0x4f0] sm:$0xff]
        %v457 = vld [vmem:[%s226 + $0x4f8] sm:$0xff]
        %v458 = vld [vmem:[%s226 + $0x500] sm:$0xff]
        %v459 = vld [vmem:[%s226 + $0x508] sm:$0xff]
        %v460 = vld [vmem:[%s226 + $0x510] sm:$0xff]
        %v461 = vld [vmem:[%s226 + $0x518] sm:$0xff]
        %v462 = vld [vmem:[%s226 + $0x520] sm:$0xff]
        %v463 = vld [vmem:[%s226 + $0x528] sm:$0xff]
        %v464 = vld [vmem:[%s226 + $0x530] sm:$0xff]
        %v465 = vld [vmem:[%s226 + $0x538] sm:$0xff]
        %v466 = vld [vmem:[%s226 + $0x540] sm:$0xff]
        %v467 = vld [vmem:[%s226 + $0x548] sm:$0xff]
        %v468 = vld [vmem:[%s226 + $0x550] sm:$0xff]
        %v469 = vld [vmem:[%s226 + $0x558] sm:$0xff]
        %v470 = vld [vmem:[%s226 + $0x560] sm:$0xff]
        %v471 = vld [vmem:[%s226 + $0x568] sm:$0xff]
        %v472 = vld [vmem:[%s226 + $0x570] sm:$0xff]
        %v473 = vld [vmem:[%s226 + $0x578] sm:$0xff]
        %v474 = vld [vmem:[%s226 + $0x580] sm:$0xff]
        %v475 = vld [vmem:[%s226 + $0x588] sm:$0xff]
        %v476 = vld [vmem:[%s226 + $0x590] sm:$0xff]
        %v477 = vld [vmem:[%s226 + $0x598] sm:$0xff]
        %v478 = vld [vmem:[%s226 + $0x5a0] sm:$0xff]
        %v479 = vld [vmem:[%s226 + $0x5a8] sm:$0xff]
        %v480 = vld [vmem:[%s226 + $0x5b0] sm:$0xff]
        %v481 = vld [vmem:[%s226 + $0x5b8] sm:$0xff]
        %v482 = vld [vmem:[%s226 + $0x5c0] sm:$0xff]
        %v483 = vld [vmem:[%s226 + $0x5c8] sm:$0xff]
        %v484 = vld [vmem:[%s226 + $0x5d0] sm:$0xff]
        %v485 = vld [vmem:[%s226 + $0x5d8] sm:$0xff]
        %v486 = vld [vmem:[%s226 + $0x5e0] sm:$0xff]
        %v487 = vld [vmem:[%s226 + $0x5e8] sm:$0xff]
        %v488 = vld [vmem:[%s226 + $0x5f0] sm:$0xff]
        %v489 = vld [vmem:[%s226 + $0x5f8] sm:$0xff]
        %v490 = vld [vmem:[%s226 + $0x600] sm:$0xff]
        %v491 = vld [vmem:[%s226 + $0x608] sm:$0xff]
        %v492 = vld [vmem:[%s226 + $0x610] sm:$0xff]
        %v493 = vld [vmem:[%s226 + $0x618] sm:$0xff]
        %v494 = vld [vmem:[%s226 + $0x620] sm:$0xff]
        %v495 = vld [vmem:[%s226 + $0x628] sm:$0xff]
        %v496 = vld [vmem:[%s226 + $0x630] sm:$0xff]
        %v497 = vld [vmem:[%s226 + $0x638] sm:$0xff]
        %v498 = vld [vmem:[%s226 + $0x640] sm:$0xff]
        %v499 = vld [vmem:[%s226 + $0x648] sm:$0xff]
        %v500 = vld [vmem:[%s226 + $0x650] sm:$0xff]
        %v501 = vld [vmem:[%s226 + $0x658] sm:$0xff]
        %v502 = vld [vmem:[%s226 + $0x660] sm:$0xff]
        %v503 = vld [vmem:[%s226 + $0x668] sm:$0xff]
        %v504 = vld [vmem:[%s226 + $0x670] sm:$0xff]
        %v505 = vld [vmem:[%s226 + $0x678] sm:$0xff]
        %v506 = vld [vmem:[%s226 + $0x680] sm:$0xff]
        %v507 = vld [vmem:[%s226 + $0x688] sm:$0xff]
        %v508 = vld [vmem:[%s226 + $0x690] sm:$0xff]
        %v509 = vld [vmem:[%s226 + $0x698] sm:$0xff]
        %v510 = vld [vmem:[%s226 + $0x6a0] sm:$0xff]
        %v511 = vld [vmem:[%s226 + $0x6a8] sm:$0xff]
        %v512 = vld [vmem:[%s226 + $0x6b0] sm:$0xff]
        %v513 = vld [vmem:[%s226 + $0x6b8] sm:$0xff]
        %v514 = vld [vmem:[%s226 + $0x6c0] sm:$0xff]
        %v515 = vld [vmem:[%s226 + $0x6c8] sm:$0xff]
        %v516 = vld [vmem:[%s226 + $0x6d0] sm:$0xff]
        %v517 = vld [vmem:[%s226 + $0x6d8] sm:$0xff]
        %v518 = vld [vmem:[%s226 + $0x6e0] sm:$0xff]
        %v519 = vld [vmem:[%s226 + $0x6e8] sm:$0xff]
        %v520 = vld [vmem:[%s226 + $0x6f0] sm:$0xff]
        %v521 = vld [vmem:[%s226 + $0x6f8] sm:$0xff]
        %v522 = vld [vmem:[%s226 + $0x700] sm:$0xff]
        %v523 = vld [vmem:[%s226 + $0x708] sm:$0xff]
        %v524 = vld [vmem:[%s226 + $0x710] sm:$0xff]
        %v525 = vld [vmem:[%s226 + $0x718] sm:$0xff]
        %v526 = vld [vmem:[%s226 + $0x720] sm:$0xff]
        %v527 = vld [vmem:[%s226 + $0x728] sm:$0xff]
        %v528 = vld [vmem:[%s226 + $0x730] sm:$0xff]
        %v529 = vld [vmem:[%s226 + $0x738] sm:$0xff]
        %v530 = vld [vmem:[%s226 + $0x740] sm:$0xff]
        %v531 = vld [vmem:[%s226 + $0x748] sm:$0xff]
        %v532 = vld [vmem:[%s226 + $0x750] sm:$0xff]
        %v533 = vld [vmem:[%s226 + $0x758] sm:$0xff]
        %v534 = vld [vmem:[%s226 + $0x760] sm:$0xff]
        %v535 = vld [vmem:[%s226 + $0x768] sm:$0xff]
        %v536 = vld [vmem:[%s226 + $0x770] sm:$0xff]
        %v537 = vld [vmem:[%s226 + $0x778] sm:$0xff]
        %v538 = vld [vmem:[%s226 + $0x780] sm:$0xff]
        %v539 = vld [vmem:[%s226 + $0x788] sm:$0xff]
        %v540 = vld [vmem:[%s226 + $0x790] sm:$0xff]
        %v541 = vld [vmem:[%s226 + $0x798] sm:$0xff]
        %v542 = vld [vmem:[%s226 + $0x7a0] sm:$0xff]
        %v543 = vld [vmem:[%s226 + $0x7a8] sm:$0xff]
        %v544 = vld [vmem:[%s226 + $0x7b0] sm:$0xff]
        %v545 = vld [vmem:[%s226 + $0x7b8] sm:$0xff]
        %v546 = vld [vmem:[%s226 + $0x7c0] sm:$0xff]
        %v547 = vld [vmem:[%s226 + $0x7c8] sm:$0xff]
        %v548 = vld [vmem:[%s226 + $0x7d0] sm:$0xff]
        %v549 = vld [vmem:[%s226 + $0x7d8] sm:$0xff]
        %v550 = vld [vmem:[%s226 + $0x7e0] sm:$0xff]
        %v551 = vld [vmem:[%s226 + $0x7e8] sm:$0xff]
        %v552 = vld [vmem:[%s226 + $0x7f0] sm:$0xff]
        %v553 = vld [vmem:[%s226 + $0x7f8] sm:$0xff]
        %v554 = vld [vmem:[%s226 + $0x800] sm:$0xff]
        %v555 = vld [vmem:[%s226 + $0x808] sm:$0xff]
        %v556 = vld [vmem:[%s226 + $0x810] sm:$0xff]
        %v557 = vld [vmem:[%s226 + $0x818] sm:$0xff]
        %v558 = vld [vmem:[%s226 + $0x820] sm:$0xff]
        %v559 = vld [vmem:[%s226 + $0x828] sm:$0xff]
        %v560 = vld [vmem:[%s226 + $0x830] sm:$0xff]
        %v561 = vld [vmem:[%s226 + $0x838] sm:$0xff]
        %v562 = vld [vmem:[%s226 + $0x840] sm:$0xff]
        %v563 = vld [vmem:[%s226 + $0x848] sm:$0xff]
        %v564 = vld [vmem:[%s226 + $0x850] sm:$0xff]
        %v565 = vld [vmem:[%s226 + $0x858] sm:$0xff]
        %v566 = vld [vmem:[%s226 + $0x860] sm:$0xff]
        %v567 = vld [vmem:[%s226 + $0x868] sm:$0xff]
        %v568 = vld [vmem:[%s226 + $0x870] sm:$0xff]
        %v569 = vld [vmem:[%s226 + $0x878] sm:$0xff]
        %v570 = vld [vmem:[%s226 + $0x880] sm:$0xff]
        %v571 = vld [vmem:[%s226 + $0x888] sm:$0xff]
        %v572 = vld [vmem:[%s226 + $0x890] sm:$0xff]
        %v573 = vld [vmem:[%s226 + $0x898] sm:$0xff]
        %v574 = vld [vmem:[%s226 + $0x8a0] sm:$0xff]
        %v575 = vld [vmem:[%s226 + $0x8a8] sm:$0xff]
        %v576 = vld [vmem:[%s226 + $0x8b0] sm:$0xff]
        %v577 = vld [vmem:[%s226 + $0x8b8] sm:$0xff]
        %v578 = vld [vmem:[%s226 + $0x8c0] sm:$0xff]
        %v579 = vld [vmem:[%s226 + $0x8c8] sm:$0xff]
        %v580 = vld [vmem:[%s226 + $0x8d0] sm:$0xff]
        %v581 = vld [vmem:[%s226 + $0x8d8] sm:$0xff]
        %v582 = vld [vmem:[%s226 + $0x8e0] sm:$0xff]
        %v583 = vld [vmem:[%s226 + $0x8e8] sm:$0xff]
        %v584 = vld [vmem:[%s226 + $0x8f0] sm:$0xff]
        %v585 = vld [vmem:[%s226 + $0x8f8] sm:$0xff]
        %v586 = vld [vmem:[%s226 + $0x900] sm:$0xff]
        %v587 = vld [vmem:[%s226 + $0x908] sm:$0xff]
        %v588 = vld [vmem:[%s226 + $0x910] sm:$0xff]
        %v589 = vld [vmem:[%s226 + $0x918] sm:$0xff]
        %v590 = vld [vmem:[%s226 + $0x920] sm:$0xff]
        %v591 = vld [vmem:[%s226 + $0x928] sm:$0xff]
        %v592 = vld [vmem:[%s226 + $0x930] sm:$0xff]
        %v593 = vld [vmem:[%s226 + $0x938] sm:$0xff]
        %v594 = vld [vmem:[%s226 + $0x940] sm:$0xff]
        %v595 = vld [vmem:[%s226 + $0x948] sm:$0xff]
        %v596 = vld [vmem:[%s226 + $0x950] sm:$0xff]
        %v597 = vld [vmem:[%s226 + $0x958] sm:$0xff]
        %v598 = vld [vmem:[%s226 + $0x960] sm:$0xff]
        %v599 = vld [vmem:[%s226 + $0x968] sm:$0xff]
        %v600 = vld [vmem:[%s226 + $0x970] sm:$0xff]
        %v601 = vld [vmem:[%s226 + $0x978] sm:$0xff]
        %v602 = vld [vmem:[%s226 + $0x980] sm:$0xff]
        %v603 = vld [vmem:[%s226 + $0x988] sm:$0xff]
        %v604 = vld [vmem:[%s226 + $0x990] sm:$0xff]
        %v605 = vld [vmem:[%s226 + $0x998] sm:$0xff]
        %v606 = vld [vmem:[%s226 + $0x9a0] sm:$0xff]
        %v607 = vld [vmem:[%s226 + $0x9a8] sm:$0xff]
        %v608 = vld [vmem:[%s226 + $0x9b0] sm:$0xff]
        %v609 = vld [vmem:[%s226 + $0x9b8] sm:$0xff]
        %v610 = vld [vmem:[%s226 + $0x9c0] sm:$0xff]
        %v611 = vld [vmem:[%s226 + $0x9c8] sm:$0xff]
        %v612 = vld [vmem:[%s226 + $0x9d0] sm:$0xff]
        %v613 = vld [vmem:[%s226 + $0x9d8] sm:$0xff]
        %v614 = vld [vmem:[%s226 + $0x9e0] sm:$0xff]
        %v615 = vld [vmem:[%s226 + $0x9e8] sm:$0xff]
        %v616 = vld [vmem:[%s226 + $0x9f0] sm:$0xff]
        %v617 = vld [vmem:[%s226 + $0x9f8] sm:$0xff]
        %v618 = vld [vmem:[%s226 + $0xa00] sm:$0xff]
        %v619 = vld [vmem:[%s226 + $0xa08] sm:$0xff]
        %v620 = vld [vmem:[%s226 + $0xa10] sm:$0xff]
        %v621 = vld [vmem:[%s226 + $0xa18] sm:$0xff]
        %v622 = vld [vmem:[%s226 + $0xa20] sm:$0xff]
        %v623 = vld [vmem:[%s226 + $0xa28] sm:$0xff]
        %v624 = vld [vmem:[%s226 + $0xa30] sm:$0xff]
        %v625 = vld [vmem:[%s226 + $0xa38] sm:$0xff]
        %v626 = vld [vmem:[%s226 + $0xa40] sm:$0xff]
        %v627 = vld [vmem:[%s226 + $0xa48] sm:$0xff]
        %v628 = vld [vmem:[%s226 + $0xa50] sm:$0xff]
        %v629 = vld [vmem:[%s226 + $0xa58] sm:$0xff]
        %v630 = vld [vmem:[%s226 + $0xa60] sm:$0xff]
        %v631 = vld [vmem:[%s226 + $0xa68] sm:$0xff]
        %v632 = vld [vmem:[%s226 + $0xa70] sm:$0xff]
        %v633 = vld [vmem:[%s226 + $0xa78] sm:$0xff]
        %v634 = vld [vmem:[%s226 + $0xa80] sm:$0xff]
        %v635 = vld [vmem:[%s226 + $0xa88] sm:$0xff]
        %v636 = vld [vmem:[%s226 + $0xa90] sm:$0xff]
        %v637 = vld [vmem:[%s226 + $0xa98] sm:$0xff]
        %v638 = vld [vmem:[%s226 + $0xaa0] sm:$0xff]
        %v639 = vld [vmem:[%s226 + $0xaa8] sm:$0xff]
        %v640 = vld [vmem:[%s226 + $0xab0] sm:$0xff]
        %v641 = vld [vmem:[%s226 + $0xab8] sm:$0xff]
        %v642 = vld [vmem:[%s226 + $0xac0] sm:$0xff]
        %v643 = vld [vmem:[%s226 + $0xac8] sm:$0xff]
        %v644 = vld [vmem:[%s226 + $0xad0] sm:$0xff]
        %v645 = vld [vmem:[%s226 + $0xad8] sm:$0xff]
        %v646 = vld [vmem:[%s226 + $0xae0] sm:$0xff]
        %v647 = vld [vmem:[%s226 + $0xae8] sm:$0xff]
        %v648 = vld [vmem:[%s226 + $0xaf0] sm:$0xff]
        %v649 = vld [vmem:[%s226 + $0xaf8] sm:$0xff]
        %v650 = vld [vmem:[%s226 + $0xb00] sm:$0xff]
        %v651 = vld [vmem:[%s226 + $0xb08] sm:$0xff]
        %v652 = vld [vmem:[%s226 + $0xb10] sm:$0xff]
        %v653 = vld [vmem:[%s226 + $0xb18] sm:$0xff]
        %v654 = vld [vmem:[%s226 + $0xb20] sm:$0xff]
        %v655 = vld [vmem:[%s226 + $0xb28] sm:$0xff]
        %v656 = vld [vmem:[%s226 + $0xb30] sm:$0xff]
        %v657 = vld [vmem:[%s226 + $0xb38] sm:$0xff]
        %v658 = vld [vmem:[%s226 + $0xb40] sm:$0xff]
        %v659 = vld [vmem:[%s226 + $0xb48] sm:$0xff]
        %v660 = vld [vmem:[%s226 + $0xb50] sm:$0xff]
        %v661 = vld [vmem:[%s226 + $0xb58] sm:$0xff]
        %v662 = vld [vmem:[%s226 + $0xb60] sm:$0xff]
        %v663 = vld [vmem:[%s226 + $0xb68] sm:$0xff]
        %v664 = vld [vmem:[%s226 + $0xb70] sm:$0xff]
        %v665 = vld [vmem:[%s226 + $0xb78] sm:$0xff]
        %v666 = vld [vmem:[%s226 + $0xb80] sm:$0xff]
        %v667 = vld [vmem:[%s226 + $0xb88] sm:$0xff]
        %v668 = vld [vmem:[%s226 + $0xb90] sm:$0xff]
        %v669 = vld [vmem:[%s226 + $0xb98] sm:$0xff]
        %v670 = vld [vmem:[%s226 + $0xba0] sm:$0xff]
        %v671 = vld [vmem:[%s226 + $0xba8] sm:$0xff]
        %v672 = vld [vmem:[%s226 + $0xbb0] sm:$0xff]
        %v673 = vld [vmem:[%s226 + $0xbb8] sm:$0xff]
        %v674 = vld [vmem:[%s226 + $0xbc0] sm:$0xff]
        %v675 = vld [vmem:[%s226 + $0xbc8] sm:$0xff]
        %v676 = vld [vmem:[%s226 + $0xbd0] sm:$0xff]
        %v677 = vld [vmem:[%s226 + $0xbd8] sm:$0xff]
        %v678 = vld [vmem:[%s226 + $0xbe0] sm:$0xff]
        %v679 = vld [vmem:[%s226 + $0xbe8] sm:$0xff]
        %v680 = vld [vmem:[%s226 + $0xbf0] sm:$0xff]
        %v681 = vld [vmem:[%s226 + $0xbf8] sm:$0xff]
        %v682 = vld [vmem:[%s226 + $0xc00] sm:$0xff]
        %v683 = vld [vmem:[%s226 + $0xc08] sm:$0xff]
        %v684 = vld [vmem:[%s226 + $0xc10] sm:$0xff]
        %v685 = vld [vmem:[%s226 + $0xc18] sm:$0xff]
        %v686 = vld [vmem:[%s226 + $0xc20] sm:$0xff]
        %v687 = vld [vmem:[%s226 + $0xc28] sm:$0xff]
        %v688 = vld [vmem:[%s226 + $0xc30] sm:$0xff]
        %v689 = vld [vmem:[%s226 + $0xc38] sm:$0xff]
        %v690 = vld [vmem:[%s226 + $0xc40] sm:$0xff]
        %v691 = vld [vmem:[%s226 + $0xc48] sm:$0xff]
        %v692 = vld [vmem:[%s226 + $0xc50] sm:$0xff]
        %v693 = vld [vmem:[%s226 + $0xc58] sm:$0xff]
        %v694 = vld [vmem:[%s226 + $0xc60] sm:$0xff]
        %v695 = vld [vmem:[%s226 + $0xc68] sm:$0xff]
        %v696 = vld [vmem:[%s226 + $0xc70] sm:$0xff]
        %v697 = vld [vmem:[%s226 + $0xc78] sm:$0xff]
        %v698 = vld [vmem:[%s226 + $0xc80] sm:$0xff]
        %v699 = vld [vmem:[%s226 + $0xc88] sm:$0xff]
        %v700 = vld [vmem:[%s226 + $0xc90] sm:$0xff]
        %v701 = vld [vmem:[%s226 + $0xc98] sm:$0xff]
        %v702 = vld [vmem:[%s226 + $0xca0] sm:$0xff]
        %v703 = vld [vmem:[%s226 + $0xca8] sm:$0xff]
        %v704 = vld [vmem:[%s226 + $0xcb0] sm:$0xff]
        %v705 = vld [vmem:[%s226 + $0xcb8] sm:$0xff]
        %v706 = vld [vmem:[%s226 + $0xcc0] sm:$0xff]
        %v707 = vld [vmem:[%s226 + $0xcc8] sm:$0xff]
        %v708 = vld [vmem:[%s226 + $0xcd0] sm:$0xff]
        %v709 = vld [vmem:[%s226 + $0xcd8] sm:$0xff]
        %v710 = vld [vmem:[%s226 + $0xce0] sm:$0xff]
        %v711 = vld [vmem:[%s226 + $0xce8] sm:$0xff]
        %v712 = vld [vmem:[%s226 + $0xcf0] sm:$0xff]
        %v713 = vld [vmem:[%s226 + $0xcf8] sm:$0xff]
        %v714 = vld [vmem:[%s226 + $0xd00] sm:$0xff]
        %v715 = vld [vmem:[%s226 + $0xd08] sm:$0xff]
        %v716 = vld [vmem:[%s226 + $0xd10] sm:$0xff]
        %v717 = vld [vmem:[%s226 + $0xd18] sm:$0xff]
        %v718 = vld [vmem:[%s226 + $0xd20] sm:$0xff]
        %v719 = vld [vmem:[%s226 + $0xd28] sm:$0xff]
        %v720 = vld [vmem:[%s226 + $0xd30] sm:$0xff]
        %v721 = vld [vmem:[%s226 + $0xd38] sm:$0xff]
        %v722 = vld [vmem:[%s226 + $0xd40] sm:$0xff]
        %v723 = vld [vmem:[%s226 + $0xd48] sm:$0xff]
        %v724 = vld [vmem:[%s226 + $0xd50] sm:$0xff]
        %v725 = vld [vmem:[%s226 + $0xd58] sm:$0xff]
        %v726 = vld [vmem:[%s226 + $0xd60] sm:$0xff]
        %v727 = vld [vmem:[%s226 + $0xd68] sm:$0xff]
        %v728 = vld [vmem:[%s226 + $0xd70] sm:$0xff]
        %v729 = vld [vmem:[%s226 + $0xd78] sm:$0xff]
        %v730 = vld [vmem:[%s226 + $0xd80] sm:$0xff]
        %v731 = vld [vmem:[%s226 + $0xd88] sm:$0xff]
        %v732 = vld [vmem:[%s226 + $0xd90] sm:$0xff]
        %v733 = vld [vmem:[%s226 + $0xd98] sm:$0xff]
        %v734 = vld [vmem:[%s226 + $0xda0] sm:$0xff]
        %v735 = vld [vmem:[%s226 + $0xda8] sm:$0xff]
        %v736 = vld [vmem:[%s226 + $0xdb0] sm:$0xff]
        %v737 = vld [vmem:[%s226 + $0xdb8] sm:$0xff]
        %v738 = vld [vmem:[%s226 + $0xdc0] sm:$0xff]
        %v739 = vld [vmem:[%s226 + $0xdc8] sm:$0xff]
        %v740 = vld [vmem:[%s226 + $0xdd0] sm:$0xff]
        %v741 = vld [vmem:[%s226 + $0xdd8] sm:$0xff]
        %v742 = vld [vmem:[%s226 + $0xde0] sm:$0xff]
        %v743 = vld [vmem:[%s226 + $0xde8] sm:$0xff]
        %v744 = vld [vmem:[%s226 + $0xdf0] sm:$0xff]
        %v745 = vld [vmem:[%s226 + $0xdf8] sm:$0xff]
        %v746 = vld [vmem:[%s226 + $0xe00] sm:$0xff]
        %v747 = vld [vmem:[%s226 + $0xe08] sm:$0xff]
        %v748 = vld [vmem:[%s226 + $0xe10] sm:$0xff]
        %v749 = vld [vmem:[%s226 + $0xe18] sm:$0xff]
        %v750 = vld [vmem:[%s226 + $0xe20] sm:$0xff]
        %v751 = vld [vmem:[%s226 + $0xe28] sm:$0xff]
        %v752 = vld [vmem:[%s226 + $0xe30] sm:$0xff]
        %v753 = vld [vmem:[%s226 + $0xe38] sm:$0xff]
        %v754 = vld [vmem:[%s226 + $0xe40] sm:$0xff]
        %v755 = vld [vmem:[%s226 + $0xe48] sm:$0xff]
        %v756 = vld [vmem:[%s226 + $0xe50] sm:$0xff]
        %v757 = vld [vmem:[%s226 + $0xe58] sm:$0xff]
        %v758 = vld [vmem:[%s226 + $0xe60] sm:$0xff]
        %v759 = vld [vmem:[%s226 + $0xe68] sm:$0xff]
        %v760 = vld [vmem:[%s226 + $0xe70] sm:$0xff]
        %v761 = vld [vmem:[%s226 + $0xe78] sm:$0xff]
        %v762 = vld [vmem:[%s226 + $0xe80] sm:$0xff]
        %v763 = vld [vmem:[%s226 + $0xe88] sm:$0xff]
        %v764 = vld [vmem:[%s226 + $0xe90] sm:$0xff]
        %v765 = vld [vmem:[%s226 + $0xe98] sm:$0xff]
        %v766 = vld [vmem:[%s226 + $0xea0] sm:$0xff]
        %v767 = vld [vmem:[%s226 + $0xea8] sm:$0xff]
        %v768 = vld [vmem:[%s226 + $0xeb0] sm:$0xff]
        %v769 = vld [vmem:[%s226 + $0xeb8] sm:$0xff]
        %v770 = vld [vmem:[%s226 + $0xec0] sm:$0xff]
        %v771 = vld [vmem:[%s226 + $0xec8] sm:$0xff]
        %v772 = vld [vmem:[%s226 + $0xed0] sm:$0xff]
        %v773 = vld [vmem:[%s226 + $0xed8] sm:$0xff]
        %v774 = vld [vmem:[%s226 + $0xee0] sm:$0xff]
        %v775 = vld [vmem:[%s226 + $0xee8] sm:$0xff]
        %v776 = vld [vmem:[%s226 + $0xef0] sm:$0xff]
        %v777 = vld [vmem:[%s226 + $0xef8] sm:$0xff]
        %v778 = vld [vmem:[%s226 + $0xf00] sm:$0xff]
        %v779 = vld [vmem:[%s226 + $0xf08] sm:$0xff]
        %v780 = vld [vmem:[%s226 + $0xf10] sm:$0xff]
        %v781 = vld [vmem:[%s226 + $0xf18] sm:$0xff]
        %v782 = vld [vmem:[%s226 + $0xf20] sm:$0xff]
        %v783 = vld [vmem:[%s226 + $0xf28] sm:$0xff]
        %v784 = vld [vmem:[%s226 + $0xf30] sm:$0xff]
        %v785 = vld [vmem:[%s226 + $0xf38] sm:$0xff]
        %v786 = vld [vmem:[%s226 + $0xf40] sm:$0xff]
        %v787 = vld [vmem:[%s226 + $0xf48] sm:$0xff]
        %v788 = vld [vmem:[%s226 + $0xf50] sm:$0xff]
        %v789 = vld [vmem:[%s226 + $0xf58] sm:$0xff]
        %v790 = vld [vmem:[%s226 + $0xf60] sm:$0xff]
        %v791 = vld [vmem:[%s226 + $0xf68] sm:$0xff]
        %v792 = vld [vmem:[%s226 + $0xf70] sm:$0xff]
        %v793 = vld [vmem:[%s226 + $0xf78] sm:$0xff]
        %v794 = vld [vmem:[%s226 + $0xf80] sm:$0xff]
        %v795 = vld [vmem:[%s226 + $0xf88] sm:$0xff]
        %v796 = vld [vmem:[%s226 + $0xf90] sm:$0xff]
        %v797 = vld [vmem:[%s226 + $0xf98] sm:$0xff]
        %v798 = vld [vmem:[%s226 + $0xfa0] sm:$0xff]
        %v799 = vld [vmem:[%s226 + $0xfa8] sm:$0xff]
        %v800 = vld [vmem:[%s226 + $0xfb0] sm:$0xff]
        %v801 = vld [vmem:[%s226 + $0xfb8] sm:$0xff]
        %v802 = vld [vmem:[%s226 + $0xfc0] sm:$0xff]
        %v803 = vld [vmem:[%s226 + $0xfc8] sm:$0xff]
        %v804 = vld [vmem:[%s226 + $0xfd0] sm:$0xff]
        %v805 = vld [vmem:[%s226 + $0xfd8] sm:$0xff]
        %v806 = vld [vmem:[%s226 + $0xfe0] sm:$0xff]
        %v807 = vld [vmem:[%s226 + $0xfe8] sm:$0xff]
        %v808 = vld [vmem:[%s226 + $0xff0] sm:$0xff]
        %v809 = vld [vmem:[%s226 + $0xff8] sm:$0xff]
        %v810 = vld [vmem:[%s226 + $0x1000] sm:$0xff]
        %v811 = vld [vmem:[%s226 + $0x1008] sm:$0xff]
        %v812 = vld [vmem:[%s226 + $0x1010] sm:$0xff]
        %v813 = vld [vmem:[%s226 + $0x1018] sm:$0xff]
        %v814 = vld [vmem:[%s226 + $0x1020] sm:$0xff]
        %v815 = vld [vmem:[%s226 + $0x1028] sm:$0xff]
        %v816 = vld [vmem:[%s226 + $0x1030] sm:$0xff]
        %v817 = vld [vmem:[%s226 + $0x1038] sm:$0xff]
        %v818 = vld [vmem:[%s226 + $0x1040] sm:$0xff]
        %v819 = vld [vmem:[%s226 + $0x1048] sm:$0xff]
        %v820 = vld [vmem:[%s226 + $0x1050] sm:$0xff]
        %v821 = vld [vmem:[%s226 + $0x1058] sm:$0xff]
        %v822 = vld [vmem:[%s226 + $0x1060] sm:$0xff]
        %v823 = vld [vmem:[%s226 + $0x1068] sm:$0xff]
        %v824 = vld [vmem:[%s226 + $0x1070] sm:$0xff]
        %v825 = vld [vmem:[%s226 + $0x1078] sm:$0xff]
        %v826 = vld [vmem:[%s226 + $0x1080] sm:$0xff]
        %v827 = vld [vmem:[%s226 + $0x1088] sm:$0xff]
        %v828 = vld [vmem:[%s226 + $0x1090] sm:$0xff]
        %v829 = vld [vmem:[%s226 + $0x1098] sm:$0xff]
        %v830 = vld [vmem:[%s226 + $0x10a0] sm:$0xff]
        %v831 = vld [vmem:[%s226 + $0x10a8] sm:$0xff]
        %v832 = vld [vmem:[%s226 + $0x10b0] sm:$0xff]
        %v833 = vld [vmem:[%s226 + $0x10b8] sm:$0xff]
        %v834 = vld [vmem:[%s226 + $0x10c0] sm:$0xff]
        %v835 = vld [vmem:[%s226 + $0x10c8] sm:$0xff]
        %v836 = vld [vmem:[%s226 + $0x10d0] sm:$0xff]
        %v837 = vld [vmem:[%s226 + $0x10d8] sm:$0xff]
        %v838 = vld [vmem:[%s226 + $0x10e0] sm:$0xff]
        %v839 = vld [vmem:[%s226 + $0x10e8] sm:$0xff]
        %v840 = vld [vmem:[%s226 + $0x10f0] sm:$0xff]
        %v841 = vld [vmem:[%s226 + $0x10f8] sm:$0xff]
        %v842 = vld [vmem:[%s226 + $0x1100] sm:$0xff]
        %v843 = vld [vmem:[%s226 + $0x1108] sm:$0xff]
        %v844 = vld [vmem:[%s226 + $0x1110] sm:$0xff]
        %v845 = vld [vmem:[%s226 + $0x1118] sm:$0xff]
        %v846 = vld [vmem:[%s226 + $0x1120] sm:$0xff]
        %v847 = vld [vmem:[%s226 + $0x1128] sm:$0xff]
        %v848 = vld [vmem:[%s226 + $0x1130] sm:$0xff]
        %v849 = vld [vmem:[%s226 + $0x1138] sm:$0xff]
        %v850 = vld [vmem:[%s226 + $0x1140] sm:$0xff]
        %v851 = vld [vmem:[%s226 + $0x1148] sm:$0xff]
        %v852 = vld [vmem:[%s226 + $0x1150] sm:$0xff]
        %v853 = vld [vmem:[%s226 + $0x1158] sm:$0xff]
        %v854 = vld [vmem:[%s226 + $0x1160] sm:$0xff]
        %v855 = vld [vmem:[%s226 + $0x1168] sm:$0xff]
        %v856 = vld [vmem:[%s226 + $0x1170] sm:$0xff]
        %v857 = vld [vmem:[%s226 + $0x1178] sm:$0xff]
        %v858 = vld [vmem:[%s226 + $0x1180] sm:$0xff]
        %v859 = vld [vmem:[%s226 + $0x1188] sm:$0xff]
        %v860 = vld [vmem:[%s226 + $0x1190] sm:$0xff]
        %v861 = vld [vmem:[%s226 + $0x1198] sm:$0xff]
        %v862 = vld [vmem:[%s226 + $0x11a0] sm:$0xff]
        %v863 = vld [vmem:[%s226 + $0x11a8] sm:$0xff]
        %v864 = vld [vmem:[%s226 + $0x11b0] sm:$0xff]
        %v865 = vld [vmem:[%s226 + $0x11b8] sm:$0xff]
        %v866 = vld [vmem:[%s226 + $0x11c0] sm:$0xff]
        %v867 = vld [vmem:[%s226 + $0x11c8] sm:$0xff]
        %v868 = vld [vmem:[%s226 + $0x11d0] sm:$0xff]
        %v869 = vld [vmem:[%s226 + $0x11d8] sm:$0xff]
        %v870 = vld [vmem:[%s226 + $0x11e0] sm:$0xff]
        %v871 = vld [vmem:[%s226 + $0x11e8] sm:$0xff]
        %v872 = vld [vmem:[%s226 + $0x11f0] sm:$0xff]
        %v873 = vld [vmem:[%s226 + $0x11f8] sm:$0xff]
        %v874 = vld [vmem:[%s226 + $0x1200] sm:$0xff]
        %v875 = vld [vmem:[%s226 + $0x1208] sm:$0xff]
        %v876 = vld [vmem:[%s226 + $0x1210] sm:$0xff]
        %v877 = vld [vmem:[%s226 + $0x1218] sm:$0xff]
        %v878 = vld [vmem:[%s226 + $0x1220] sm:$0xff]
        %v879 = vld [vmem:[%s226 + $0x1228] sm:$0xff]
        %v880 = vld [vmem:[%s226 + $0x1230] sm:$0xff]
        %v881 = vld [vmem:[%s226 + $0x1238] sm:$0xff]
        %v882 = vld [vmem:[%s226 + $0x1240] sm:$0xff]
        %v883 = vld [vmem:[%s226 + $0x1248] sm:$0xff]
        %v884 = vld [vmem:[%s226 + $0x1250] sm:$0xff]
        %v885 = vld [vmem:[%s226 + $0x1258] sm:$0xff]
        %v886 = vld [vmem:[%s226 + $0x1260] sm:$0xff]
        %v887 = vld [vmem:[%s226 + $0x1268] sm:$0xff]
        %v888 = vld [vmem:[%s226 + $0x1270] sm:$0xff]
        %v889 = vld [vmem:[%s226 + $0x1278] sm:$0xff]
        %v890 = vld [vmem:[%s226 + $0x1280] sm:$0xff]
        %v891 = vld [vmem:[%s226 + $0x1288] sm:$0xff]
        %v892 = vld [vmem:[%s226 + $0x1290] sm:$0xff]
        %v893 = vld [vmem:[%s226 + $0x1298] sm:$0xff]
        %v894 = vld [vmem:[%s226 + $0x12a0] sm:$0xff]
        %v895 = vld [vmem:[%s226 + $0x12a8] sm:$0xff]
        %v896 = vld [vmem:[%s226 + $0x12b0] sm:$0xff]
        %v897 = vld [vmem:[%s226 + $0x12b8] sm:$0xff]
        %v898 = vld [vmem:[%s226 + $0x12c0] sm:$0xff]
        %v899 = vld [vmem:[%s226 + $0x12c8] sm:$0xff]
        %v900 = vld [vmem:[%s226 + $0x12d0] sm:$0xff]
        %v901 = vld [vmem:[%s226 + $0x12d8] sm:$0xff]
        %v902 = vld [vmem:[%s226 + $0x12e0] sm:$0xff]
        %v903 = vld [vmem:[%s226 + $0x12e8] sm:$0xff]
        %v904 = vld [vmem:[%s226 + $0x12f0] sm:$0xff]
        %v905 = vld [vmem:[%s226 + $0x12f8] sm:$0xff]
        %v906 = vld [vmem:[%s226 + $0x1300] sm:$0xff]
        %v907 = vld [vmem:[%s226 + $0x1308] sm:$0xff]
        %v908 = vld [vmem:[%s226 + $0x1310] sm:$0xff]
        %v909 = vld [vmem:[%s226 + $0x1318] sm:$0xff]
        %v910 = vld [vmem:[%s226 + $0x1320] sm:$0xff]
        %v911 = vld [vmem:[%s226 + $0x1328] sm:$0xff]
        %v912 = vld [vmem:[%s226 + $0x1330] sm:$0xff]
        %v913 = vld [vmem:[%s226 + $0x1338] sm:$0xff]
        %v914 = vld [vmem:[%s226 + $0x1340] sm:$0xff]
        %v915 = vld [vmem:[%s226 + $0x1348] sm:$0xff]
        %v916 = vld [vmem:[%s226 + $0x1350] sm:$0xff]
        %v917 = vld [vmem:[%s226 + $0x1358] sm:$0xff]
        %v918 = vld [vmem:[%s226 + $0x1360] sm:$0xff]
        %v919 = vld [vmem:[%s226 + $0x1368] sm:$0xff]
        %v920 = vld [vmem:[%s226 + $0x1370] sm:$0xff]
        %v921 = vld [vmem:[%s226 + $0x1378] sm:$0xff]
        %v922 = vld [vmem:[%s226 + $0x1380] sm:$0xff]
        %v923 = vld [vmem:[%s226 + $0x1388] sm:$0xff]
        %v924 = vld [vmem:[%s226 + $0x1390] sm:$0xff]
        %v925 = vld [vmem:[%s226 + $0x1398] sm:$0xff]
        %v926 = vld [vmem:[%s226 + $0x13a0] sm:$0xff]
        %v927 = vld [vmem:[%s226 + $0x13a8] sm:$0xff]
        %v928 = vld [vmem:[%s226 + $0x13b0] sm:$0xff]
        %v929 = vld [vmem:[%s226 + $0x13b8] sm:$0xff]
        %v930 = vld [vmem:[%s226 + $0x13c0] sm:$0xff]
        %v931 = vld [vmem:[%s226 + $0x13c8] sm:$0xff]
        %v932 = vld [vmem:[%s226 + $0x13d0] sm:$0xff]
        %v933 = vld [vmem:[%s226 + $0x13d8] sm:$0xff]
        %v934 = vld [vmem:[%s226 + $0x13e0] sm:$0xff]
        %v935 = vld [vmem:[%s226 + $0x13e8] sm:$0xff]
        %v936 = vld [vmem:[%s226 + $0x13f0] sm:$0xff]
        %v937 = vld [vmem:[%s226 + $0x13f8] sm:$0xff]
        %v938 = vld [vmem:[%s226 + $0x1400] sm:$0xff]
        %v939 = vld [vmem:[%s226 + $0x1408] sm:$0xff]
        %v940 = vld [vmem:[%s226 + $0x1410] sm:$0xff]
        %v941 = vld [vmem:[%s226 + $0x1418] sm:$0xff]
        %v942 = vld [vmem:[%s226 + $0x1420] sm:$0xff]
        %v943 = vld [vmem:[%s226 + $0x1428] sm:$0xff]
        %v944 = vld [vmem:[%s226 + $0x1430] sm:$0xff]
        %v945 = vld [vmem:[%s226 + $0x1438] sm:$0xff]
        %v946 = vld [vmem:[%s226 + $0x1440] sm:$0xff]
        %v947 = vld [vmem:[%s226 + $0x1448] sm:$0xff]
        %v948 = vld [vmem:[%s226 + $0x1450] sm:$0xff]
        %v949 = vld [vmem:[%s226 + $0x1458] sm:$0xff]
        %v950 = vld [vmem:[%s226 + $0x1460] sm:$0xff]
        %v951 = vld [vmem:[%s226 + $0x1468] sm:$0xff]
        %v952 = vld [vmem:[%s226 + $0x1470] sm:$0xff]
        %v953 = vld [vmem:[%s226 + $0x1478] sm:$0xff]
        %v954 = vld [vmem:[%s226 + $0x1480] sm:$0xff]
        %v955 = vld [vmem:[%s226 + $0x1488] sm:$0xff]
        %v956 = vld [vmem:[%s226 + $0x1490] sm:$0xff]
        %v957 = vld [vmem:[%s226 + $0x1498] sm:$0xff]
        %v958 = vld [vmem:[%s226 + $0x14a0] sm:$0xff]
        %v959 = vld [vmem:[%s226 + $0x14a8] sm:$0xff]
        %v960 = vld [vmem:[%s226 + $0x14b0] sm:$0xff]
        %v961 = vld [vmem:[%s226 + $0x14b8] sm:$0xff]
        %v962 = vld [vmem:[%s226 + $0x14c0] sm:$0xff]
        %v963 = vld [vmem:[%s226 + $0x14c8] sm:$0xff]
        %v964 = vld [vmem:[%s226 + $0x14d0] sm:$0xff]
        %v965 = vld [vmem:[%s226 + $0x14d8] sm:$0xff]
        %v966 = vld [vmem:[%s226 + $0x14e0] sm:$0xff]
        %v967 = vld [vmem:[%s226 + $0x14e8] sm:$0xff]
        %v968 = vld [vmem:[%s226 + $0x14f0] sm:$0xff]
        %v969 = vld [vmem:[%s226 + $0x14f8] sm:$0xff]
        %v970 = vld [vmem:[%s226 + $0x1500] sm:$0xff]
        %v971 = vld [vmem:[%s226 + $0x1508] sm:$0xff]
        %v972 = vld [vmem:[%s226 + $0x1510] sm:$0xff]
        %v973 = vld [vmem:[%s226 + $0x1518] sm:$0xff]
        %v974 = vld [vmem:[%s226 + $0x1520] sm:$0xff]
        %v975 = vld [vmem:[%s226 + $0x1528] sm:$0xff]
        %v976 = vld [vmem:[%s226 + $0x1530] sm:$0xff]
        %v977 = vld [vmem:[%s226 + $0x1538] sm:$0xff]
        %v978 = vld [vmem:[%s226 + $0x1540] sm:$0xff]
        %v979 = vld [vmem:[%s226 + $0x1548] sm:$0xff]
        %v980 = vld [vmem:[%s226 + $0x1550] sm:$0xff]
        %v981 = vld [vmem:[%s226 + $0x1558] sm:$0xff]
        %v982 = vld [vmem:[%s226 + $0x1560] sm:$0xff]
        %v983 = vld [vmem:[%s226 + $0x1568] sm:$0xff]
        %v984 = vld [vmem:[%s226 + $0x1570] sm:$0xff]
        %v985 = vld [vmem:[%s226 + $0x1578] sm:$0xff]
        %v986 = vld [vmem:[%s226 + $0x1580] sm:$0xff]
        %v987 = vld [vmem:[%s226 + $0x1588] sm:$0xff]
        %v988 = vld [vmem:[%s226 + $0x1590] sm:$0xff]
        %v989 = vld [vmem:[%s226 + $0x1598] sm:$0xff]
        %v990 = vld [vmem:[%s226 + $0x15a0] sm:$0xff]
        %v991 = vld [vmem:[%s226 + $0x15a8] sm:$0xff]
        %v992 = vld [vmem:[%s226 + $0x15b0] sm:$0xff]
        %v993 = vld [vmem:[%s226 + $0x15b8] sm:$0xff]
        %v994 = vld [vmem:[%s226 + $0x15c0] sm:$0xff]
        %v995 = vld [vmem:[%s226 + $0x15c8] sm:$0xff]
        %v996 = vld [vmem:[%s226 + $0x15d0] sm:$0xff]
        %v997 = vld [vmem:[%s226 + $0x15d8] sm:$0xff]
        %v998 = vld [vmem:[%s226 + $0x15e0] sm:$0xff]
        %v999 = vld [vmem:[%s226 + $0x15e8] sm:$0xff]
        %v1000 = vld [vmem:[%s226 + $0x15f0] sm:$0xff]
        %v1001 = vld [vmem:[%s226 + $0x15f8] sm:$0xff]
        %v1002 = vld [vmem:[%s226 + $0x1600] sm:$0xff]
        %v1003 = vld [vmem:[%s226 + $0x1608] sm:$0xff]
        %v1004 = vld [vmem:[%s226 + $0x1610] sm:$0xff]
        %v1005 = vld [vmem:[%s226 + $0x1618] sm:$0xff]
        %v1006 = vld [vmem:[%s226 + $0x1620] sm:$0xff]
        %v1007 = vld [vmem:[%s226 + $0x1628] sm:$0xff]
        %v1008 = vld [vmem:[%s226 + $0x1630] sm:$0xff]
        %v1009 = vld [vmem:[%s226 + $0x1638] sm:$0xff]
        %v1010 = vld [vmem:[%s226 + $0x1640] sm:$0xff]
        %v1011 = vld [vmem:[%s226 + $0x1648] sm:$0xff]
        %v1012 = vld [vmem:[%s226 + $0x1650] sm:$0xff]
        %v1013 = vld [vmem:[%s226 + $0x1658] sm:$0xff]
        %v1014 = vld [vmem:[%s226 + $0x1660] sm:$0xff]
        %v1015 = vld [vmem:[%s226 + $0x1668] sm:$0xff]
        %v1016 = vld [vmem:[%s226 + $0x1670] sm:$0xff]
        %v1017 = vld [vmem:[%s226 + $0x1678] sm:$0xff]
        %v1018 = vld [vmem:[%s226 + $0x1680] sm:$0xff]
        %v1019 = vld [vmem:[%s226 + $0x1688] sm:$0xff]
        %v1020 = vld [vmem:[%s226 + $0x1690] sm:$0xff]
        %v1021 = vld [vmem:[%s226 + $0x1698] sm:$0xff]
        %v1022 = vld [vmem:[%s226 + $0x16a0] sm:$0xff]
        %v1023 = vld [vmem:[%s226 + $0x16a8] sm:$0xff]
        %v1024 = vld [vmem:[%s226 + $0x16b0] sm:$0xff]
        %v1025 = vld [vmem:[%s226 + $0x16b8] sm:$0xff]
        %v1026 = vld [vmem:[%s226 + $0x16c0] sm:$0xff]
        %v1027 = vld [vmem:[%s226 + $0x16c8] sm:$0xff]
        %v1028 = vld [vmem:[%s226 + $0x16d0] sm:$0xff]
        %v1029 = vld [vmem:[%s226 + $0x16d8] sm:$0xff]
        %v1030 = vld [vmem:[%s226 + $0x16e0] sm:$0xff]
        %v1031 = vld [vmem:[%s226 + $0x16e8] sm:$0xff]
        %v1032 = vld [vmem:[%s226 + $0x16f0] sm:$0xff]
        %v1033 = vld [vmem:[%s226 + $0x16f8] sm:$0xff]
        %v1034 = vld [vmem:[%s226 + $0x1700] sm:$0xff]
        %v1035 = vld [vmem:[%s226 + $0x1708] sm:$0xff]
        %v1036 = vld [vmem:[%s226 + $0x1710] sm:$0xff]
        %v1037 = vld [vmem:[%s226 + $0x1718] sm:$0xff]
        %v1038 = vld [vmem:[%s226 + $0x1720] sm:$0xff]
        %v1039 = vld [vmem:[%s226 + $0x1728] sm:$0xff]
        %v1040 = vld [vmem:[%s226 + $0x1730] sm:$0xff]
        %v1041 = vld [vmem:[%s226 + $0x1738] sm:$0xff]
        %v1042 = vld [vmem:[%s226 + $0x1740] sm:$0xff]
        %v1043 = vld [vmem:[%s226 + $0x1748] sm:$0xff]
        %v1044 = vld [vmem:[%s226 + $0x1750] sm:$0xff]
        %v1045 = vld [vmem:[%s226 + $0x1758] sm:$0xff]
        %v1046 = vld [vmem:[%s226 + $0x1760] sm:$0xff]
        %v1047 = vld [vmem:[%s226 + $0x1768] sm:$0xff]
        %v1048 = vld [vmem:[%s226 + $0x1770] sm:$0xff]
        %v1049 = vld [vmem:[%s226 + $0x1778] sm:$0xff]
        %v1050 = vld [vmem:[%s226 + $0x1780] sm:$0xff]
        %v1051 = vld [vmem:[%s226 + $0x1788] sm:$0xff]
        %v1052 = vld [vmem:[%s226 + $0x1790] sm:$0xff]
        %v1053 = vld [vmem:[%s226 + $0x1798] sm:$0xff]
        %v1054 = vld [vmem:[%s226 + $0x17a0] sm:$0xff]
        %v1055 = vld [vmem:[%s226 + $0x17a8] sm:$0xff]
        %v1056 = vld [vmem:[%s226 + $0x17b0] sm:$0xff]
        %v1057 = vld [vmem:[%s226 + $0x17b8] sm:$0xff]
        %v1058 = vld [vmem:[%s226 + $0x17c0] sm:$0xff]
        %v1059 = vld [vmem:[%s226 + $0x17c8] sm:$0xff]
        %v1060 = vld [vmem:[%s226 + $0x17d0] sm:$0xff]
        %v1061 = vld [vmem:[%s226 + $0x17d8] sm:$0xff]
        %v1062 = vld [vmem:[%s226 + $0x17e0] sm:$0xff]
        %v1063 = vld [vmem:[%s226 + $0x17e8] sm:$0xff]
        %v1064 = vld [vmem:[%s226 + $0x17f0] sm:$0xff]
        %v1065 = vld [vmem:[%s226 + $0x17f8] sm:$0xff]
        %v1066 = vld [vmem:[%s226 + $0x1800] sm:$0xff]
        %v1067 = vld [vmem:[%s226 + $0x1808] sm:$0xff]
        %v1068 = vld [vmem:[%s226 + $0x1810] sm:$0xff]
        %v1069 = vld [vmem:[%s226 + $0x1818] sm:$0xff]
        %v1070 = vld [vmem:[%s226 + $0x1820] sm:$0xff]
        %v1071 = vld [vmem:[%s226 + $0x1828] sm:$0xff]
        %v1072 = vld [vmem:[%s226 + $0x1830] sm:$0xff]
        %v1073 = vld [vmem:[%s226 + $0x1838] sm:$0xff]
        %v1074 = vld [vmem:[%s226 + $0x1840] sm:$0xff]
        %v1075 = vld [vmem:[%s226 + $0x1848] sm:$0xff]
        %v1076 = vld [vmem:[%s226 + $0x1850] sm:$0xff]
        %v1077 = vld [vmem:[%s226 + $0x1858] sm:$0xff]
        %v1078 = vld [vmem:[%s226 + $0x1860] sm:$0xff]
        %v1079 = vld [vmem:[%s226 + $0x1868] sm:$0xff]
        %v1080 = vld [vmem:[%s226 + $0x1870] sm:$0xff]
        %v1081 = vld [vmem:[%s226 + $0x1878] sm:$0xff]
        %v1082 = vld [vmem:[%s226 + $0x1880] sm:$0xff]
        %v1083 = vld [vmem:[%s226 + $0x1888] sm:$0xff]
        %v1084 = vld [vmem:[%s226 + $0x1890] sm:$0xff]
        %v1085 = vld [vmem:[%s226 + $0x1898] sm:$0xff]
        %v1086 = vld [vmem:[%s226 + $0x18a0] sm:$0xff]
        %v1087 = vld [vmem:[%s226 + $0x18a8] sm:$0xff]
        %v1088 = vld [vmem:[%s226 + $0x18b0] sm:$0xff]
        %v1089 = vld [vmem:[%s226 + $0x18b8] sm:$0xff]
        %v1090 = vld [vmem:[%s226 + $0x18c0] sm:$0xff]
        %v1091 = vld [vmem:[%s226 + $0x18c8] sm:$0xff]
        %v1092 = vld [vmem:[%s226 + $0x18d0] sm:$0xff]
        %v1093 = vld [vmem:[%s226 + $0x18d8] sm:$0xff]
        %v1094 = vld [vmem:[%s226 + $0x18e0] sm:$0xff]
        %v1095 = vld [vmem:[%s226 + $0x18e8] sm:$0xff]
        %v1096 = vld [vmem:[%s226 + $0x18f0] sm:$0xff]
        %v1097 = vld [vmem:[%s226 + $0x18f8] sm:$0xff]
        %v1098 = vld [vmem:[%s226 + $0x1900] sm:$0xff]
        %v1099 = vld [vmem:[%s226 + $0x1908] sm:$0xff]
        %v1100 = vld [vmem:[%s226 + $0x1910] sm:$0xff]
        %v1101 = vld [vmem:[%s226 + $0x1918] sm:$0xff]
        %v1102 = vld [vmem:[%s226 + $0x1920] sm:$0xff]
        %v1103 = vld [vmem:[%s226 + $0x1928] sm:$0xff]
        %v1104 = vld [vmem:[%s226 + $0x1930] sm:$0xff]
        %v1105 = vld [vmem:[%s226 + $0x1938] sm:$0xff]
        %v1106 = vld [vmem:[%s226 + $0x1940] sm:$0xff]
        %v1107 = vld [vmem:[%s226 + $0x1948] sm:$0xff]
        %v1108 = vld [vmem:[%s226 + $0x1950] sm:$0xff]
        %v1109 = vld [vmem:[%s226 + $0x1958] sm:$0xff]
        %v1110 = vld [vmem:[%s226 + $0x1960] sm:$0xff]
        %v1111 = vld [vmem:[%s226 + $0x1968] sm:$0xff]
        %v1112 = vld [vmem:[%s226 + $0x1970] sm:$0xff]
        %v1113 = vld [vmem:[%s226 + $0x1978] sm:$0xff]
        %v1114 = vld [vmem:[%s226 + $0x1980] sm:$0xff]
        %v1115 = vld [vmem:[%s226 + $0x1988] sm:$0xff]
        %v1116 = vld [vmem:[%s226 + $0x1990] sm:$0xff]
        %v1117 = vld [vmem:[%s226 + $0x1998] sm:$0xff]
        %v1118 = vld [vmem:[%s226 + $0x19a0] sm:$0xff]
        %v1119 = vld [vmem:[%s226 + $0x19a8] sm:$0xff]
        %v1120 = vld [vmem:[%s226 + $0x19b0] sm:$0xff]
        %v1121 = vld [vmem:[%s226 + $0x19b8] sm:$0xff]
        %v1122 = vld [vmem:[%s226 + $0x19c0] sm:$0xff]
        %v1123 = vld [vmem:[%s226 + $0x19c8] sm:$0xff]
        %v1124 = vld [vmem:[%s226 + $0x19d0] sm:$0xff]
        %v1125 = vld [vmem:[%s226 + $0x19d8] sm:$0xff]
        %v1126 = vld [vmem:[%s226 + $0x19e0] sm:$0xff]
        %v1127 = vld [vmem:[%s226 + $0x19e8] sm:$0xff]
        %v1128 = vld [vmem:[%s226 + $0x19f0] sm:$0xff]
        %v1129 = vld [vmem:[%s226 + $0x19f8] sm:$0xff]
        %v1130 = vld [vmem:[%s226 + $0x1a00] sm:$0xff]
        %v1131 = vld [vmem:[%s226 + $0x1a08] sm:$0xff]
        %v1132 = vld [vmem:[%s226 + $0x1a10] sm:$0xff]
        %v1133 = vld [vmem:[%s226 + $0x1a18] sm:$0xff]
        %v1134 = vld [vmem:[%s226 + $0x1a20] sm:$0xff]
        %v1135 = vld [vmem:[%s226 + $0x1a28] sm:$0xff]
        %v1136 = vld [vmem:[%s226 + $0x1a30] sm:$0xff]
        %v1137 = vld [vmem:[%s226 + $0x1a38] sm:$0xff]
        %v1138 = vld [vmem:[%s226 + $0x1a40] sm:$0xff]
        %v1139 = vld [vmem:[%s226 + $0x1a48] sm:$0xff]
        %v1140 = vld [vmem:[%s226 + $0x1a50] sm:$0xff]
        %v1141 = vld [vmem:[%s226 + $0x1a58] sm:$0xff]
        %v1142 = vld [vmem:[%s226 + $0x1a60] sm:$0xff]
        %v1143 = vld [vmem:[%s226 + $0x1a68] sm:$0xff]
        %v1144 = vld [vmem:[%s226 + $0x1a70] sm:$0xff]
        %v1145 = vld [vmem:[%s226 + $0x1a78] sm:$0xff]
        %v1146 = vld [vmem:[%s226 + $0x1a80] sm:$0xff]
        %v1147 = vld [vmem:[%s226 + $0x1a88] sm:$0xff]
        %v1148 = vld [vmem:[%s226 + $0x1a90] sm:$0xff]
        %v1149 = vld [vmem:[%s226 + $0x1a98] sm:$0xff]
        %v1150 = vld [vmem:[%s226 + $0x1aa0] sm:$0xff]
        %v1151 = vld [vmem:[%s226 + $0x1aa8] sm:$0xff]
        %v1152 = vld [vmem:[%s226 + $0x1ab0] sm:$0xff]
        %v1153 = vld [vmem:[%s226 + $0x1ab8] sm:$0xff]
        %v1154 = vld [vmem:[%s226 + $0x1ac0] sm:$0xff]
        %v1155 = vld [vmem:[%s226 + $0x1ac8] sm:$0xff]
        %v1156 = vld [vmem:[%s226 + $0x1ad0] sm:$0xff]
        %v1157 = vld [vmem:[%s226 + $0x1ad8] sm:$0xff]
        %v1158 = vld [vmem:[%s226 + $0x1ae0] sm:$0xff]
        %v1159 = vld [vmem:[%s226 + $0x1ae8] sm:$0xff]
        %v1160 = vld [vmem:[%s226 + $0x1af0] sm:$0xff]
        %v1161 = vld [vmem:[%s226 + $0x1af8] sm:$0xff]
        %v1162 = vld [vmem:[%s226 + $0x1b00] sm:$0xff]
        %v1163 = vld [vmem:[%s226 + $0x1b08] sm:$0xff]
        %v1164 = vld [vmem:[%s226 + $0x1b10] sm:$0xff]
        %v1165 = vld [vmem:[%s226 + $0x1b18] sm:$0xff]
        %v1166 = vld [vmem:[%s226 + $0x1b20] sm:$0xff]
        %v1167 = vld [vmem:[%s226 + $0x1b28] sm:$0xff]
        %v1168 = vld [vmem:[%s226 + $0x1b30] sm:$0xff]
        %v1169 = vld [vmem:[%s226 + $0x1b38] sm:$0xff]
        %v1170 = vld [vmem:[%s226 + $0x1b40] sm:$0xff]
        %v1171 = vld [vmem:[%s226 + $0x1b48] sm:$0xff]
        %v1172 = vld [vmem:[%s226 + $0x1b50] sm:$0xff]
        %v1173 = vld [vmem:[%s226 + $0x1b58] sm:$0xff]
        %v1174 = vld [vmem:[%s226 + $0x1b60] sm:$0xff]
        %v1175 = vld [vmem:[%s226 + $0x1b68] sm:$0xff]
        %v1176 = vld [vmem:[%s226 + $0x1b70] sm:$0xff]
        %v1177 = vld [vmem:[%s226 + $0x1b78] sm:$0xff]
        %v1178 = vld [vmem:[%s226 + $0x1b80] sm:$0xff]
        %v1179 = vld [vmem:[%s226 + $0x1b88] sm:$0xff]
        %v1180 = vld [vmem:[%s226 + $0x1b90] sm:$0xff]
        %v1181 = vld [vmem:[%s226 + $0x1b98] sm:$0xff]
        %v1182 = vld [vmem:[%s226 + $0x1ba0] sm:$0xff]
        %v1183 = vld [vmem:[%s226 + $0x1ba8] sm:$0xff]
        %v1184 = vld [vmem:[%s226 + $0x1bb0] sm:$0xff]
        %v1185 = vld [vmem:[%s226 + $0x1bb8] sm:$0xff]
        %v1186 = vld [vmem:[%s226 + $0x1bc0] sm:$0xff]
        %v1187 = vld [vmem:[%s226 + $0x1bc8] sm:$0xff]
        %v1188 = vld [vmem:[%s226 + $0x1bd0] sm:$0xff]
        %v1189 = vld [vmem:[%s226 + $0x1bd8] sm:$0xff]
        %v1190 = vld [vmem:[%s226 + $0x1be0] sm:$0xff]
        %v1191 = vld [vmem:[%s226 + $0x1be8] sm:$0xff]
        %v1192 = vld [vmem:[%s226 + $0x1bf0] sm:$0xff]
        %v1193 = vld [vmem:[%s226 + $0x1bf8] sm:$0xff]
        %v1222 = vunpack.c.l.b16 %v268
        %v1223 = vunpack.c.h.b16 %v268
        %v1224 = vunpack.c.l.b16 %v269
        %v1225 = vunpack.c.h.b16 %v269
        %v1226 = vunpack.c.l.b16 %v270
        %v1227 = vunpack.c.h.b16 %v270
        %v1228 = vunpack.c.l.b16 %v271
        %v1229 = vunpack.c.h.b16 %v271
        %v1230 = vunpack.c.l.b16 %v272
        %v1231 = vunpack.c.h.b16 %v272
        %v1232 = vunpack.c.l.b16 %v273
        %v1233 = vunpack.c.h.b16 %v273
        %v1234 = vunpack.c.l.b16 %v274
        %v1235 = vunpack.c.h.b16 %v274
        %v1236 = vunpack.c.l.b16 %v275
        %v1237 = vunpack.c.h.b16 %v275
        %v1238 = vunpack.c.l.b16 %v276
        %v1239 = vunpack.c.h.b16 %v276
        %v1240 = vunpack.c.l.b16 %v277
        %v1241 = vunpack.c.h.b16 %v277
        %v1242 = vunpack.c.l.b16 %v278
        %v1243 = vunpack.c.h.b16 %v278
        %v1244 = vunpack.c.l.b16 %v279
        %v1245 = vunpack.c.h.b16 %v279
        %v1246 = vunpack.c.l.b16 %v280
        %v1247 = vunpack.c.h.b16 %v280
        %v1248 = vunpack.c.l.b16 %v281
        %v1249 = vunpack.c.h.b16 %v281
        %v1250 = vunpack.c.l.b16 %v282
        %v1251 = vunpack.c.h.b16 %v282
        %v1252 = vunpack.c.l.b16 %v283
        %v1253 = vunpack.c.h.b16 %v283
        %v1254 = vunpack.c.l.b16 %v284
        %v1255 = vunpack.c.h.b16 %v284
        %v1256 = vunpack.c.l.b16 %v285
        %v1257 = vunpack.c.h.b16 %v285
        %v1258 = vunpack.c.l.b16 %v286
        %v1259 = vunpack.c.h.b16 %v286
        %v1260 = vunpack.c.l.b16 %v287
        %v1261 = vunpack.c.h.b16 %v287
        %v1262 = vunpack.c.l.b16 %v288
        %v1263 = vunpack.c.h.b16 %v288
        %v1264 = vunpack.c.l.b16 %v289
        %v1265 = vunpack.c.h.b16 %v289
        %v1266 = vunpack.c.l.b16 %v290
        %v1267 = vunpack.c.h.b16 %v290
        %v1268 = vunpack.c.l.b16 %v291
        %v1269 = vunpack.c.h.b16 %v291
        %v1270 = vunpack.c.l.b16 %v292
        %v1271 = vunpack.c.h.b16 %v292
        %v1272 = vunpack.c.l.b16 %v293
        %v1273 = vunpack.c.h.b16 %v293
        %v1274 = vunpack.c.l.b16 %v294
        %v1275 = vunpack.c.h.b16 %v294
        %v1276 = vunpack.c.l.b16 %v295
        %v1277 = vunpack.c.h.b16 %v295
        %v1278 = vpack.c.b16 %v1222, %v1222
        %v1279 = vpack.c.b16 %v1223, %v1223
        %v1280 = vpack.c.b16 %v1224, %v1224
        %v1281 = vpack.c.b16 %v1225, %v1225
        %v1282 = vpack.c.b16 %v1226, %v1226
        %v1283 = vpack.c.b16 %v1227, %v1227
        %v1284 = vpack.c.b16 %v1228, %v1228
        %v1285 = vpack.c.b16 %v1229, %v1229
        %v1286 = vpack.c.b16 %v1230, %v1230
        %v1287 = vpack.c.b16 %v1231, %v1231
        %v1288 = vpack.c.b16 %v1232, %v1232
        %v1289 = vpack.c.b16 %v1233, %v1233
        %v1290 = vpack.c.b16 %v1234, %v1234
        %v1291 = vpack.c.b16 %v1235, %v1235
        %v1292 = vpack.c.b16 %v1236, %v1236
        %v1293 = vpack.c.b16 %v1237, %v1237
        %v1294 = vpack.c.b16 %v1238, %v1238
        %v1295 = vpack.c.b16 %v1239, %v1239
        %v1296 = vpack.c.b16 %v1240, %v1240
        %v1297 = vpack.c.b16 %v1241, %v1241
        %v1298 = vpack.c.b16 %v1242, %v1242
        %v1299 = vpack.c.b16 %v1243, %v1243
        %v1300 = vpack.c.b16 %v1244, %v1244
        %v1301 = vpack.c.b16 %v1245, %v1245
        %v1302 = vpack.c.b16 %v1246, %v1246
        %v1303 = vpack.c.b16 %v1247, %v1247
        %v1304 = vpack.c.b16 %v1248, %v1248
        %v1305 = vpack.c.b16 %v1249, %v1249
        %v1306 = vpack.c.b16 %v1250, %v1250
        %v1307 = vpack.c.b16 %v1251, %v1251
        %v1308 = vpack.c.b16 %v1252, %v1252
        %v1309 = vpack.c.b16 %v1253, %v1253
        %v1310 = vpack.c.b16 %v1254, %v1254
        %v1311 = vpack.c.b16 %v1255, %v1255
        %v1312 = vpack.c.b16 %v1256, %v1256
        %v1313 = vpack.c.b16 %v1257, %v1257
        %v1314 = vpack.c.b16 %v1258, %v1258
        %v1315 = vpack.c.b16 %v1259, %v1259
        %v1316 = vpack.c.b16 %v1260, %v1260
        %v1317 = vpack.c.b16 %v1261, %v1261
        %v1318 = vpack.c.b16 %v1262, %v1262
        %v1319 = vpack.c.b16 %v1263, %v1263
        %v1320 = vpack.c.b16 %v1264, %v1264
        %v1321 = vpack.c.b16 %v1265, %v1265
        %v1322 = vpack.c.b16 %v1266, %v1266
        %v1323 = vpack.c.b16 %v1267, %v1267
        %v1324 = vpack.c.b16 %v1268, %v1268
        %v1325 = vpack.c.b16 %v1269, %v1269
        %v1326 = vpack.c.b16 %v1270, %v1270
        %v1327 = vpack.c.b16 %v1271, %v1271
        %v1328 = vpack.c.b16 %v1272, %v1272
        %v1329 = vpack.c.b16 %v1273, %v1273
        %v1330 = vpack.c.b16 %v1274, %v1274
        %v1331 = vpack.c.b16 %v1275, %v1275
        %v1332 = vpack.c.b16 %v1276, %v1276
        %v1333 = vpack.c.b16 %v1277, %v1277
        %v2286 = vunpack.c.l.b16 %v298
        %v2287 = vunpack.c.h.b16 %v298
        %v2288 = vunpack.c.l.b16 %v299
        %v2289 = vunpack.c.h.b16 %v299
        %v2290 = vunpack.c.l.b16 %v300
        %v2291 = vunpack.c.h.b16 %v300
        %v2292 = vunpack.c.l.b16 %v301
        %v2293 = vunpack.c.h.b16 %v301
        %v2294 = vunpack.c.l.b16 %v302
        %v2295 = vunpack.c.h.b16 %v302
        %v2296 = vunpack.c.l.b16 %v303
        %v2297 = vunpack.c.h.b16 %v303
        %v2298 = vunpack.c.l.b16 %v304
        %v2299 = vunpack.c.h.b16 %v304
        %v2300 = vunpack.c.l.b16 %v305
        %v2301 = vunpack.c.h.b16 %v305
        %v2302 = vunpack.c.l.b16 %v306
        %v2303 = vunpack.c.h.b16 %v306
        %v2304 = vunpack.c.l.b16 %v307
        %v2305 = vunpack.c.h.b16 %v307
        %v2306 = vunpack.c.l.b16 %v308
        %v2307 = vunpack.c.h.b16 %v308
        %v2308 = vunpack.c.l.b16 %v309
        %v2309 = vunpack.c.h.b16 %v309
        %v2310 = vunpack.c.l.b16 %v310
        %v2311 = vunpack.c.h.b16 %v310
        %v2312 = vunpack.c.l.b16 %v311
        %v2313 = vunpack.c.h.b16 %v311
        %v2314 = vunpack.c.l.b16 %v312
        %v2315 = vunpack.c.h.b16 %v312
        %v2316 = vunpack.c.l.b16 %v313
        %v2317 = vunpack.c.h.b16 %v313
        %v2318 = vunpack.c.l.b16 %v314
        %v2319 = vunpack.c.h.b16 %v314
        %v2320 = vunpack.c.l.b16 %v315
        %v2321 = vunpack.c.h.b16 %v315
        %v2322 = vunpack.c.l.b16 %v316
        %v2323 = vunpack.c.h.b16 %v316
        %v2324 = vunpack.c.l.b16 %v317
        %v2325 = vunpack.c.h.b16 %v317
        %v2326 = vunpack.c.l.b16 %v318
        %v2327 = vunpack.c.h.b16 %v318
        %v2328 = vunpack.c.l.b16 %v319
        %v2329 = vunpack.c.h.b16 %v319
        %v2330 = vunpack.c.l.b16 %v320
        %v2331 = vunpack.c.h.b16 %v320
        %v2332 = vunpack.c.l.b16 %v321
        %v2333 = vunpack.c.h.b16 %v321
        %v2334 = vunpack.c.l.b16 %v322
        %v2335 = vunpack.c.h.b16 %v322
        %v2336 = vunpack.c.l.b16 %v323
        %v2337 = vunpack.c.h.b16 %v323
        %v2338 = vunpack.c.l.b16 %v324
        %v2339 = vunpack.c.h.b16 %v324
        %v2340 = vunpack.c.l.b16 %v325
        %v2341 = vunpack.c.h.b16 %v325
        %v2342 = vunpack.c.l.b16 %v326
        %v2343 = vunpack.c.h.b16 %v326
        %v2344 = vunpack.c.l.b16 %v327
        %v2345 = vunpack.c.h.b16 %v327
        %v2346 = vunpack.c.l.b16 %v328
        %v2347 = vunpack.c.h.b16 %v328
        %v2348 = vunpack.c.l.b16 %v329
        %v2349 = vunpack.c.h.b16 %v329
        %v2350 = vunpack.c.l.b16 %v330
        %v2351 = vunpack.c.h.b16 %v330
        %v2352 = vunpack.c.l.b16 %v331
        %v2353 = vunpack.c.h.b16 %v331
        %v2354 = vunpack.c.l.b16 %v332
        %v2355 = vunpack.c.h.b16 %v332
        %v2356 = vunpack.c.l.b16 %v333
        %v2357 = vunpack.c.h.b16 %v333
        %v2358 = vunpack.c.l.b16 %v334
        %v2359 = vunpack.c.h.b16 %v334
        %v2360 = vunpack.c.l.b16 %v335
        %v2361 = vunpack.c.h.b16 %v335
        %v2362 = vunpack.c.l.b16 %v336
        %v2363 = vunpack.c.h.b16 %v336
        %v2364 = vunpack.c.l.b16 %v337
        %v2365 = vunpack.c.h.b16 %v337
        %v2366 = vunpack.c.l.b16 %v338
        %v2367 = vunpack.c.h.b16 %v338
        %v2368 = vunpack.c.l.b16 %v339
        %v2369 = vunpack.c.h.b16 %v339
        %v2370 = vunpack.c.l.b16 %v340
        %v2371 = vunpack.c.h.b16 %v340
        %v2372 = vunpack.c.l.b16 %v341
        %v2373 = vunpack.c.h.b16 %v341
        %v2374 = vunpack.c.l.b16 %v342
        %v2375 = vunpack.c.h.b16 %v342
        %v2376 = vunpack.c.l.b16 %v343
        %v2377 = vunpack.c.h.b16 %v343
        %v2378 = vunpack.c.l.b16 %v344
        %v2379 = vunpack.c.h.b16 %v344
        %v2380 = vunpack.c.l.b16 %v345
        %v2381 = vunpack.c.h.b16 %v345
        %v2382 = vunpack.c.l.b16 %v346
        %v2383 = vunpack.c.h.b16 %v346
        %v2384 = vunpack.c.l.b16 %v347
        %v2385 = vunpack.c.h.b16 %v347
        %v2386 = vunpack.c.l.b16 %v348
        %v2387 = vunpack.c.h.b16 %v348
        %v2388 = vunpack.c.l.b16 %v349
        %v2389 = vunpack.c.h.b16 %v349
        %v2390 = vunpack.c.l.b16 %v350
        %v2391 = vunpack.c.h.b16 %v350
        %v2392 = vunpack.c.l.b16 %v351
        %v2393 = vunpack.c.h.b16 %v351
        %v2394 = vunpack.c.l.b16 %v352
        %v2395 = vunpack.c.h.b16 %v352
        %v2396 = vunpack.c.l.b16 %v353
        %v2397 = vunpack.c.h.b16 %v353
        %v2398 = vunpack.c.l.b16 %v354
        %v2399 = vunpack.c.h.b16 %v354
        %v2400 = vunpack.c.l.b16 %v355
        %v2401 = vunpack.c.h.b16 %v355
        %v2402 = vunpack.c.l.b16 %v356
        %v2403 = vunpack.c.h.b16 %v356
        %v2404 = vunpack.c.l.b16 %v357
        %v2405 = vunpack.c.h.b16 %v357
        %v2406 = vunpack.c.l.b16 %v358
        %v2407 = vunpack.c.h.b16 %v358
        %v2408 = vunpack.c.l.b16 %v359
        %v2409 = vunpack.c.h.b16 %v359
        %v2410 = vunpack.c.l.b16 %v360
        %v2411 = vunpack.c.h.b16 %v360
        %v2412 = vunpack.c.l.b16 %v361
        %v2413 = vunpack.c.h.b16 %v361
        %v2414 = vunpack.c.l.b16 %v362
        %v2415 = vunpack.c.h.b16 %v362
        %v2416 = vunpack.c.l.b16 %v363
        %v2417 = vunpack.c.h.b16 %v363
        %v2418 = vunpack.c.l.b16 %v364
        %v2419 = vunpack.c.h.b16 %v364
        %v2420 = vunpack.c.l.b16 %v365
        %v2421 = vunpack.c.h.b16 %v365
        %v2422 = vunpack.c.l.b16 %v366
        %v2423 = vunpack.c.h.b16 %v366
        %v2424 = vunpack.c.l.b16 %v367
        %v2425 = vunpack.c.h.b16 %v367
        %v2426 = vunpack.c.l.b16 %v368
        %v2427 = vunpack.c.h.b16 %v368
        %v2428 = vunpack.c.l.b16 %v369
        %v2429 = vunpack.c.h.b16 %v369
        %v2430 = vunpack.c.l.b16 %v370
        %v2431 = vunpack.c.h.b16 %v370
        %v2432 = vunpack.c.l.b16 %v371
        %v2433 = vunpack.c.h.b16 %v371
        %v2434 = vunpack.c.l.b16 %v372
        %v2435 = vunpack.c.h.b16 %v372
        %v2436 = vunpack.c.l.b16 %v373
        %v2437 = vunpack.c.h.b16 %v373
        %v2438 = vunpack.c.l.b16 %v374
        %v2439 = vunpack.c.h.b16 %v374
        %v2440 = vunpack.c.l.b16 %v375
        %v2441 = vunpack.c.h.b16 %v375
        %v2442 = vunpack.c.l.b16 %v376
        %v2443 = vunpack.c.h.b16 %v376
        %v2444 = vunpack.c.l.b16 %v377
        %v2445 = vunpack.c.h.b16 %v377
        %v2446 = vunpack.c.l.b16 %v378
        %v2447 = vunpack.c.h.b16 %v378
        %v2448 = vunpack.c.l.b16 %v379
        %v2449 = vunpack.c.h.b16 %v379
        %v2450 = vunpack.c.l.b16 %v380
        %v2451 = vunpack.c.h.b16 %v380
        %v2452 = vunpack.c.l.b16 %v381
        %v2453 = vunpack.c.h.b16 %v381
        %v2454 = vunpack.c.l.b16 %v382
        %v2455 = vunpack.c.h.b16 %v382
        %v2456 = vunpack.c.l.b16 %v383
        %v2457 = vunpack.c.h.b16 %v383
        %v2458 = vunpack.c.l.b16 %v384
        %v2459 = vunpack.c.h.b16 %v384
        %v2460 = vunpack.c.l.b16 %v385
        %v2461 = vunpack.c.h.b16 %v385
        %v2462 = vunpack.c.l.b16 %v386
        %v2463 = vunpack.c.h.b16 %v386
        %v2464 = vunpack.c.l.b16 %v387
        %v2465 = vunpack.c.h.b16 %v387
        %v2466 = vunpack.c.l.b16 %v388
        %v2467 = vunpack.c.h.b16 %v388
        %v2468 = vunpack.c.l.b16 %v389
        %v2469 = vunpack.c.h.b16 %v389
        %v2470 = vunpack.c.l.b16 %v390
        %v2471 = vunpack.c.h.b16 %v390
        %v2472 = vunpack.c.l.b16 %v391
        %v2473 = vunpack.c.h.b16 %v391
        %v2474 = vunpack.c.l.b16 %v392
        %v2475 = vunpack.c.h.b16 %v392
        %v2476 = vunpack.c.l.b16 %v393
        %v2477 = vunpack.c.h.b16 %v393
        %v2478 = vunpack.c.l.b16 %v394
        %v2479 = vunpack.c.h.b16 %v394
        %v2480 = vunpack.c.l.b16 %v395
        %v2481 = vunpack.c.h.b16 %v395
        %v2482 = vunpack.c.l.b16 %v396
        %v2483 = vunpack.c.h.b16 %v396
        %v2484 = vunpack.c.l.b16 %v397
        %v2485 = vunpack.c.h.b16 %v397
        %v2486 = vunpack.c.l.b16 %v398
        %v2487 = vunpack.c.h.b16 %v398
        %v2488 = vunpack.c.l.b16 %v399
        %v2489 = vunpack.c.h.b16 %v399
        %v2490 = vunpack.c.l.b16 %v400
        %v2491 = vunpack.c.h.b16 %v400
        %v2492 = vunpack.c.l.b16 %v401
        %v2493 = vunpack.c.h.b16 %v401
        %v2494 = vunpack.c.l.b16 %v402
        %v2495 = vunpack.c.h.b16 %v402
        %v2496 = vunpack.c.l.b16 %v403
        %v2497 = vunpack.c.h.b16 %v403
        %v2498 = vunpack.c.l.b16 %v404
        %v2499 = vunpack.c.h.b16 %v404
        %v2500 = vunpack.c.l.b16 %v405
        %v2501 = vunpack.c.h.b16 %v405
        %v2502 = vunpack.c.l.b16 %v406
        %v2503 = vunpack.c.h.b16 %v406
        %v2504 = vunpack.c.l.b16 %v407
        %v2505 = vunpack.c.h.b16 %v407
        %v2506 = vunpack.c.l.b16 %v408
        %v2507 = vunpack.c.h.b16 %v408
        %v2508 = vunpack.c.l.b16 %v409
        %v2509 = vunpack.c.h.b16 %v409
        %v2510 = vunpack.c.l.b16 %v410
        %v2511 = vunpack.c.h.b16 %v410
        %v2512 = vunpack.c.l.b16 %v411
        %v2513 = vunpack.c.h.b16 %v411
        %v2514 = vunpack.c.l.b16 %v412
        %v2515 = vunpack.c.h.b16 %v412
        %v2516 = vunpack.c.l.b16 %v413
        %v2517 = vunpack.c.h.b16 %v413
        %v2518 = vunpack.c.l.b16 %v414
        %v2519 = vunpack.c.h.b16 %v414
        %v2520 = vunpack.c.l.b16 %v415
        %v2521 = vunpack.c.h.b16 %v415
        %v2522 = vunpack.c.l.b16 %v416
        %v2523 = vunpack.c.h.b16 %v416
        %v2524 = vunpack.c.l.b16 %v417
        %v2525 = vunpack.c.h.b16 %v417
        %v2526 = vunpack.c.l.b16 %v418
        %v2527 = vunpack.c.h.b16 %v418
        %v2528 = vunpack.c.l.b16 %v419
        %v2529 = vunpack.c.h.b16 %v419
        %v2530 = vunpack.c.l.b16 %v420
        %v2531 = vunpack.c.h.b16 %v420
        %v2532 = vunpack.c.l.b16 %v421
        %v2533 = vunpack.c.h.b16 %v421
        %v2534 = vunpack.c.l.b16 %v422
        %v2535 = vunpack.c.h.b16 %v422
        %v2536 = vunpack.c.l.b16 %v423
        %v2537 = vunpack.c.h.b16 %v423
        %v2538 = vunpack.c.l.b16 %v424
        %v2539 = vunpack.c.h.b16 %v424
        %v2540 = vunpack.c.l.b16 %v425
        %v2541 = vunpack.c.h.b16 %v425
        %v2542 = vunpack.c.l.b16 %v426
        %v2543 = vunpack.c.h.b16 %v426
        %v2544 = vunpack.c.l.b16 %v427
        %v2545 = vunpack.c.h.b16 %v427
        %v2546 = vunpack.c.l.b16 %v428
        %v2547 = vunpack.c.h.b16 %v428
        %v2548 = vunpack.c.l.b16 %v429
        %v2549 = vunpack.c.h.b16 %v429
        %v2550 = vunpack.c.l.b16 %v430
        %v2551 = vunpack.c.h.b16 %v430
        %v2552 = vunpack.c.l.b16 %v431
        %v2553 = vunpack.c.h.b16 %v431
        %v2554 = vunpack.c.l.b16 %v432
        %v2555 = vunpack.c.h.b16 %v432
        %v2556 = vunpack.c.l.b16 %v433
        %v2557 = vunpack.c.h.b16 %v433
        %v2558 = vunpack.c.l.b16 %v434
        %v2559 = vunpack.c.h.b16 %v434
        %v2560 = vunpack.c.l.b16 %v435
        %v2561 = vunpack.c.h.b16 %v435
        %v2562 = vunpack.c.l.b16 %v436
        %v2563 = vunpack.c.h.b16 %v436
        %v2564 = vunpack.c.l.b16 %v437
        %v2565 = vunpack.c.h.b16 %v437
        %v2566 = vunpack.c.l.b16 %v438
        %v2567 = vunpack.c.h.b16 %v438
        %v2568 = vunpack.c.l.b16 %v439
        %v2569 = vunpack.c.h.b16 %v439
        %v2570 = vunpack.c.l.b16 %v440
        %v2571 = vunpack.c.h.b16 %v440
        %v2572 = vunpack.c.l.b16 %v441
        %v2573 = vunpack.c.h.b16 %v441
        %v2574 = vunpack.c.l.b16 %v442
        %v2575 = vunpack.c.h.b16 %v442
        %v2576 = vunpack.c.l.b16 %v443
        %v2577 = vunpack.c.h.b16 %v443
        %v2578 = vunpack.c.l.b16 %v444
        %v2579 = vunpack.c.h.b16 %v444
        %v2580 = vunpack.c.l.b16 %v445
        %v2581 = vunpack.c.h.b16 %v445
        %v2582 = vunpack.c.l.b16 %v446
        %v2583 = vunpack.c.h.b16 %v446
        %v2584 = vunpack.c.l.b16 %v447
        %v2585 = vunpack.c.h.b16 %v447
        %v2586 = vunpack.c.l.b16 %v448
        %v2587 = vunpack.c.h.b16 %v448
        %v2588 = vunpack.c.l.b16 %v449
        %v2589 = vunpack.c.h.b16 %v449
        %v2590 = vunpack.c.l.b16 %v450
        %v2591 = vunpack.c.h.b16 %v450
        %v2592 = vunpack.c.l.b16 %v451
        %v2593 = vunpack.c.h.b16 %v451
        %v2594 = vunpack.c.l.b16 %v452
        %v2595 = vunpack.c.h.b16 %v452
        %v2596 = vunpack.c.l.b16 %v453
        %v2597 = vunpack.c.h.b16 %v453
        %v2598 = vunpack.c.l.b16 %v454
        %v2599 = vunpack.c.h.b16 %v454
        %v2600 = vunpack.c.l.b16 %v455
        %v2601 = vunpack.c.h.b16 %v455
        %v2602 = vunpack.c.l.b16 %v456
        %v2603 = vunpack.c.h.b16 %v456
        %v2604 = vunpack.c.l.b16 %v457
        %v2605 = vunpack.c.h.b16 %v457
        %v2606 = vunpack.c.l.b16 %v458
        %v2607 = vunpack.c.h.b16 %v458
        %v2608 = vunpack.c.l.b16 %v459
        %v2609 = vunpack.c.h.b16 %v459
        %v2610 = vunpack.c.l.b16 %v460
        %v2611 = vunpack.c.h.b16 %v460
        %v2612 = vunpack.c.l.b16 %v461
        %v2613 = vunpack.c.h.b16 %v461
        %v2614 = vunpack.c.l.b16 %v462
        %v2615 = vunpack.c.h.b16 %v462
        %v2616 = vunpack.c.l.b16 %v463
        %v2617 = vunpack.c.h.b16 %v463
        %v2618 = vunpack.c.l.b16 %v464
        %v2619 = vunpack.c.h.b16 %v464
        %v2620 = vunpack.c.l.b16 %v465
        %v2621 = vunpack.c.h.b16 %v465
        %v2622 = vunpack.c.l.b16 %v466
        %v2623 = vunpack.c.h.b16 %v466
        %v2624 = vunpack.c.l.b16 %v467
        %v2625 = vunpack.c.h.b16 %v467
        %v2626 = vunpack.c.l.b16 %v468
        %v2627 = vunpack.c.h.b16 %v468
        %v2628 = vunpack.c.l.b16 %v469
        %v2629 = vunpack.c.h.b16 %v469
        %v2630 = vunpack.c.l.b16 %v470
        %v2631 = vunpack.c.h.b16 %v470
        %v2632 = vunpack.c.l.b16 %v471
        %v2633 = vunpack.c.h.b16 %v471
        %v2634 = vunpack.c.l.b16 %v472
        %v2635 = vunpack.c.h.b16 %v472
        %v2636 = vunpack.c.l.b16 %v473
        %v2637 = vunpack.c.h.b16 %v473
        %v2638 = vunpack.c.l.b16 %v474
        %v2639 = vunpack.c.h.b16 %v474
        %v2640 = vunpack.c.l.b16 %v475
        %v2641 = vunpack.c.h.b16 %v475
        %v2642 = vunpack.c.l.b16 %v476
        %v2643 = vunpack.c.h.b16 %v476
        %v2644 = vunpack.c.l.b16 %v477
        %v2645 = vunpack.c.h.b16 %v477
        %v2646 = vunpack.c.l.b16 %v478
        %v2647 = vunpack.c.h.b16 %v478
        %v2648 = vunpack.c.l.b16 %v479
        %v2649 = vunpack.c.h.b16 %v479
        %v2650 = vunpack.c.l.b16 %v480
        %v2651 = vunpack.c.h.b16 %v480
        %v2652 = vunpack.c.l.b16 %v481
        %v2653 = vunpack.c.h.b16 %v481
        %v2654 = vunpack.c.l.b16 %v482
        %v2655 = vunpack.c.h.b16 %v482
        %v2656 = vunpack.c.l.b16 %v483
        %v2657 = vunpack.c.h.b16 %v483
        %v2658 = vunpack.c.l.b16 %v484
        %v2659 = vunpack.c.h.b16 %v484
        %v2660 = vunpack.c.l.b16 %v485
        %v2661 = vunpack.c.h.b16 %v485
        %v2662 = vunpack.c.l.b16 %v486
        %v2663 = vunpack.c.h.b16 %v486
        %v2664 = vunpack.c.l.b16 %v487
        %v2665 = vunpack.c.h.b16 %v487
        %v2666 = vunpack.c.l.b16 %v488
        %v2667 = vunpack.c.h.b16 %v488
        %v2668 = vunpack.c.l.b16 %v489
        %v2669 = vunpack.c.h.b16 %v489
        %v2670 = vunpack.c.l.b16 %v490
        %v2671 = vunpack.c.h.b16 %v490
        %v2672 = vunpack.c.l.b16 %v491
        %v2673 = vunpack.c.h.b16 %v491
        %v2674 = vunpack.c.l.b16 %v492
        %v2675 = vunpack.c.h.b16 %v492
        %v2676 = vunpack.c.l.b16 %v493
        %v2677 = vunpack.c.h.b16 %v493
        %v2678 = vunpack.c.l.b16 %v494
        %v2679 = vunpack.c.h.b16 %v494
        %v2680 = vunpack.c.l.b16 %v495
        %v2681 = vunpack.c.h.b16 %v495
        %v2682 = vunpack.c.l.b16 %v496
        %v2683 = vunpack.c.h.b16 %v496
        %v2684 = vunpack.c.l.b16 %v497
        %v2685 = vunpack.c.h.b16 %v497
        %v2686 = vunpack.c.l.b16 %v498
        %v2687 = vunpack.c.h.b16 %v498
        %v2688 = vunpack.c.l.b16 %v499
        %v2689 = vunpack.c.h.b16 %v499
        %v2690 = vunpack.c.l.b16 %v500
        %v2691 = vunpack.c.h.b16 %v500
        %v2692 = vunpack.c.l.b16 %v501
        %v2693 = vunpack.c.h.b16 %v501
        %v2694 = vunpack.c.l.b16 %v502
        %v2695 = vunpack.c.h.b16 %v502
        %v2696 = vunpack.c.l.b16 %v503
        %v2697 = vunpack.c.h.b16 %v503
        %v2698 = vunpack.c.l.b16 %v504
        %v2699 = vunpack.c.h.b16 %v504
        %v2700 = vunpack.c.l.b16 %v505
        %v2701 = vunpack.c.h.b16 %v505
        %v2702 = vunpack.c.l.b16 %v506
        %v2703 = vunpack.c.h.b16 %v506
        %v2704 = vunpack.c.l.b16 %v507
        %v2705 = vunpack.c.h.b16 %v507
        %v2706 = vunpack.c.l.b16 %v508
        %v2707 = vunpack.c.h.b16 %v508
        %v2708 = vunpack.c.l.b16 %v509
        %v2709 = vunpack.c.h.b16 %v509
        %v2710 = vunpack.c.l.b16 %v510
        %v2711 = vunpack.c.h.b16 %v510
        %v2712 = vunpack.c.l.b16 %v511
        %v2713 = vunpack.c.h.b16 %v511
        %v2714 = vunpack.c.l.b16 %v512
        %v2715 = vunpack.c.h.b16 %v512
        %v2716 = vunpack.c.l.b16 %v513
        %v2717 = vunpack.c.h.b16 %v513
        %v2718 = vunpack.c.l.b16 %v514
        %v2719 = vunpack.c.h.b16 %v514
        %v2720 = vunpack.c.l.b16 %v515
        %v2721 = vunpack.c.h.b16 %v515
        %v2722 = vunpack.c.l.b16 %v516
        %v2723 = vunpack.c.h.b16 %v516
        %v2724 = vunpack.c.l.b16 %v517
        %v2725 = vunpack.c.h.b16 %v517
        %v2726 = vunpack.c.l.b16 %v518
        %v2727 = vunpack.c.h.b16 %v518
        %v2728 = vunpack.c.l.b16 %v519
        %v2729 = vunpack.c.h.b16 %v519
        %v2730 = vunpack.c.l.b16 %v520
        %v2731 = vunpack.c.h.b16 %v520
        %v2732 = vunpack.c.l.b16 %v521
        %v2733 = vunpack.c.h.b16 %v521
        %v2734 = vunpack.c.l.b16 %v522
        %v2735 = vunpack.c.h.b16 %v522
        %v2736 = vunpack.c.l.b16 %v523
        %v2737 = vunpack.c.h.b16 %v523
        %v2738 = vunpack.c.l.b16 %v524
        %v2739 = vunpack.c.h.b16 %v524
        %v2740 = vunpack.c.l.b16 %v525
        %v2741 = vunpack.c.h.b16 %v525
        %v2742 = vunpack.c.l.b16 %v526
        %v2743 = vunpack.c.h.b16 %v526
        %v2744 = vunpack.c.l.b16 %v527
        %v2745 = vunpack.c.h.b16 %v527
        %v2746 = vunpack.c.l.b16 %v528
        %v2747 = vunpack.c.h.b16 %v528
        %v2748 = vunpack.c.l.b16 %v529
        %v2749 = vunpack.c.h.b16 %v529
        %v2750 = vunpack.c.l.b16 %v530
        %v2751 = vunpack.c.h.b16 %v530
        %v2752 = vunpack.c.l.b16 %v531
        %v2753 = vunpack.c.h.b16 %v531
        %v2754 = vunpack.c.l.b16 %v532
        %v2755 = vunpack.c.h.b16 %v532
        %v2756 = vunpack.c.l.b16 %v533
        %v2757 = vunpack.c.h.b16 %v533
        %v2758 = vunpack.c.l.b16 %v534
        %v2759 = vunpack.c.h.b16 %v534
        %v2760 = vunpack.c.l.b16 %v535
        %v2761 = vunpack.c.h.b16 %v535
        %v2762 = vunpack.c.l.b16 %v536
        %v2763 = vunpack.c.h.b16 %v536
        %v2764 = vunpack.c.l.b16 %v537
        %v2765 = vunpack.c.h.b16 %v537
        %v2766 = vunpack.c.l.b16 %v538
        %v2767 = vunpack.c.h.b16 %v538
        %v2768 = vunpack.c.l.b16 %v539
        %v2769 = vunpack.c.h.b16 %v539
        %v2770 = vunpack.c.l.b16 %v540
        %v2771 = vunpack.c.h.b16 %v540
        %v2772 = vunpack.c.l.b16 %v541
        %v2773 = vunpack.c.h.b16 %v541
        %v2774 = vunpack.c.l.b16 %v542
        %v2775 = vunpack.c.h.b16 %v542
        %v2776 = vunpack.c.l.b16 %v543
        %v2777 = vunpack.c.h.b16 %v543
        %v2778 = vunpack.c.l.b16 %v544
        %v2779 = vunpack.c.h.b16 %v544
        %v2780 = vunpack.c.l.b16 %v545
        %v2781 = vunpack.c.h.b16 %v545
        %v2782 = vunpack.c.l.b16 %v546
        %v2783 = vunpack.c.h.b16 %v546
        %v2784 = vunpack.c.l.b16 %v547
        %v2785 = vunpack.c.h.b16 %v547
        %v2786 = vunpack.c.l.b16 %v548
        %v2787 = vunpack.c.h.b16 %v548
        %v2788 = vunpack.c.l.b16 %v549
        %v2789 = vunpack.c.h.b16 %v549
        %v2790 = vunpack.c.l.b16 %v550
        %v2791 = vunpack.c.h.b16 %v550
        %v2792 = vunpack.c.l.b16 %v551
        %v2793 = vunpack.c.h.b16 %v551
        %v2794 = vunpack.c.l.b16 %v552
        %v2795 = vunpack.c.h.b16 %v552
        %v2796 = vunpack.c.l.b16 %v553
        %v2797 = vunpack.c.h.b16 %v553
        %v2798 = vunpack.c.l.b16 %v554
        %v2799 = vunpack.c.h.b16 %v554
        %v2800 = vunpack.c.l.b16 %v555
        %v2801 = vunpack.c.h.b16 %v555
        %v2802 = vunpack.c.l.b16 %v556
        %v2803 = vunpack.c.h.b16 %v556
        %v2804 = vunpack.c.l.b16 %v557
        %v2805 = vunpack.c.h.b16 %v557
        %v2806 = vunpack.c.l.b16 %v558
        %v2807 = vunpack.c.h.b16 %v558
        %v2808 = vunpack.c.l.b16 %v559
        %v2809 = vunpack.c.h.b16 %v559
        %v2810 = vunpack.c.l.b16 %v560
        %v2811 = vunpack.c.h.b16 %v560
        %v2812 = vunpack.c.l.b16 %v561
        %v2813 = vunpack.c.h.b16 %v561
        %v2814 = vunpack.c.l.b16 %v562
        %v2815 = vunpack.c.h.b16 %v562
        %v2816 = vunpack.c.l.b16 %v563
        %v2817 = vunpack.c.h.b16 %v563
        %v2818 = vunpack.c.l.b16 %v564
        %v2819 = vunpack.c.h.b16 %v564
        %v2820 = vunpack.c.l.b16 %v565
        %v2821 = vunpack.c.h.b16 %v565
        %v2822 = vunpack.c.l.b16 %v566
        %v2823 = vunpack.c.h.b16 %v566
        %v2824 = vunpack.c.l.b16 %v567
        %v2825 = vunpack.c.h.b16 %v567
        %v2826 = vunpack.c.l.b16 %v568
        %v2827 = vunpack.c.h.b16 %v568
        %v2828 = vunpack.c.l.b16 %v569
        %v2829 = vunpack.c.h.b16 %v569
        %v2830 = vunpack.c.l.b16 %v570
        %v2831 = vunpack.c.h.b16 %v570
        %v2832 = vunpack.c.l.b16 %v571
        %v2833 = vunpack.c.h.b16 %v571
        %v2834 = vunpack.c.l.b16 %v572
        %v2835 = vunpack.c.h.b16 %v572
        %v2836 = vunpack.c.l.b16 %v573
        %v2837 = vunpack.c.h.b16 %v573
        %v2838 = vunpack.c.l.b16 %v574
        %v2839 = vunpack.c.h.b16 %v574
        %v2840 = vunpack.c.l.b16 %v575
        %v2841 = vunpack.c.h.b16 %v575
        %v2842 = vunpack.c.l.b16 %v576
        %v2843 = vunpack.c.h.b16 %v576
        %v2844 = vunpack.c.l.b16 %v577
        %v2845 = vunpack.c.h.b16 %v577
        %v2846 = vunpack.c.l.b16 %v578
        %v2847 = vunpack.c.h.b16 %v578
        %v2848 = vunpack.c.l.b16 %v579
        %v2849 = vunpack.c.h.b16 %v579
        %v2850 = vunpack.c.l.b16 %v580
        %v2851 = vunpack.c.h.b16 %v580
        %v2852 = vunpack.c.l.b16 %v581
        %v2853 = vunpack.c.h.b16 %v581
        %v2854 = vunpack.c.l.b16 %v582
        %v2855 = vunpack.c.h.b16 %v582
        %v2856 = vunpack.c.l.b16 %v583
        %v2857 = vunpack.c.h.b16 %v583
        %v2858 = vunpack.c.l.b16 %v584
        %v2859 = vunpack.c.h.b16 %v584
        %v2860 = vunpack.c.l.b16 %v585
        %v2861 = vunpack.c.h.b16 %v585
        %v2862 = vunpack.c.l.b16 %v586
        %v2863 = vunpack.c.h.b16 %v586
        %v2864 = vunpack.c.l.b16 %v587
        %v2865 = vunpack.c.h.b16 %v587
        %v2866 = vunpack.c.l.b16 %v588
        %v2867 = vunpack.c.h.b16 %v588
        %v2868 = vunpack.c.l.b16 %v589
        %v2869 = vunpack.c.h.b16 %v589
        %v2870 = vunpack.c.l.b16 %v590
        %v2871 = vunpack.c.h.b16 %v590
        %v2872 = vunpack.c.l.b16 %v591
        %v2873 = vunpack.c.h.b16 %v591
        %v2874 = vunpack.c.l.b16 %v592
        %v2875 = vunpack.c.h.b16 %v592
        %v2876 = vunpack.c.l.b16 %v593
        %v2877 = vunpack.c.h.b16 %v593
        %v2878 = vunpack.c.l.b16 %v594
        %v2879 = vunpack.c.h.b16 %v594
        %v2880 = vunpack.c.l.b16 %v595
        %v2881 = vunpack.c.h.b16 %v595
        %v2882 = vunpack.c.l.b16 %v596
        %v2883 = vunpack.c.h.b16 %v596
        %v2884 = vunpack.c.l.b16 %v597
        %v2885 = vunpack.c.h.b16 %v597
        %v2886 = vunpack.c.l.b16 %v598
        %v2887 = vunpack.c.h.b16 %v598
        %v2888 = vunpack.c.l.b16 %v599
        %v2889 = vunpack.c.h.b16 %v599
        %v2890 = vunpack.c.l.b16 %v600
        %v2891 = vunpack.c.h.b16 %v600
        %v2892 = vunpack.c.l.b16 %v601
        %v2893 = vunpack.c.h.b16 %v601
        %v2894 = vunpack.c.l.b16 %v602
        %v2895 = vunpack.c.h.b16 %v602
        %v2896 = vunpack.c.l.b16 %v603
        %v2897 = vunpack.c.h.b16 %v603
        %v2898 = vunpack.c.l.b16 %v604
        %v2899 = vunpack.c.h.b16 %v604
        %v2900 = vunpack.c.l.b16 %v605
        %v2901 = vunpack.c.h.b16 %v605
        %v2902 = vunpack.c.l.b16 %v606
        %v2903 = vunpack.c.h.b16 %v606
        %v2904 = vunpack.c.l.b16 %v607
        %v2905 = vunpack.c.h.b16 %v607
        %v2906 = vunpack.c.l.b16 %v608
        %v2907 = vunpack.c.h.b16 %v608
        %v2908 = vunpack.c.l.b16 %v609
        %v2909 = vunpack.c.h.b16 %v609
        %v2910 = vunpack.c.l.b16 %v610
        %v2911 = vunpack.c.h.b16 %v610
        %v2912 = vunpack.c.l.b16 %v611
        %v2913 = vunpack.c.h.b16 %v611
        %v2914 = vunpack.c.l.b16 %v612
        %v2915 = vunpack.c.h.b16 %v612
        %v2916 = vunpack.c.l.b16 %v613
        %v2917 = vunpack.c.h.b16 %v613
        %v2918 = vunpack.c.l.b16 %v614
        %v2919 = vunpack.c.h.b16 %v614
        %v2920 = vunpack.c.l.b16 %v615
        %v2921 = vunpack.c.h.b16 %v615
        %v2922 = vunpack.c.l.b16 %v616
        %v2923 = vunpack.c.h.b16 %v616
        %v2924 = vunpack.c.l.b16 %v617
        %v2925 = vunpack.c.h.b16 %v617
        %v2926 = vunpack.c.l.b16 %v618
        %v2927 = vunpack.c.h.b16 %v618
        %v2928 = vunpack.c.l.b16 %v619
        %v2929 = vunpack.c.h.b16 %v619
        %v2930 = vunpack.c.l.b16 %v620
        %v2931 = vunpack.c.h.b16 %v620
        %v2932 = vunpack.c.l.b16 %v621
        %v2933 = vunpack.c.h.b16 %v621
        %v2934 = vunpack.c.l.b16 %v622
        %v2935 = vunpack.c.h.b16 %v622
        %v2936 = vunpack.c.l.b16 %v623
        %v2937 = vunpack.c.h.b16 %v623
        %v2938 = vunpack.c.l.b16 %v624
        %v2939 = vunpack.c.h.b16 %v624
        %v2940 = vunpack.c.l.b16 %v625
        %v2941 = vunpack.c.h.b16 %v625
        %v2942 = vunpack.c.l.b16 %v626
        %v2943 = vunpack.c.h.b16 %v626
        %v2944 = vunpack.c.l.b16 %v627
        %v2945 = vunpack.c.h.b16 %v627
        %v2946 = vunpack.c.l.b16 %v628
        %v2947 = vunpack.c.h.b16 %v628
        %v2948 = vunpack.c.l.b16 %v629
        %v2949 = vunpack.c.h.b16 %v629
        %v2950 = vunpack.c.l.b16 %v630
        %v2951 = vunpack.c.h.b16 %v630
        %v2952 = vunpack.c.l.b16 %v631
        %v2953 = vunpack.c.h.b16 %v631
        %v2954 = vunpack.c.l.b16 %v632
        %v2955 = vunpack.c.h.b16 %v632
        %v2956 = vunpack.c.l.b16 %v633
        %v2957 = vunpack.c.h.b16 %v633
        %v2958 = vunpack.c.l.b16 %v634
        %v2959 = vunpack.c.h.b16 %v634
        %v2960 = vunpack.c.l.b16 %v635
        %v2961 = vunpack.c.h.b16 %v635
        %v2962 = vunpack.c.l.b16 %v636
        %v2963 = vunpack.c.h.b16 %v636
        %v2964 = vunpack.c.l.b16 %v637
        %v2965 = vunpack.c.h.b16 %v637
        %v2966 = vunpack.c.l.b16 %v638
        %v2967 = vunpack.c.h.b16 %v638
        %v2968 = vunpack.c.l.b16 %v639
        %v2969 = vunpack.c.h.b16 %v639
        %v2970 = vunpack.c.l.b16 %v640
        %v2971 = vunpack.c.h.b16 %v640
        %v2972 = vunpack.c.l.b16 %v641
        %v2973 = vunpack.c.h.b16 %v641
        %v2974 = vunpack.c.l.b16 %v642
        %v2975 = vunpack.c.h.b16 %v642
        %v2976 = vunpack.c.l.b16 %v643
        %v2977 = vunpack.c.h.b16 %v643
        %v2978 = vunpack.c.l.b16 %v644
        %v2979 = vunpack.c.h.b16 %v644
        %v2980 = vunpack.c.l.b16 %v645
        %v2981 = vunpack.c.h.b16 %v645
        %v2982 = vunpack.c.l.b16 %v646
        %v2983 = vunpack.c.h.b16 %v646
        %v2984 = vunpack.c.l.b16 %v647
        %v2985 = vunpack.c.h.b16 %v647
        %v2986 = vunpack.c.l.b16 %v648
        %v2987 = vunpack.c.h.b16 %v648
        %v2988 = vunpack.c.l.b16 %v649
        %v2989 = vunpack.c.h.b16 %v649
        %v2990 = vunpack.c.l.b16 %v650
        %v2991 = vunpack.c.h.b16 %v650
        %v2992 = vunpack.c.l.b16 %v651
        %v2993 = vunpack.c.h.b16 %v651
        %v2994 = vunpack.c.l.b16 %v652
        %v2995 = vunpack.c.h.b16 %v652
        %v2996 = vunpack.c.l.b16 %v653
        %v2997 = vunpack.c.h.b16 %v653
        %v2998 = vunpack.c.l.b16 %v654
        %v2999 = vunpack.c.h.b16 %v654
        %v3000 = vunpack.c.l.b16 %v655
        %v3001 = vunpack.c.h.b16 %v655
        %v3002 = vunpack.c.l.b16 %v656
        %v3003 = vunpack.c.h.b16 %v656
        %v3004 = vunpack.c.l.b16 %v657
        %v3005 = vunpack.c.h.b16 %v657
        %v3006 = vunpack.c.l.b16 %v658
        %v3007 = vunpack.c.h.b16 %v658
        %v3008 = vunpack.c.l.b16 %v659
        %v3009 = vunpack.c.h.b16 %v659
        %v3010 = vunpack.c.l.b16 %v660
        %v3011 = vunpack.c.h.b16 %v660
        %v3012 = vunpack.c.l.b16 %v661
        %v3013 = vunpack.c.h.b16 %v661
        %v3014 = vunpack.c.l.b16 %v662
        %v3015 = vunpack.c.h.b16 %v662
        %v3016 = vunpack.c.l.b16 %v663
        %v3017 = vunpack.c.h.b16 %v663
        %v3018 = vunpack.c.l.b16 %v664
        %v3019 = vunpack.c.h.b16 %v664
        %v3020 = vunpack.c.l.b16 %v665
        %v3021 = vunpack.c.h.b16 %v665
        %v3022 = vunpack.c.l.b16 %v666
        %v3023 = vunpack.c.h.b16 %v666
        %v3024 = vunpack.c.l.b16 %v667
        %v3025 = vunpack.c.h.b16 %v667
        %v3026 = vunpack.c.l.b16 %v668
        %v3027 = vunpack.c.h.b16 %v668
        %v3028 = vunpack.c.l.b16 %v669
        %v3029 = vunpack.c.h.b16 %v669
        %v3030 = vunpack.c.l.b16 %v670
        %v3031 = vunpack.c.h.b16 %v670
        %v3032 = vunpack.c.l.b16 %v671
        %v3033 = vunpack.c.h.b16 %v671
        %v3034 = vunpack.c.l.b16 %v672
        %v3035 = vunpack.c.h.b16 %v672
        %v3036 = vunpack.c.l.b16 %v673
        %v3037 = vunpack.c.h.b16 %v673
        %v3038 = vunpack.c.l.b16 %v674
        %v3039 = vunpack.c.h.b16 %v674
        %v3040 = vunpack.c.l.b16 %v675
        %v3041 = vunpack.c.h.b16 %v675
        %v3042 = vunpack.c.l.b16 %v676
        %v3043 = vunpack.c.h.b16 %v676
        %v3044 = vunpack.c.l.b16 %v677
        %v3045 = vunpack.c.h.b16 %v677
        %v3046 = vunpack.c.l.b16 %v678
        %v3047 = vunpack.c.h.b16 %v678
        %v3048 = vunpack.c.l.b16 %v679
        %v3049 = vunpack.c.h.b16 %v679
        %v3050 = vunpack.c.l.b16 %v680
        %v3051 = vunpack.c.h.b16 %v680
        %v3052 = vunpack.c.l.b16 %v681
        %v3053 = vunpack.c.h.b16 %v681
        %v3054 = vunpack.c.l.b16 %v682
        %v3055 = vunpack.c.h.b16 %v682
        %v3056 = vunpack.c.l.b16 %v683
        %v3057 = vunpack.c.h.b16 %v683
        %v3058 = vunpack.c.l.b16 %v684
        %v3059 = vunpack.c.h.b16 %v684
        %v3060 = vunpack.c.l.b16 %v685
        %v3061 = vunpack.c.h.b16 %v685
        %v3062 = vunpack.c.l.b16 %v686
        %v3063 = vunpack.c.h.b16 %v686
        %v3064 = vunpack.c.l.b16 %v687
        %v3065 = vunpack.c.h.b16 %v687
        %v3066 = vunpack.c.l.b16 %v688
        %v3067 = vunpack.c.h.b16 %v688
        %v3068 = vunpack.c.l.b16 %v689
        %v3069 = vunpack.c.h.b16 %v689
        %v3070 = vunpack.c.l.b16 %v690
        %v3071 = vunpack.c.h.b16 %v690
        %v3072 = vunpack.c.l.b16 %v691
        %v3073 = vunpack.c.h.b16 %v691
        %v3074 = vunpack.c.l.b16 %v692
        %v3075 = vunpack.c.h.b16 %v692
        %v3076 = vunpack.c.l.b16 %v693
        %v3077 = vunpack.c.h.b16 %v693
        %v3078 = vunpack.c.l.b16 %v694
        %v3079 = vunpack.c.h.b16 %v694
        %v3080 = vunpack.c.l.b16 %v695
        %v3081 = vunpack.c.h.b16 %v695
        %v3082 = vunpack.c.l.b16 %v696
        %v3083 = vunpack.c.h.b16 %v696
        %v3084 = vunpack.c.l.b16 %v697
        %v3085 = vunpack.c.h.b16 %v697
        %v3086 = vunpack.c.l.b16 %v698
        %v3087 = vunpack.c.h.b16 %v698
        %v3088 = vunpack.c.l.b16 %v699
        %v3089 = vunpack.c.h.b16 %v699
        %v3090 = vunpack.c.l.b16 %v700
        %v3091 = vunpack.c.h.b16 %v700
        %v3092 = vunpack.c.l.b16 %v701
        %v3093 = vunpack.c.h.b16 %v701
        %v3094 = vunpack.c.l.b16 %v702
        %v3095 = vunpack.c.h.b16 %v702
        %v3096 = vunpack.c.l.b16 %v703
        %v3097 = vunpack.c.h.b16 %v703
        %v3098 = vunpack.c.l.b16 %v704
        %v3099 = vunpack.c.h.b16 %v704
        %v3100 = vunpack.c.l.b16 %v705
        %v3101 = vunpack.c.h.b16 %v705
        %v3102 = vunpack.c.l.b16 %v706
        %v3103 = vunpack.c.h.b16 %v706
        %v3104 = vunpack.c.l.b16 %v707
        %v3105 = vunpack.c.h.b16 %v707
        %v3106 = vunpack.c.l.b16 %v708
        %v3107 = vunpack.c.h.b16 %v708
        %v3108 = vunpack.c.l.b16 %v709
        %v3109 = vunpack.c.h.b16 %v709
        %v3110 = vunpack.c.l.b16 %v710
        %v3111 = vunpack.c.h.b16 %v710
        %v3112 = vunpack.c.l.b16 %v711
        %v3113 = vunpack.c.h.b16 %v711
        %v3114 = vunpack.c.l.b16 %v712
        %v3115 = vunpack.c.h.b16 %v712
        %v3116 = vunpack.c.l.b16 %v713
        %v3117 = vunpack.c.h.b16 %v713
        %v3118 = vunpack.c.l.b16 %v714
        %v3119 = vunpack.c.h.b16 %v714
        %v3120 = vunpack.c.l.b16 %v715
        %v3121 = vunpack.c.h.b16 %v715
        %v3122 = vunpack.c.l.b16 %v716
        %v3123 = vunpack.c.h.b16 %v716
        %v3124 = vunpack.c.l.b16 %v717
        %v3125 = vunpack.c.h.b16 %v717
        %v3126 = vunpack.c.l.b16 %v718
        %v3127 = vunpack.c.h.b16 %v718
        %v3128 = vunpack.c.l.b16 %v719
        %v3129 = vunpack.c.h.b16 %v719
        %v3130 = vunpack.c.l.b16 %v720
        %v3131 = vunpack.c.h.b16 %v720
        %v3132 = vunpack.c.l.b16 %v721
        %v3133 = vunpack.c.h.b16 %v721
        %v3134 = vunpack.c.l.b16 %v722
        %v3135 = vunpack.c.h.b16 %v722
        %v3136 = vunpack.c.l.b16 %v723
        %v3137 = vunpack.c.h.b16 %v723
        %v3138 = vunpack.c.l.b16 %v724
        %v3139 = vunpack.c.h.b16 %v724
        %v3140 = vunpack.c.l.b16 %v725
        %v3141 = vunpack.c.h.b16 %v725
        %v3142 = vunpack.c.l.b16 %v726
        %v3143 = vunpack.c.h.b16 %v726
        %v3144 = vunpack.c.l.b16 %v727
        %v3145 = vunpack.c.h.b16 %v727
        %v3146 = vunpack.c.l.b16 %v728
        %v3147 = vunpack.c.h.b16 %v728
        %v3148 = vunpack.c.l.b16 %v729
        %v3149 = vunpack.c.h.b16 %v729
        %v3150 = vunpack.c.l.b16 %v730
        %v3151 = vunpack.c.h.b16 %v730
        %v3152 = vunpack.c.l.b16 %v731
        %v3153 = vunpack.c.h.b16 %v731
        %v3154 = vunpack.c.l.b16 %v732
        %v3155 = vunpack.c.h.b16 %v732
        %v3156 = vunpack.c.l.b16 %v733
        %v3157 = vunpack.c.h.b16 %v733
        %v3158 = vunpack.c.l.b16 %v734
        %v3159 = vunpack.c.h.b16 %v734
        %v3160 = vunpack.c.l.b16 %v735
        %v3161 = vunpack.c.h.b16 %v735
        %v3162 = vunpack.c.l.b16 %v736
        %v3163 = vunpack.c.h.b16 %v736
        %v3164 = vunpack.c.l.b16 %v737
        %v3165 = vunpack.c.h.b16 %v737
        %v3166 = vunpack.c.l.b16 %v738
        %v3167 = vunpack.c.h.b16 %v738
        %v3168 = vunpack.c.l.b16 %v739
        %v3169 = vunpack.c.h.b16 %v739
        %v3170 = vunpack.c.l.b16 %v740
        %v3171 = vunpack.c.h.b16 %v740
        %v3172 = vunpack.c.l.b16 %v741
        %v3173 = vunpack.c.h.b16 %v741
        %v3174 = vunpack.c.l.b16 %v742
        %v3175 = vunpack.c.h.b16 %v742
        %v3176 = vunpack.c.l.b16 %v743
        %v3177 = vunpack.c.h.b16 %v743
        %v3178 = vunpack.c.l.b16 %v744
        %v3179 = vunpack.c.h.b16 %v744
        %v3180 = vunpack.c.l.b16 %v745
        %v3181 = vunpack.c.h.b16 %v745
        %v3182 = vunpack.c.l.b16 %v746
        %v3183 = vunpack.c.h.b16 %v746
        %v3184 = vunpack.c.l.b16 %v747
        %v3185 = vunpack.c.h.b16 %v747
        %v3186 = vunpack.c.l.b16 %v748
        %v3187 = vunpack.c.h.b16 %v748
        %v3188 = vunpack.c.l.b16 %v749
        %v3189 = vunpack.c.h.b16 %v749
        %v3190 = vunpack.c.l.b16 %v750
        %v3191 = vunpack.c.h.b16 %v750
        %v3192 = vunpack.c.l.b16 %v751
        %v3193 = vunpack.c.h.b16 %v751
        %v3194 = vunpack.c.l.b16 %v752
        %v3195 = vunpack.c.h.b16 %v752
        %v3196 = vunpack.c.l.b16 %v753
        %v3197 = vunpack.c.h.b16 %v753
        %v3198 = vunpack.c.l.b16 %v754
        %v3199 = vunpack.c.h.b16 %v754
        %v3200 = vunpack.c.l.b16 %v755
        %v3201 = vunpack.c.h.b16 %v755
        %v3202 = vunpack.c.l.b16 %v756
        %v3203 = vunpack.c.h.b16 %v756
        %v3204 = vunpack.c.l.b16 %v757
        %v3205 = vunpack.c.h.b16 %v757
        %v3206 = vunpack.c.l.b16 %v758
        %v3207 = vunpack.c.h.b16 %v758
        %v3208 = vunpack.c.l.b16 %v759
        %v3209 = vunpack.c.h.b16 %v759
        %v3210 = vunpack.c.l.b16 %v760
        %v3211 = vunpack.c.h.b16 %v760
        %v3212 = vunpack.c.l.b16 %v761
        %v3213 = vunpack.c.h.b16 %v761
        %v3214 = vunpack.c.l.b16 %v762
        %v3215 = vunpack.c.h.b16 %v762
        %v3216 = vunpack.c.l.b16 %v763
        %v3217 = vunpack.c.h.b16 %v763
        %v3218 = vunpack.c.l.b16 %v764
        %v3219 = vunpack.c.h.b16 %v764
        %v3220 = vunpack.c.l.b16 %v765
        %v3221 = vunpack.c.h.b16 %v765
        %v3222 = vunpack.c.l.b16 %v766
        %v3223 = vunpack.c.h.b16 %v766
        %v3224 = vunpack.c.l.b16 %v767
        %v3225 = vunpack.c.h.b16 %v767
        %v3226 = vunpack.c.l.b16 %v768
        %v3227 = vunpack.c.h.b16 %v768
        %v3228 = vunpack.c.l.b16 %v769
        %v3229 = vunpack.c.h.b16 %v769
        %v3230 = vunpack.c.l.b16 %v770
        %v3231 = vunpack.c.h.b16 %v770
        %v3232 = vunpack.c.l.b16 %v771
        %v3233 = vunpack.c.h.b16 %v771
        %v3234 = vunpack.c.l.b16 %v772
        %v3235 = vunpack.c.h.b16 %v772
        %v3236 = vunpack.c.l.b16 %v773
        %v3237 = vunpack.c.h.b16 %v773
        %v3238 = vunpack.c.l.b16 %v774
        %v3239 = vunpack.c.h.b16 %v774
        %v3240 = vunpack.c.l.b16 %v775
        %v3241 = vunpack.c.h.b16 %v775
        %v3242 = vunpack.c.l.b16 %v776
        %v3243 = vunpack.c.h.b16 %v776
        %v3244 = vunpack.c.l.b16 %v777
        %v3245 = vunpack.c.h.b16 %v777
        %v3246 = vunpack.c.l.b16 %v778
        %v3247 = vunpack.c.h.b16 %v778
        %v3248 = vunpack.c.l.b16 %v779
        %v3249 = vunpack.c.h.b16 %v779
        %v3250 = vunpack.c.l.b16 %v780
        %v3251 = vunpack.c.h.b16 %v780
        %v3252 = vunpack.c.l.b16 %v781
        %v3253 = vunpack.c.h.b16 %v781
        %v3254 = vunpack.c.l.b16 %v782
        %v3255 = vunpack.c.h.b16 %v782
        %v3256 = vunpack.c.l.b16 %v783
        %v3257 = vunpack.c.h.b16 %v783
        %v3258 = vunpack.c.l.b16 %v784
        %v3259 = vunpack.c.h.b16 %v784
        %v3260 = vunpack.c.l.b16 %v785
        %v3261 = vunpack.c.h.b16 %v785
        %v3262 = vunpack.c.l.b16 %v786
        %v3263 = vunpack.c.h.b16 %v786
        %v3264 = vunpack.c.l.b16 %v787
        %v3265 = vunpack.c.h.b16 %v787
        %v3266 = vunpack.c.l.b16 %v788
        %v3267 = vunpack.c.h.b16 %v788
        %v3268 = vunpack.c.l.b16 %v789
        %v3269 = vunpack.c.h.b16 %v789
        %v3270 = vunpack.c.l.b16 %v790
        %v3271 = vunpack.c.h.b16 %v790
        %v3272 = vunpack.c.l.b16 %v791
        %v3273 = vunpack.c.h.b16 %v791
        %v3274 = vunpack.c.l.b16 %v792
        %v3275 = vunpack.c.h.b16 %v792
        %v3276 = vunpack.c.l.b16 %v793
        %v3277 = vunpack.c.h.b16 %v793
        %v3278 = vunpack.c.l.b16 %v794
        %v3279 = vunpack.c.h.b16 %v794
        %v3280 = vunpack.c.l.b16 %v795
        %v3281 = vunpack.c.h.b16 %v795
        %v3282 = vunpack.c.l.b16 %v796
        %v3283 = vunpack.c.h.b16 %v796
        %v3284 = vunpack.c.l.b16 %v797
        %v3285 = vunpack.c.h.b16 %v797
        %v3286 = vunpack.c.l.b16 %v798
        %v3287 = vunpack.c.h.b16 %v798
        %v3288 = vunpack.c.l.b16 %v799
        %v3289 = vunpack.c.h.b16 %v799
        %v3290 = vunpack.c.l.b16 %v800
        %v3291 = vunpack.c.h.b16 %v800
        %v3292 = vunpack.c.l.b16 %v801
        %v3293 = vunpack.c.h.b16 %v801
        %v3294 = vunpack.c.l.b16 %v802
        %v3295 = vunpack.c.h.b16 %v802
        %v3296 = vunpack.c.l.b16 %v803
        %v3297 = vunpack.c.h.b16 %v803
        %v3298 = vunpack.c.l.b16 %v804
        %v3299 = vunpack.c.h.b16 %v804
        %v3300 = vunpack.c.l.b16 %v805
        %v3301 = vunpack.c.h.b16 %v805
        %v3302 = vunpack.c.l.b16 %v806
        %v3303 = vunpack.c.h.b16 %v806
        %v3304 = vunpack.c.l.b16 %v807
        %v3305 = vunpack.c.h.b16 %v807
        %v3306 = vunpack.c.l.b16 %v808
        %v3307 = vunpack.c.h.b16 %v808
        %v3308 = vunpack.c.l.b16 %v809
        %v3309 = vunpack.c.h.b16 %v809
        %v3310 = vunpack.c.l.b16 %v810
        %v3311 = vunpack.c.h.b16 %v810
        %v3312 = vunpack.c.l.b16 %v811
        %v3313 = vunpack.c.h.b16 %v811
        %v3314 = vunpack.c.l.b16 %v812
        %v3315 = vunpack.c.h.b16 %v812
        %v3316 = vunpack.c.l.b16 %v813
        %v3317 = vunpack.c.h.b16 %v813
        %v3318 = vunpack.c.l.b16 %v814
        %v3319 = vunpack.c.h.b16 %v814
        %v3320 = vunpack.c.l.b16 %v815
        %v3321 = vunpack.c.h.b16 %v815
        %v3322 = vunpack.c.l.b16 %v816
        %v3323 = vunpack.c.h.b16 %v816
        %v3324 = vunpack.c.l.b16 %v817
        %v3325 = vunpack.c.h.b16 %v817
        %v3326 = vunpack.c.l.b16 %v818
        %v3327 = vunpack.c.h.b16 %v818
        %v3328 = vunpack.c.l.b16 %v819
        %v3329 = vunpack.c.h.b16 %v819
        %v3330 = vunpack.c.l.b16 %v820
        %v3331 = vunpack.c.h.b16 %v820
        %v3332 = vunpack.c.l.b16 %v821
        %v3333 = vunpack.c.h.b16 %v821
        %v3334 = vunpack.c.l.b16 %v822
        %v3335 = vunpack.c.h.b16 %v822
        %v3336 = vunpack.c.l.b16 %v823
        %v3337 = vunpack.c.h.b16 %v823
        %v3338 = vunpack.c.l.b16 %v824
        %v3339 = vunpack.c.h.b16 %v824
        %v3340 = vunpack.c.l.b16 %v825
        %v3341 = vunpack.c.h.b16 %v825
        %v3342 = vunpack.c.l.b16 %v826
        %v3343 = vunpack.c.h.b16 %v826
        %v3344 = vunpack.c.l.b16 %v827
        %v3345 = vunpack.c.h.b16 %v827
        %v3346 = vunpack.c.l.b16 %v828
        %v3347 = vunpack.c.h.b16 %v828
        %v3348 = vunpack.c.l.b16 %v829
        %v3349 = vunpack.c.h.b16 %v829
        %v3350 = vunpack.c.l.b16 %v830
        %v3351 = vunpack.c.h.b16 %v830
        %v3352 = vunpack.c.l.b16 %v831
        %v3353 = vunpack.c.h.b16 %v831
        %v3354 = vunpack.c.l.b16 %v832
        %v3355 = vunpack.c.h.b16 %v832
        %v3356 = vunpack.c.l.b16 %v833
        %v3357 = vunpack.c.h.b16 %v833
        %v3358 = vunpack.c.l.b16 %v834
        %v3359 = vunpack.c.h.b16 %v834
        %v3360 = vunpack.c.l.b16 %v835
        %v3361 = vunpack.c.h.b16 %v835
        %v3362 = vunpack.c.l.b16 %v836
        %v3363 = vunpack.c.h.b16 %v836
        %v3364 = vunpack.c.l.b16 %v837
        %v3365 = vunpack.c.h.b16 %v837
        %v3366 = vunpack.c.l.b16 %v838
        %v3367 = vunpack.c.h.b16 %v838
        %v3368 = vunpack.c.l.b16 %v839
        %v3369 = vunpack.c.h.b16 %v839
        %v3370 = vunpack.c.l.b16 %v840
        %v3371 = vunpack.c.h.b16 %v840
        %v3372 = vunpack.c.l.b16 %v841
        %v3373 = vunpack.c.h.b16 %v841
        %v3374 = vunpack.c.l.b16 %v842
        %v3375 = vunpack.c.h.b16 %v842
        %v3376 = vunpack.c.l.b16 %v843
        %v3377 = vunpack.c.h.b16 %v843
        %v3378 = vunpack.c.l.b16 %v844
        %v3379 = vunpack.c.h.b16 %v844
        %v3380 = vunpack.c.l.b16 %v845
        %v3381 = vunpack.c.h.b16 %v845
        %v3382 = vunpack.c.l.b16 %v846
        %v3383 = vunpack.c.h.b16 %v846
        %v3384 = vunpack.c.l.b16 %v847
        %v3385 = vunpack.c.h.b16 %v847
        %v3386 = vunpack.c.l.b16 %v848
        %v3387 = vunpack.c.h.b16 %v848
        %v3388 = vunpack.c.l.b16 %v849
        %v3389 = vunpack.c.h.b16 %v849
        %v3390 = vunpack.c.l.b16 %v850
        %v3391 = vunpack.c.h.b16 %v850
        %v3392 = vunpack.c.l.b16 %v851
        %v3393 = vunpack.c.h.b16 %v851
        %v3394 = vunpack.c.l.b16 %v852
        %v3395 = vunpack.c.h.b16 %v852
        %v3396 = vunpack.c.l.b16 %v853
        %v3397 = vunpack.c.h.b16 %v853
        %v3398 = vunpack.c.l.b16 %v854
        %v3399 = vunpack.c.h.b16 %v854
        %v3400 = vunpack.c.l.b16 %v855
        %v3401 = vunpack.c.h.b16 %v855
        %v3402 = vunpack.c.l.b16 %v856
        %v3403 = vunpack.c.h.b16 %v856
        %v3404 = vunpack.c.l.b16 %v857
        %v3405 = vunpack.c.h.b16 %v857
        %v3406 = vunpack.c.l.b16 %v858
        %v3407 = vunpack.c.h.b16 %v858
        %v3408 = vunpack.c.l.b16 %v859
        %v3409 = vunpack.c.h.b16 %v859
        %v3410 = vunpack.c.l.b16 %v860
        %v3411 = vunpack.c.h.b16 %v860
        %v3412 = vunpack.c.l.b16 %v861
        %v3413 = vunpack.c.h.b16 %v861
        %v3414 = vunpack.c.l.b16 %v862
        %v3415 = vunpack.c.h.b16 %v862
        %v3416 = vunpack.c.l.b16 %v863
        %v3417 = vunpack.c.h.b16 %v863
        %v3418 = vunpack.c.l.b16 %v864
        %v3419 = vunpack.c.h.b16 %v864
        %v3420 = vunpack.c.l.b16 %v865
        %v3421 = vunpack.c.h.b16 %v865
        %v3422 = vunpack.c.l.b16 %v866
        %v3423 = vunpack.c.h.b16 %v866
        %v3424 = vunpack.c.l.b16 %v867
        %v3425 = vunpack.c.h.b16 %v867
        %v3426 = vunpack.c.l.b16 %v868
        %v3427 = vunpack.c.h.b16 %v868
        %v3428 = vunpack.c.l.b16 %v869
        %v3429 = vunpack.c.h.b16 %v869
        %v3430 = vunpack.c.l.b16 %v870
        %v3431 = vunpack.c.h.b16 %v870
        %v3432 = vunpack.c.l.b16 %v871
        %v3433 = vunpack.c.h.b16 %v871
        %v3434 = vunpack.c.l.b16 %v872
        %v3435 = vunpack.c.h.b16 %v872
        %v3436 = vunpack.c.l.b16 %v873
        %v3437 = vunpack.c.h.b16 %v873
        %v3438 = vunpack.c.l.b16 %v874
        %v3439 = vunpack.c.h.b16 %v874
        %v3440 = vunpack.c.l.b16 %v875
        %v3441 = vunpack.c.h.b16 %v875
        %v3442 = vunpack.c.l.b16 %v876
        %v3443 = vunpack.c.h.b16 %v876
        %v3444 = vunpack.c.l.b16 %v877
        %v3445 = vunpack.c.h.b16 %v877
        %v3446 = vunpack.c.l.b16 %v878
        %v3447 = vunpack.c.h.b16 %v878
        %v3448 = vunpack.c.l.b16 %v879
        %v3449 = vunpack.c.h.b16 %v879
        %v3450 = vunpack.c.l.b16 %v880
        %v3451 = vunpack.c.h.b16 %v880
        %v3452 = vunpack.c.l.b16 %v881
        %v3453 = vunpack.c.h.b16 %v881
        %v3454 = vunpack.c.l.b16 %v882
        %v3455 = vunpack.c.h.b16 %v882
        %v3456 = vunpack.c.l.b16 %v883
        %v3457 = vunpack.c.h.b16 %v883
        %v3458 = vunpack.c.l.b16 %v884
        %v3459 = vunpack.c.h.b16 %v884
        %v3460 = vunpack.c.l.b16 %v885
        %v3461 = vunpack.c.h.b16 %v885
        %v3462 = vunpack.c.l.b16 %v886
        %v3463 = vunpack.c.h.b16 %v886
        %v3464 = vunpack.c.l.b16 %v887
        %v3465 = vunpack.c.h.b16 %v887
        %v3466 = vunpack.c.l.b16 %v888
        %v3467 = vunpack.c.h.b16 %v888
        %v3468 = vunpack.c.l.b16 %v889
        %v3469 = vunpack.c.h.b16 %v889
        %v3470 = vunpack.c.l.b16 %v890
        %v3471 = vunpack.c.h.b16 %v890
        %v3472 = vunpack.c.l.b16 %v891
        %v3473 = vunpack.c.h.b16 %v891
        %v3474 = vunpack.c.l.b16 %v892
        %v3475 = vunpack.c.h.b16 %v892
        %v3476 = vunpack.c.l.b16 %v893
        %v3477 = vunpack.c.h.b16 %v893
        %v3478 = vunpack.c.l.b16 %v894
        %v3479 = vunpack.c.h.b16 %v894
        %v3480 = vunpack.c.l.b16 %v895
        %v3481 = vunpack.c.h.b16 %v895
        %v3482 = vunpack.c.l.b16 %v896
        %v3483 = vunpack.c.h.b16 %v896
        %v3484 = vunpack.c.l.b16 %v897
        %v3485 = vunpack.c.h.b16 %v897
        %v3486 = vunpack.c.l.b16 %v898
        %v3487 = vunpack.c.h.b16 %v898
        %v3488 = vunpack.c.l.b16 %v899
        %v3489 = vunpack.c.h.b16 %v899
        %v3490 = vunpack.c.l.b16 %v900
        %v3491 = vunpack.c.h.b16 %v900
        %v3492 = vunpack.c.l.b16 %v901
        %v3493 = vunpack.c.h.b16 %v901
        %v3494 = vunpack.c.l.b16 %v902
        %v3495 = vunpack.c.h.b16 %v902
        %v3496 = vunpack.c.l.b16 %v903
        %v3497 = vunpack.c.h.b16 %v903
        %v3498 = vunpack.c.l.b16 %v904
        %v3499 = vunpack.c.h.b16 %v904
        %v3500 = vunpack.c.l.b16 %v905
        %v3501 = vunpack.c.h.b16 %v905
        %v3502 = vunpack.c.l.b16 %v906
        %v3503 = vunpack.c.h.b16 %v906
        %v3504 = vunpack.c.l.b16 %v907
        %v3505 = vunpack.c.h.b16 %v907
        %v3506 = vunpack.c.l.b16 %v908
        %v3507 = vunpack.c.h.b16 %v908
        %v3508 = vunpack.c.l.b16 %v909
        %v3509 = vunpack.c.h.b16 %v909
        %v3510 = vunpack.c.l.b16 %v910
        %v3511 = vunpack.c.h.b16 %v910
        %v3512 = vunpack.c.l.b16 %v911
        %v3513 = vunpack.c.h.b16 %v911
        %v3514 = vunpack.c.l.b16 %v912
        %v3515 = vunpack.c.h.b16 %v912
        %v3516 = vunpack.c.l.b16 %v913
        %v3517 = vunpack.c.h.b16 %v913
        %v3518 = vunpack.c.l.b16 %v914
        %v3519 = vunpack.c.h.b16 %v914
        %v3520 = vunpack.c.l.b16 %v915
        %v3521 = vunpack.c.h.b16 %v915
        %v3522 = vunpack.c.l.b16 %v916
        %v3523 = vunpack.c.h.b16 %v916
        %v3524 = vunpack.c.l.b16 %v917
        %v3525 = vunpack.c.h.b16 %v917
        %v3526 = vunpack.c.l.b16 %v918
        %v3527 = vunpack.c.h.b16 %v918
        %v3528 = vunpack.c.l.b16 %v919
        %v3529 = vunpack.c.h.b16 %v919
        %v3530 = vunpack.c.l.b16 %v920
        %v3531 = vunpack.c.h.b16 %v920
        %v3532 = vunpack.c.l.b16 %v921
        %v3533 = vunpack.c.h.b16 %v921
        %v3534 = vunpack.c.l.b16 %v922
        %v3535 = vunpack.c.h.b16 %v922
        %v3536 = vunpack.c.l.b16 %v923
        %v3537 = vunpack.c.h.b16 %v923
        %v3538 = vunpack.c.l.b16 %v924
        %v3539 = vunpack.c.h.b16 %v924
        %v3540 = vunpack.c.l.b16 %v925
        %v3541 = vunpack.c.h.b16 %v925
        %v3542 = vunpack.c.l.b16 %v926
        %v3543 = vunpack.c.h.b16 %v926
        %v3544 = vunpack.c.l.b16 %v927
        %v3545 = vunpack.c.h.b16 %v927
        %v3546 = vunpack.c.l.b16 %v928
        %v3547 = vunpack.c.h.b16 %v928
        %v3548 = vunpack.c.l.b16 %v929
        %v3549 = vunpack.c.h.b16 %v929
        %v3550 = vunpack.c.l.b16 %v930
        %v3551 = vunpack.c.h.b16 %v930
        %v3552 = vunpack.c.l.b16 %v931
        %v3553 = vunpack.c.h.b16 %v931
        %v3554 = vunpack.c.l.b16 %v932
        %v3555 = vunpack.c.h.b16 %v932
        %v3556 = vunpack.c.l.b16 %v933
        %v3557 = vunpack.c.h.b16 %v933
        %v3558 = vunpack.c.l.b16 %v934
        %v3559 = vunpack.c.h.b16 %v934
        %v3560 = vunpack.c.l.b16 %v935
        %v3561 = vunpack.c.h.b16 %v935
        %v3562 = vunpack.c.l.b16 %v936
        %v3563 = vunpack.c.h.b16 %v936
        %v3564 = vunpack.c.l.b16 %v937
        %v3565 = vunpack.c.h.b16 %v937
        %v3566 = vunpack.c.l.b16 %v938
        %v3567 = vunpack.c.h.b16 %v938
        %v3568 = vunpack.c.l.b16 %v939
        %v3569 = vunpack.c.h.b16 %v939
        %v3570 = vunpack.c.l.b16 %v940
        %v3571 = vunpack.c.h.b16 %v940
        %v3572 = vunpack.c.l.b16 %v941
        %v3573 = vunpack.c.h.b16 %v941
        %v3574 = vunpack.c.l.b16 %v942
        %v3575 = vunpack.c.h.b16 %v942
        %v3576 = vunpack.c.l.b16 %v943
        %v3577 = vunpack.c.h.b16 %v943
        %v3578 = vunpack.c.l.b16 %v944
        %v3579 = vunpack.c.h.b16 %v944
        %v3580 = vunpack.c.l.b16 %v945
        %v3581 = vunpack.c.h.b16 %v945
        %v3582 = vunpack.c.l.b16 %v946
        %v3583 = vunpack.c.h.b16 %v946
        %v3584 = vunpack.c.l.b16 %v947
        %v3585 = vunpack.c.h.b16 %v947
        %v3586 = vunpack.c.l.b16 %v948
        %v3587 = vunpack.c.h.b16 %v948
        %v3588 = vunpack.c.l.b16 %v949
        %v3589 = vunpack.c.h.b16 %v949
        %v3590 = vunpack.c.l.b16 %v950
        %v3591 = vunpack.c.h.b16 %v950
        %v3592 = vunpack.c.l.b16 %v951
        %v3593 = vunpack.c.h.b16 %v951
        %v3594 = vunpack.c.l.b16 %v952
        %v3595 = vunpack.c.h.b16 %v952
        %v3596 = vunpack.c.l.b16 %v953
        %v3597 = vunpack.c.h.b16 %v953
        %v3598 = vunpack.c.l.b16 %v954
        %v3599 = vunpack.c.h.b16 %v954
        %v3600 = vunpack.c.l.b16 %v955
        %v3601 = vunpack.c.h.b16 %v955
        %v3602 = vunpack.c.l.b16 %v956
        %v3603 = vunpack.c.h.b16 %v956
        %v3604 = vunpack.c.l.b16 %v957
        %v3605 = vunpack.c.h.b16 %v957
        %v3606 = vunpack.c.l.b16 %v958
        %v3607 = vunpack.c.h.b16 %v958
        %v3608 = vunpack.c.l.b16 %v959
        %v3609 = vunpack.c.h.b16 %v959
        %v3610 = vunpack.c.l.b16 %v960
        %v3611 = vunpack.c.h.b16 %v960
        %v3612 = vunpack.c.l.b16 %v961
        %v3613 = vunpack.c.h.b16 %v961
        %v3614 = vunpack.c.l.b16 %v962
        %v3615 = vunpack.c.h.b16 %v962
        %v3616 = vunpack.c.l.b16 %v963
        %v3617 = vunpack.c.h.b16 %v963
        %v3618 = vunpack.c.l.b16 %v964
        %v3619 = vunpack.c.h.b16 %v964
        %v3620 = vunpack.c.l.b16 %v965
        %v3621 = vunpack.c.h.b16 %v965
        %v3622 = vunpack.c.l.b16 %v966
        %v3623 = vunpack.c.h.b16 %v966
        %v3624 = vunpack.c.l.b16 %v967
        %v3625 = vunpack.c.h.b16 %v967
        %v3626 = vunpack.c.l.b16 %v968
        %v3627 = vunpack.c.h.b16 %v968
        %v3628 = vunpack.c.l.b16 %v969
        %v3629 = vunpack.c.h.b16 %v969
        %v3630 = vunpack.c.l.b16 %v970
        %v3631 = vunpack.c.h.b16 %v970
        %v3632 = vunpack.c.l.b16 %v971
        %v3633 = vunpack.c.h.b16 %v971
        %v3634 = vunpack.c.l.b16 %v972
        %v3635 = vunpack.c.h.b16 %v972
        %v3636 = vunpack.c.l.b16 %v973
        %v3637 = vunpack.c.h.b16 %v973
        %v3638 = vunpack.c.l.b16 %v974
        %v3639 = vunpack.c.h.b16 %v974
        %v3640 = vunpack.c.l.b16 %v975
        %v3641 = vunpack.c.h.b16 %v975
        %v3642 = vunpack.c.l.b16 %v976
        %v3643 = vunpack.c.h.b16 %v976
        %v3644 = vunpack.c.l.b16 %v977
        %v3645 = vunpack.c.h.b16 %v977
        %v3646 = vunpack.c.l.b16 %v978
        %v3647 = vunpack.c.h.b16 %v978
        %v3648 = vunpack.c.l.b16 %v979
        %v3649 = vunpack.c.h.b16 %v979
        %v3650 = vunpack.c.l.b16 %v980
        %v3651 = vunpack.c.h.b16 %v980
        %v3652 = vunpack.c.l.b16 %v981
        %v3653 = vunpack.c.h.b16 %v981
        %v3654 = vunpack.c.l.b16 %v982
        %v3655 = vunpack.c.h.b16 %v982
        %v3656 = vunpack.c.l.b16 %v983
        %v3657 = vunpack.c.h.b16 %v983
        %v3658 = vunpack.c.l.b16 %v984
        %v3659 = vunpack.c.h.b16 %v984
        %v3660 = vunpack.c.l.b16 %v985
        %v3661 = vunpack.c.h.b16 %v985
        %v3662 = vunpack.c.l.b16 %v986
        %v3663 = vunpack.c.h.b16 %v986
        %v3664 = vunpack.c.l.b16 %v987
        %v3665 = vunpack.c.h.b16 %v987
        %v3666 = vunpack.c.l.b16 %v988
        %v3667 = vunpack.c.h.b16 %v988
        %v3668 = vunpack.c.l.b16 %v989
        %v3669 = vunpack.c.h.b16 %v989
        %v3670 = vunpack.c.l.b16 %v990
        %v3671 = vunpack.c.h.b16 %v990
        %v3672 = vunpack.c.l.b16 %v991
        %v3673 = vunpack.c.h.b16 %v991
        %v3674 = vunpack.c.l.b16 %v992
        %v3675 = vunpack.c.h.b16 %v992
        %v3676 = vunpack.c.l.b16 %v993
        %v3677 = vunpack.c.h.b16 %v993
        %v3678 = vunpack.c.l.b16 %v994
        %v3679 = vunpack.c.h.b16 %v994
        %v3680 = vunpack.c.l.b16 %v995
        %v3681 = vunpack.c.h.b16 %v995
        %v3682 = vunpack.c.l.b16 %v996
        %v3683 = vunpack.c.h.b16 %v996
        %v3684 = vunpack.c.l.b16 %v997
        %v3685 = vunpack.c.h.b16 %v997
        %v3686 = vunpack.c.l.b16 %v998
        %v3687 = vunpack.c.h.b16 %v998
        %v3688 = vunpack.c.l.b16 %v999
        %v3689 = vunpack.c.h.b16 %v999
        %v3690 = vunpack.c.l.b16 %v1000
        %v3691 = vunpack.c.h.b16 %v1000
        %v3692 = vunpack.c.l.b16 %v1001
        %v3693 = vunpack.c.h.b16 %v1001
        %v3694 = vunpack.c.l.b16 %v1002
        %v3695 = vunpack.c.h.b16 %v1002
        %v3696 = vunpack.c.l.b16 %v1003
        %v3697 = vunpack.c.h.b16 %v1003
        %v3698 = vunpack.c.l.b16 %v1004
        %v3699 = vunpack.c.h.b16 %v1004
        %v3700 = vunpack.c.l.b16 %v1005
        %v3701 = vunpack.c.h.b16 %v1005
        %v3702 = vunpack.c.l.b16 %v1006
        %v3703 = vunpack.c.h.b16 %v1006
        %v3704 = vunpack.c.l.b16 %v1007
        %v3705 = vunpack.c.h.b16 %v1007
        %v3706 = vunpack.c.l.b16 %v1008
        %v3707 = vunpack.c.h.b16 %v1008
        %v3708 = vunpack.c.l.b16 %v1009
        %v3709 = vunpack.c.h.b16 %v1009
        %v3710 = vunpack.c.l.b16 %v1010
        %v3711 = vunpack.c.h.b16 %v1010
        %v3712 = vunpack.c.l.b16 %v1011
        %v3713 = vunpack.c.h.b16 %v1011
        %v3714 = vunpack.c.l.b16 %v1012
        %v3715 = vunpack.c.h.b16 %v1012
        %v3716 = vunpack.c.l.b16 %v1013
        %v3717 = vunpack.c.h.b16 %v1013
        %v3718 = vunpack.c.l.b16 %v1014
        %v3719 = vunpack.c.h.b16 %v1014
        %v3720 = vunpack.c.l.b16 %v1015
        %v3721 = vunpack.c.h.b16 %v1015
        %v3722 = vunpack.c.l.b16 %v1016
        %v3723 = vunpack.c.h.b16 %v1016
        %v3724 = vunpack.c.l.b16 %v1017
        %v3725 = vunpack.c.h.b16 %v1017
        %v3726 = vunpack.c.l.b16 %v1018
        %v3727 = vunpack.c.h.b16 %v1018
        %v3728 = vunpack.c.l.b16 %v1019
        %v3729 = vunpack.c.h.b16 %v1019
        %v3730 = vunpack.c.l.b16 %v1020
        %v3731 = vunpack.c.h.b16 %v1020
        %v3732 = vunpack.c.l.b16 %v1021
        %v3733 = vunpack.c.h.b16 %v1021
        %v3734 = vunpack.c.l.b16 %v1022
        %v3735 = vunpack.c.h.b16 %v1022
        %v3736 = vunpack.c.l.b16 %v1023
        %v3737 = vunpack.c.h.b16 %v1023
        %v3738 = vunpack.c.l.b16 %v1024
        %v3739 = vunpack.c.h.b16 %v1024
        %v3740 = vunpack.c.l.b16 %v1025
        %v3741 = vunpack.c.h.b16 %v1025
        %v3742 = vunpack.c.l.b16 %v1026
        %v3743 = vunpack.c.h.b16 %v1026
        %v3744 = vunpack.c.l.b16 %v1027
        %v3745 = vunpack.c.h.b16 %v1027
        %v3746 = vunpack.c.l.b16 %v1028
        %v3747 = vunpack.c.h.b16 %v1028
        %v3748 = vunpack.c.l.b16 %v1029
        %v3749 = vunpack.c.h.b16 %v1029
        %v3750 = vunpack.c.l.b16 %v1030
        %v3751 = vunpack.c.h.b16 %v1030
        %v3752 = vunpack.c.l.b16 %v1031
        %v3753 = vunpack.c.h.b16 %v1031
        %v3754 = vunpack.c.l.b16 %v1032
        %v3755 = vunpack.c.h.b16 %v1032
        %v3756 = vunpack.c.l.b16 %v1033
        %v3757 = vunpack.c.h.b16 %v1033
        %v3758 = vunpack.c.l.b16 %v1034
        %v3759 = vunpack.c.h.b16 %v1034
        %v3760 = vunpack.c.l.b16 %v1035
        %v3761 = vunpack.c.h.b16 %v1035
        %v3762 = vunpack.c.l.b16 %v1036
        %v3763 = vunpack.c.h.b16 %v1036
        %v3764 = vunpack.c.l.b16 %v1037
        %v3765 = vunpack.c.h.b16 %v1037
        %v3766 = vunpack.c.l.b16 %v1038
        %v3767 = vunpack.c.h.b16 %v1038
        %v3768 = vunpack.c.l.b16 %v1039
        %v3769 = vunpack.c.h.b16 %v1039
        %v3770 = vunpack.c.l.b16 %v1040
        %v3771 = vunpack.c.h.b16 %v1040
        %v3772 = vunpack.c.l.b16 %v1041
        %v3773 = vunpack.c.h.b16 %v1041
        %v3774 = vunpack.c.l.b16 %v1042
        %v3775 = vunpack.c.h.b16 %v1042
        %v3776 = vunpack.c.l.b16 %v1043
        %v3777 = vunpack.c.h.b16 %v1043
        %v3778 = vunpack.c.l.b16 %v1044
        %v3779 = vunpack.c.h.b16 %v1044
        %v3780 = vunpack.c.l.b16 %v1045
        %v3781 = vunpack.c.h.b16 %v1045
        %v3782 = vunpack.c.l.b16 %v1046
        %v3783 = vunpack.c.h.b16 %v1046
        %v3784 = vunpack.c.l.b16 %v1047
        %v3785 = vunpack.c.h.b16 %v1047
        %v3786 = vunpack.c.l.b16 %v1048
        %v3787 = vunpack.c.h.b16 %v1048
        %v3788 = vunpack.c.l.b16 %v1049
        %v3789 = vunpack.c.h.b16 %v1049
        %v3790 = vunpack.c.l.b16 %v1050
        %v3791 = vunpack.c.h.b16 %v1050
        %v3792 = vunpack.c.l.b16 %v1051
        %v3793 = vunpack.c.h.b16 %v1051
        %v3794 = vunpack.c.l.b16 %v1052
        %v3795 = vunpack.c.h.b16 %v1052
        %v3796 = vunpack.c.l.b16 %v1053
        %v3797 = vunpack.c.h.b16 %v1053
        %v3798 = vunpack.c.l.b16 %v1054
        %v3799 = vunpack.c.h.b16 %v1054
        %v3800 = vunpack.c.l.b16 %v1055
        %v3801 = vunpack.c.h.b16 %v1055
        %v3802 = vunpack.c.l.b16 %v1056
        %v3803 = vunpack.c.h.b16 %v1056
        %v3804 = vunpack.c.l.b16 %v1057
        %v3805 = vunpack.c.h.b16 %v1057
        %v3806 = vunpack.c.l.b16 %v1058
        %v3807 = vunpack.c.h.b16 %v1058
        %v3808 = vunpack.c.l.b16 %v1059
        %v3809 = vunpack.c.h.b16 %v1059
        %v3810 = vunpack.c.l.b16 %v1060
        %v3811 = vunpack.c.h.b16 %v1060
        %v3812 = vunpack.c.l.b16 %v1061
        %v3813 = vunpack.c.h.b16 %v1061
        %v3814 = vunpack.c.l.b16 %v1062
        %v3815 = vunpack.c.h.b16 %v1062
        %v3816 = vunpack.c.l.b16 %v1063
        %v3817 = vunpack.c.h.b16 %v1063
        %v3818 = vunpack.c.l.b16 %v1064
        %v3819 = vunpack.c.h.b16 %v1064
        %v3820 = vunpack.c.l.b16 %v1065
        %v3821 = vunpack.c.h.b16 %v1065
        %v3822 = vunpack.c.l.b16 %v1066
        %v3823 = vunpack.c.h.b16 %v1066
        %v3824 = vunpack.c.l.b16 %v1067
        %v3825 = vunpack.c.h.b16 %v1067
        %v3826 = vunpack.c.l.b16 %v1068
        %v3827 = vunpack.c.h.b16 %v1068
        %v3828 = vunpack.c.l.b16 %v1069
        %v3829 = vunpack.c.h.b16 %v1069
        %v3830 = vunpack.c.l.b16 %v1070
        %v3831 = vunpack.c.h.b16 %v1070
        %v3832 = vunpack.c.l.b16 %v1071
        %v3833 = vunpack.c.h.b16 %v1071
        %v3834 = vunpack.c.l.b16 %v1072
        %v3835 = vunpack.c.h.b16 %v1072
        %v3836 = vunpack.c.l.b16 %v1073
        %v3837 = vunpack.c.h.b16 %v1073
        %v3838 = vunpack.c.l.b16 %v1074
        %v3839 = vunpack.c.h.b16 %v1074
        %v3840 = vunpack.c.l.b16 %v1075
        %v3841 = vunpack.c.h.b16 %v1075
        %v3842 = vunpack.c.l.b16 %v1076
        %v3843 = vunpack.c.h.b16 %v1076
        %v3844 = vunpack.c.l.b16 %v1077
        %v3845 = vunpack.c.h.b16 %v1077
        %v3846 = vunpack.c.l.b16 %v1078
        %v3847 = vunpack.c.h.b16 %v1078
        %v3848 = vunpack.c.l.b16 %v1079
        %v3849 = vunpack.c.h.b16 %v1079
        %v3850 = vunpack.c.l.b16 %v1080
        %v3851 = vunpack.c.h.b16 %v1080
        %v3852 = vunpack.c.l.b16 %v1081
        %v3853 = vunpack.c.h.b16 %v1081
        %v3854 = vunpack.c.l.b16 %v1082
        %v3855 = vunpack.c.h.b16 %v1082
        %v3856 = vunpack.c.l.b16 %v1083
        %v3857 = vunpack.c.h.b16 %v1083
        %v3858 = vunpack.c.l.b16 %v1084
        %v3859 = vunpack.c.h.b16 %v1084
        %v3860 = vunpack.c.l.b16 %v1085
        %v3861 = vunpack.c.h.b16 %v1085
        %v3862 = vunpack.c.l.b16 %v1086
        %v3863 = vunpack.c.h.b16 %v1086
        %v3864 = vunpack.c.l.b16 %v1087
        %v3865 = vunpack.c.h.b16 %v1087
        %v3866 = vunpack.c.l.b16 %v1088
        %v3867 = vunpack.c.h.b16 %v1088
        %v3868 = vunpack.c.l.b16 %v1089
        %v3869 = vunpack.c.h.b16 %v1089
        %v3870 = vunpack.c.l.b16 %v1090
        %v3871 = vunpack.c.h.b16 %v1090
        %v3872 = vunpack.c.l.b16 %v1091
        %v3873 = vunpack.c.h.b16 %v1091
        %v3874 = vunpack.c.l.b16 %v1092
        %v3875 = vunpack.c.h.b16 %v1092
        %v3876 = vunpack.c.l.b16 %v1093
        %v3877 = vunpack.c.h.b16 %v1093
        %v3878 = vunpack.c.l.b16 %v1094
        %v3879 = vunpack.c.h.b16 %v1094
        %v3880 = vunpack.c.l.b16 %v1095
        %v3881 = vunpack.c.h.b16 %v1095
        %v3882 = vunpack.c.l.b16 %v1096
        %v3883 = vunpack.c.h.b16 %v1096
        %v3884 = vunpack.c.l.b16 %v1097
        %v3885 = vunpack.c.h.b16 %v1097
        %v3886 = vunpack.c.l.b16 %v1098
        %v3887 = vunpack.c.h.b16 %v1098
        %v3888 = vunpack.c.l.b16 %v1099
        %v3889 = vunpack.c.h.b16 %v1099
        %v3890 = vunpack.c.l.b16 %v1100
        %v3891 = vunpack.c.h.b16 %v1100
        %v3892 = vunpack.c.l.b16 %v1101
        %v3893 = vunpack.c.h.b16 %v1101
        %v3894 = vunpack.c.l.b16 %v1102
        %v3895 = vunpack.c.h.b16 %v1102
        %v3896 = vunpack.c.l.b16 %v1103
        %v3897 = vunpack.c.h.b16 %v1103
        %v3898 = vunpack.c.l.b16 %v1104
        %v3899 = vunpack.c.h.b16 %v1104
        %v3900 = vunpack.c.l.b16 %v1105
        %v3901 = vunpack.c.h.b16 %v1105
        %v3902 = vunpack.c.l.b16 %v1106
        %v3903 = vunpack.c.h.b16 %v1106
        %v3904 = vunpack.c.l.b16 %v1107
        %v3905 = vunpack.c.h.b16 %v1107
        %v3906 = vunpack.c.l.b16 %v1108
        %v3907 = vunpack.c.h.b16 %v1108
        %v3908 = vunpack.c.l.b16 %v1109
        %v3909 = vunpack.c.h.b16 %v1109
        %v3910 = vunpack.c.l.b16 %v1110
        %v3911 = vunpack.c.h.b16 %v1110
        %v3912 = vunpack.c.l.b16 %v1111
        %v3913 = vunpack.c.h.b16 %v1111
        %v3914 = vunpack.c.l.b16 %v1112
        %v3915 = vunpack.c.h.b16 %v1112
        %v3916 = vunpack.c.l.b16 %v1113
        %v3917 = vunpack.c.h.b16 %v1113
        %v3918 = vunpack.c.l.b16 %v1114
        %v3919 = vunpack.c.h.b16 %v1114
        %v3920 = vunpack.c.l.b16 %v1115
        %v3921 = vunpack.c.h.b16 %v1115
        %v3922 = vunpack.c.l.b16 %v1116
        %v3923 = vunpack.c.h.b16 %v1116
        %v3924 = vunpack.c.l.b16 %v1117
        %v3925 = vunpack.c.h.b16 %v1117
        %v3926 = vunpack.c.l.b16 %v1118
        %v3927 = vunpack.c.h.b16 %v1118
        %v3928 = vunpack.c.l.b16 %v1119
        %v3929 = vunpack.c.h.b16 %v1119
        %v3930 = vunpack.c.l.b16 %v1120
        %v3931 = vunpack.c.h.b16 %v1120
        %v3932 = vunpack.c.l.b16 %v1121
        %v3933 = vunpack.c.h.b16 %v1121
        %v3934 = vunpack.c.l.b16 %v1122
        %v3935 = vunpack.c.h.b16 %v1122
        %v3936 = vunpack.c.l.b16 %v1123
        %v3937 = vunpack.c.h.b16 %v1123
        %v3938 = vunpack.c.l.b16 %v1124
        %v3939 = vunpack.c.h.b16 %v1124
        %v3940 = vunpack.c.l.b16 %v1125
        %v3941 = vunpack.c.h.b16 %v1125
        %v3942 = vunpack.c.l.b16 %v1126
        %v3943 = vunpack.c.h.b16 %v1126
        %v3944 = vunpack.c.l.b16 %v1127
        %v3945 = vunpack.c.h.b16 %v1127
        %v3946 = vunpack.c.l.b16 %v1128
        %v3947 = vunpack.c.h.b16 %v1128
        %v3948 = vunpack.c.l.b16 %v1129
        %v3949 = vunpack.c.h.b16 %v1129
        %v3950 = vunpack.c.l.b16 %v1130
        %v3951 = vunpack.c.h.b16 %v1130
        %v3952 = vunpack.c.l.b16 %v1131
        %v3953 = vunpack.c.h.b16 %v1131
        %v3954 = vunpack.c.l.b16 %v1132
        %v3955 = vunpack.c.h.b16 %v1132
        %v3956 = vunpack.c.l.b16 %v1133
        %v3957 = vunpack.c.h.b16 %v1133
        %v3958 = vunpack.c.l.b16 %v1134
        %v3959 = vunpack.c.h.b16 %v1134
        %v3960 = vunpack.c.l.b16 %v1135
        %v3961 = vunpack.c.h.b16 %v1135
        %v3962 = vunpack.c.l.b16 %v1136
        %v3963 = vunpack.c.h.b16 %v1136
        %v3964 = vunpack.c.l.b16 %v1137
        %v3965 = vunpack.c.h.b16 %v1137
        %v3966 = vunpack.c.l.b16 %v1138
        %v3967 = vunpack.c.h.b16 %v1138
        %v3968 = vunpack.c.l.b16 %v1139
        %v3969 = vunpack.c.h.b16 %v1139
        %v3970 = vunpack.c.l.b16 %v1140
        %v3971 = vunpack.c.h.b16 %v1140
        %v3972 = vunpack.c.l.b16 %v1141
        %v3973 = vunpack.c.h.b16 %v1141
        %v3974 = vunpack.c.l.b16 %v1142
        %v3975 = vunpack.c.h.b16 %v1142
        %v3976 = vunpack.c.l.b16 %v1143
        %v3977 = vunpack.c.h.b16 %v1143
        %v3978 = vunpack.c.l.b16 %v1144
        %v3979 = vunpack.c.h.b16 %v1144
        %v3980 = vunpack.c.l.b16 %v1145
        %v3981 = vunpack.c.h.b16 %v1145
        %v3982 = vunpack.c.l.b16 %v1146
        %v3983 = vunpack.c.h.b16 %v1146
        %v3984 = vunpack.c.l.b16 %v1147
        %v3985 = vunpack.c.h.b16 %v1147
        %v3986 = vunpack.c.l.b16 %v1148
        %v3987 = vunpack.c.h.b16 %v1148
        %v3988 = vunpack.c.l.b16 %v1149
        %v3989 = vunpack.c.h.b16 %v1149
        %v3990 = vunpack.c.l.b16 %v1150
        %v3991 = vunpack.c.h.b16 %v1150
        %v3992 = vunpack.c.l.b16 %v1151
        %v3993 = vunpack.c.h.b16 %v1151
        %v3994 = vunpack.c.l.b16 %v1152
        %v3995 = vunpack.c.h.b16 %v1152
        %v3996 = vunpack.c.l.b16 %v1153
        %v3997 = vunpack.c.h.b16 %v1153
        %v3998 = vunpack.c.l.b16 %v1154
        %v3999 = vunpack.c.h.b16 %v1154
        %v4000 = vunpack.c.l.b16 %v1155
        %v4001 = vunpack.c.h.b16 %v1155
        %v4002 = vunpack.c.l.b16 %v1156
        %v4003 = vunpack.c.h.b16 %v1156
        %v4004 = vunpack.c.l.b16 %v1157
        %v4005 = vunpack.c.h.b16 %v1157
        %v4006 = vunpack.c.l.b16 %v1158
        %v4007 = vunpack.c.h.b16 %v1158
        %v4008 = vunpack.c.l.b16 %v1159
        %v4009 = vunpack.c.h.b16 %v1159
        %v4010 = vunpack.c.l.b16 %v1160
        %v4011 = vunpack.c.h.b16 %v1160
        %v4012 = vunpack.c.l.b16 %v1161
        %v4013 = vunpack.c.h.b16 %v1161
        %v4014 = vunpack.c.l.b16 %v1162
        %v4015 = vunpack.c.h.b16 %v1162
        %v4016 = vunpack.c.l.b16 %v1163
        %v4017 = vunpack.c.h.b16 %v1163
        %v4018 = vunpack.c.l.b16 %v1164
        %v4019 = vunpack.c.h.b16 %v1164
        %v4020 = vunpack.c.l.b16 %v1165
        %v4021 = vunpack.c.h.b16 %v1165
        %v4022 = vunpack.c.l.b16 %v1166
        %v4023 = vunpack.c.h.b16 %v1166
        %v4024 = vunpack.c.l.b16 %v1167
        %v4025 = vunpack.c.h.b16 %v1167
        %v4026 = vunpack.c.l.b16 %v1168
        %v4027 = vunpack.c.h.b16 %v1168
        %v4028 = vunpack.c.l.b16 %v1169
        %v4029 = vunpack.c.h.b16 %v1169
        %v4030 = vunpack.c.l.b16 %v1170
        %v4031 = vunpack.c.h.b16 %v1170
        %v4032 = vunpack.c.l.b16 %v1171
        %v4033 = vunpack.c.h.b16 %v1171
        %v4034 = vunpack.c.l.b16 %v1172
        %v4035 = vunpack.c.h.b16 %v1172
        %v4036 = vunpack.c.l.b16 %v1173
        %v4037 = vunpack.c.h.b16 %v1173
        %v4038 = vunpack.c.l.b16 %v1174
        %v4039 = vunpack.c.h.b16 %v1174
        %v4040 = vunpack.c.l.b16 %v1175
        %v4041 = vunpack.c.h.b16 %v1175
        %v4042 = vunpack.c.l.b16 %v1176
        %v4043 = vunpack.c.h.b16 %v1176
        %v4044 = vunpack.c.l.b16 %v1177
        %v4045 = vunpack.c.h.b16 %v1177
        %v4046 = vunpack.c.l.b16 %v1178
        %v4047 = vunpack.c.h.b16 %v1178
        %v4048 = vunpack.c.l.b16 %v1179
        %v4049 = vunpack.c.h.b16 %v1179
        %v4050 = vunpack.c.l.b16 %v1180
        %v4051 = vunpack.c.h.b16 %v1180
        %v4052 = vunpack.c.l.b16 %v1181
        %v4053 = vunpack.c.h.b16 %v1181
        %v4054 = vunpack.c.l.b16 %v1182
        %v4055 = vunpack.c.h.b16 %v1182
        %v4056 = vunpack.c.l.b16 %v1183
        %v4057 = vunpack.c.h.b16 %v1183
        %v4058 = vunpack.c.l.b16 %v1184
        %v4059 = vunpack.c.h.b16 %v1184
        %v4060 = vunpack.c.l.b16 %v1185
        %v4061 = vunpack.c.h.b16 %v1185
        %v4062 = vunpack.c.l.b16 %v1186
        %v4063 = vunpack.c.h.b16 %v1186
        %v4064 = vunpack.c.l.b16 %v1187
        %v4065 = vunpack.c.h.b16 %v1187
        %v4066 = vunpack.c.l.b16 %v1188
        %v4067 = vunpack.c.h.b16 %v1188
        %v4068 = vunpack.c.l.b16 %v1189
        %v4069 = vunpack.c.h.b16 %v1189
        %v4070 = vunpack.c.l.b16 %v1190
        %v4071 = vunpack.c.h.b16 %v1190
        %v4072 = vunpack.c.l.b16 %v1191
        %v4073 = vunpack.c.h.b16 %v1191
        %v4074 = vunpack.c.l.b16 %v1192
        %v4075 = vunpack.c.h.b16 %v1192
        %v4076 = vunpack.c.l.b16 %v1193
        %v4077 = vunpack.c.h.b16 %v1193
        %v4078 = vpack.c.b16 %v2288, %v2286
        %v4079 = vpack.c.b16 %v2289, %v2287
        %v4080 = vpack.c.b16 %v2292, %v2290
        %v4081 = vpack.c.b16 %v2293, %v2291
        %v4082 = vpack.c.b16 %v2296, %v2294
        %v4083 = vpack.c.b16 %v2297, %v2295
        %v4084 = vpack.c.b16 %v2300, %v2298
        %v4085 = vpack.c.b16 %v2301, %v2299
        %v4086 = vpack.c.b16 %v2304, %v2302
        %v4087 = vpack.c.b16 %v2305, %v2303
        %v4088 = vpack.c.b16 %v2308, %v2306
        %v4089 = vpack.c.b16 %v2309, %v2307
        %v4090 = vpack.c.b16 %v2312, %v2310
        %v4091 = vpack.c.b16 %v2313, %v2311
        %v4092 = vpack.c.b16 %v2316, %v2314
        %v4093 = vpack.c.b16 %v2317, %v2315
        %v4094 = vpack.c.b16 %v2320, %v2318
        %v4095 = vpack.c.b16 %v2321, %v2319
        %v4096 = vpack.c.b16 %v2324, %v2322
        %v4097 = vpack.c.b16 %v2325, %v2323
        %v4098 = vpack.c.b16 %v2328, %v2326
        %v4099 = vpack.c.b16 %v2329, %v2327
        %v4100 = vpack.c.b16 %v2332, %v2330
        %v4101 = vpack.c.b16 %v2333, %v2331
        %v4102 = vpack.c.b16 %v2336, %v2334
        %v4103 = vpack.c.b16 %v2337, %v2335
        %v4104 = vpack.c.b16 %v2340, %v2338
        %v4105 = vpack.c.b16 %v2341, %v2339
        %v4106 = vpack.c.b16 %v2344, %v2342
        %v4107 = vpack.c.b16 %v2345, %v2343
        %v4108 = vpack.c.b16 %v2348, %v2346
        %v4109 = vpack.c.b16 %v2349, %v2347
        %v4110 = vpack.c.b16 %v2352, %v2350
        %v4111 = vpack.c.b16 %v2353, %v2351
        %v4112 = vpack.c.b16 %v2356, %v2354
        %v4113 = vpack.c.b16 %v2357, %v2355
        %v4114 = vpack.c.b16 %v2360, %v2358
        %v4115 = vpack.c.b16 %v2361, %v2359
        %v4116 = vpack.c.b16 %v2364, %v2362
        %v4117 = vpack.c.b16 %v2365, %v2363
        %v4118 = vpack.c.b16 %v2368, %v2366
        %v4119 = vpack.c.b16 %v2369, %v2367
        %v4120 = vpack.c.b16 %v2372, %v2370
        %v4121 = vpack.c.b16 %v2373, %v2371
        %v4122 = vpack.c.b16 %v2376, %v2374
        %v4123 = vpack.c.b16 %v2377, %v2375
        %v4124 = vpack.c.b16 %v2380, %v2378
        %v4125 = vpack.c.b16 %v2381, %v2379
        %v4126 = vpack.c.b16 %v2384, %v2382
        %v4127 = vpack.c.b16 %v2385, %v2383
        %v4128 = vpack.c.b16 %v2388, %v2386
        %v4129 = vpack.c.b16 %v2389, %v2387
        %v4130 = vpack.c.b16 %v2392, %v2390
        %v4131 = vpack.c.b16 %v2393, %v2391
        %v4132 = vpack.c.b16 %v2396, %v2394
        %v4133 = vpack.c.b16 %v2397, %v2395
        %v4134 = vpack.c.b16 %v2400, %v2398
        %v4135 = vpack.c.b16 %v2401, %v2399
        %v4136 = vpack.c.b16 %v2404, %v2402
        %v4137 = vpack.c.b16 %v2405, %v2403
        %v4138 = vpack.c.b16 %v2408, %v2406
        %v4139 = vpack.c.b16 %v2409, %v2407
        %v4140 = vpack.c.b16 %v2412, %v2410
        %v4141 = vpack.c.b16 %v2413, %v2411
        %v4142 = vpack.c.b16 %v2416, %v2414
        %v4143 = vpack.c.b16 %v2417, %v2415
        %v4144 = vpack.c.b16 %v2420, %v2418
        %v4145 = vpack.c.b16 %v2421, %v2419
        %v4146 = vpack.c.b16 %v2424, %v2422
        %v4147 = vpack.c.b16 %v2425, %v2423
        %v4148 = vpack.c.b16 %v2428, %v2426
        %v4149 = vpack.c.b16 %v2429, %v2427
        %v4150 = vpack.c.b16 %v2432, %v2430
        %v4151 = vpack.c.b16 %v2433, %v2431
        %v4152 = vpack.c.b16 %v2436, %v2434
        %v4153 = vpack.c.b16 %v2437, %v2435
        %v4154 = vpack.c.b16 %v2440, %v2438
        %v4155 = vpack.c.b16 %v2441, %v2439
        %v4156 = vpack.c.b16 %v2444, %v2442
        %v4157 = vpack.c.b16 %v2445, %v2443
        %v4158 = vpack.c.b16 %v2448, %v2446
        %v4159 = vpack.c.b16 %v2449, %v2447
        %v4160 = vpack.c.b16 %v2452, %v2450
        %v4161 = vpack.c.b16 %v2453, %v2451
        %v4162 = vpack.c.b16 %v2456, %v2454
        %v4163 = vpack.c.b16 %v2457, %v2455
        %v4164 = vpack.c.b16 %v2460, %v2458
        %v4165 = vpack.c.b16 %v2461, %v2459
        %v4166 = vpack.c.b16 %v2464, %v2462
        %v4167 = vpack.c.b16 %v2465, %v2463
        %v4168 = vpack.c.b16 %v2468, %v2466
        %v4169 = vpack.c.b16 %v2469, %v2467
        %v4170 = vpack.c.b16 %v2472, %v2470
        %v4171 = vpack.c.b16 %v2473, %v2471
        %v4172 = vpack.c.b16 %v2476, %v2474
        %v4173 = vpack.c.b16 %v2477, %v2475
        %v4174 = vpack.c.b16 %v2480, %v2478
        %v4175 = vpack.c.b16 %v2481, %v2479
        %v4176 = vpack.c.b16 %v2484, %v2482
        %v4177 = vpack.c.b16 %v2485, %v2483
        %v4178 = vpack.c.b16 %v2488, %v2486
        %v4179 = vpack.c.b16 %v2489, %v2487
        %v4180 = vpack.c.b16 %v2492, %v2490
        %v4181 = vpack.c.b16 %v2493, %v2491
        %v4182 = vpack.c.b16 %v2496, %v2494
        %v4183 = vpack.c.b16 %v2497, %v2495
        %v4184 = vpack.c.b16 %v2500, %v2498
        %v4185 = vpack.c.b16 %v2501, %v2499
        %v4186 = vpack.c.b16 %v2504, %v2502
        %v4187 = vpack.c.b16 %v2505, %v2503
        %v4188 = vpack.c.b16 %v2508, %v2506
        %v4189 = vpack.c.b16 %v2509, %v2507
        %v4190 = vpack.c.b16 %v2512, %v2510
        %v4191 = vpack.c.b16 %v2513, %v2511
        %v4192 = vpack.c.b16 %v2516, %v2514
        %v4193 = vpack.c.b16 %v2517, %v2515
        %v4194 = vpack.c.b16 %v2520, %v2518
        %v4195 = vpack.c.b16 %v2521, %v2519
        %v4196 = vpack.c.b16 %v2524, %v2522
        %v4197 = vpack.c.b16 %v2525, %v2523
        %v4198 = vpack.c.b16 %v2528, %v2526
        %v4199 = vpack.c.b16 %v2529, %v2527
        %v4200 = vpack.c.b16 %v2532, %v2530
        %v4201 = vpack.c.b16 %v2533, %v2531
        %v4202 = vpack.c.b16 %v2536, %v2534
        %v4203 = vpack.c.b16 %v2537, %v2535
        %v4204 = vpack.c.b16 %v2540, %v2538
        %v4205 = vpack.c.b16 %v2541, %v2539
        %v4206 = vpack.c.b16 %v2544, %v2542
        %v4207 = vpack.c.b16 %v2545, %v2543
        %v4208 = vpack.c.b16 %v2548, %v2546
        %v4209 = vpack.c.b16 %v2549, %v2547
        %v4210 = vpack.c.b16 %v2552, %v2550
        %v4211 = vpack.c.b16 %v2553, %v2551
        %v4212 = vpack.c.b16 %v2556, %v2554
        %v4213 = vpack.c.b16 %v2557, %v2555
        %v4214 = vpack.c.b16 %v2560, %v2558
        %v4215 = vpack.c.b16 %v2561, %v2559
        %v4216 = vpack.c.b16 %v2564, %v2562
        %v4217 = vpack.c.b16 %v2565, %v2563
        %v4218 = vpack.c.b16 %v2568, %v2566
        %v4219 = vpack.c.b16 %v2569, %v2567
        %v4220 = vpack.c.b16 %v2572, %v2570
        %v4221 = vpack.c.b16 %v2573, %v2571
        %v4222 = vpack.c.b16 %v2576, %v2574
        %v4223 = vpack.c.b16 %v2577, %v2575
        %v4224 = vpack.c.b16 %v2580, %v2578
        %v4225 = vpack.c.b16 %v2581, %v2579
        %v4226 = vpack.c.b16 %v2584, %v2582
        %v4227 = vpack.c.b16 %v2585, %v2583
        %v4228 = vpack.c.b16 %v2588, %v2586
        %v4229 = vpack.c.b16 %v2589, %v2587
        %v4230 = vpack.c.b16 %v2592, %v2590
        %v4231 = vpack.c.b16 %v2593, %v2591
        %v4232 = vpack.c.b16 %v2596, %v2594
        %v4233 = vpack.c.b16 %v2597, %v2595
        %v4234 = vpack.c.b16 %v2600, %v2598
        %v4235 = vpack.c.b16 %v2601, %v2599
        %v4236 = vpack.c.b16 %v2604, %v2602
        %v4237 = vpack.c.b16 %v2605, %v2603
        %v4238 = vpack.c.b16 %v2608, %v2606
        %v4239 = vpack.c.b16 %v2609, %v2607
        %v4240 = vpack.c.b16 %v2612, %v2610
        %v4241 = vpack.c.b16 %v2613, %v2611
        %v4242 = vpack.c.b16 %v2616, %v2614
        %v4243 = vpack.c.b16 %v2617, %v2615
        %v4244 = vpack.c.b16 %v2620, %v2618
        %v4245 = vpack.c.b16 %v2621, %v2619
        %v4246 = vpack.c.b16 %v2624, %v2622
        %v4247 = vpack.c.b16 %v2625, %v2623
        %v4248 = vpack.c.b16 %v2628, %v2626
        %v4249 = vpack.c.b16 %v2629, %v2627
        %v4250 = vpack.c.b16 %v2632, %v2630
        %v4251 = vpack.c.b16 %v2633, %v2631
        %v4252 = vpack.c.b16 %v2636, %v2634
        %v4253 = vpack.c.b16 %v2637, %v2635
        %v4254 = vpack.c.b16 %v2640, %v2638
        %v4255 = vpack.c.b16 %v2641, %v2639
        %v4256 = vpack.c.b16 %v2644, %v2642
        %v4257 = vpack.c.b16 %v2645, %v2643
        %v4258 = vpack.c.b16 %v2648, %v2646
        %v4259 = vpack.c.b16 %v2649, %v2647
        %v4260 = vpack.c.b16 %v2652, %v2650
        %v4261 = vpack.c.b16 %v2653, %v2651
        %v4262 = vpack.c.b16 %v2656, %v2654
        %v4263 = vpack.c.b16 %v2657, %v2655
        %v4264 = vpack.c.b16 %v2660, %v2658
        %v4265 = vpack.c.b16 %v2661, %v2659
        %v4266 = vpack.c.b16 %v2664, %v2662
        %v4267 = vpack.c.b16 %v2665, %v2663
        %v4268 = vpack.c.b16 %v2668, %v2666
        %v4269 = vpack.c.b16 %v2669, %v2667
        %v4270 = vpack.c.b16 %v2672, %v2670
        %v4271 = vpack.c.b16 %v2673, %v2671
        %v4272 = vpack.c.b16 %v2676, %v2674
        %v4273 = vpack.c.b16 %v2677, %v2675
        %v4274 = vpack.c.b16 %v2680, %v2678
        %v4275 = vpack.c.b16 %v2681, %v2679
        %v4276 = vpack.c.b16 %v2684, %v2682
        %v4277 = vpack.c.b16 %v2685, %v2683
        %v4278 = vpack.c.b16 %v2688, %v2686
        %v4279 = vpack.c.b16 %v2689, %v2687
        %v4280 = vpack.c.b16 %v2692, %v2690
        %v4281 = vpack.c.b16 %v2693, %v2691
        %v4282 = vpack.c.b16 %v2696, %v2694
        %v4283 = vpack.c.b16 %v2697, %v2695
        %v4284 = vpack.c.b16 %v2700, %v2698
        %v4285 = vpack.c.b16 %v2701, %v2699
        %v4286 = vpack.c.b16 %v2704, %v2702
        %v4287 = vpack.c.b16 %v2705, %v2703
        %v4288 = vpack.c.b16 %v2708, %v2706
        %v4289 = vpack.c.b16 %v2709, %v2707
        %v4290 = vpack.c.b16 %v2712, %v2710
        %v4291 = vpack.c.b16 %v2713, %v2711
        %v4292 = vpack.c.b16 %v2716, %v2714
        %v4293 = vpack.c.b16 %v2717, %v2715
        %v4294 = vpack.c.b16 %v2720, %v2718
        %v4295 = vpack.c.b16 %v2721, %v2719
        %v4296 = vpack.c.b16 %v2724, %v2722
        %v4297 = vpack.c.b16 %v2725, %v2723
        %v4298 = vpack.c.b16 %v2728, %v2726
        %v4299 = vpack.c.b16 %v2729, %v2727
        %v4300 = vpack.c.b16 %v2732, %v2730
        %v4301 = vpack.c.b16 %v2733, %v2731
        %v4302 = vpack.c.b16 %v2736, %v2734
        %v4303 = vpack.c.b16 %v2737, %v2735
        %v4304 = vpack.c.b16 %v2740, %v2738
        %v4305 = vpack.c.b16 %v2741, %v2739
        %v4306 = vpack.c.b16 %v2744, %v2742
        %v4307 = vpack.c.b16 %v2745, %v2743
        %v4308 = vpack.c.b16 %v2748, %v2746
        %v4309 = vpack.c.b16 %v2749, %v2747
        %v4310 = vpack.c.b16 %v2752, %v2750
        %v4311 = vpack.c.b16 %v2753, %v2751
        %v4312 = vpack.c.b16 %v2756, %v2754
        %v4313 = vpack.c.b16 %v2757, %v2755
        %v4314 = vpack.c.b16 %v2760, %v2758
        %v4315 = vpack.c.b16 %v2761, %v2759
        %v4316 = vpack.c.b16 %v2764, %v2762
        %v4317 = vpack.c.b16 %v2765, %v2763
        %v4318 = vpack.c.b16 %v2768, %v2766
        %v4319 = vpack.c.b16 %v2769, %v2767
        %v4320 = vpack.c.b16 %v2772, %v2770
        %v4321 = vpack.c.b16 %v2773, %v2771
        %v4322 = vpack.c.b16 %v2776, %v2774
        %v4323 = vpack.c.b16 %v2777, %v2775
        %v4324 = vpack.c.b16 %v2780, %v2778
        %v4325 = vpack.c.b16 %v2781, %v2779
        %v4326 = vpack.c.b16 %v2784, %v2782
        %v4327 = vpack.c.b16 %v2785, %v2783
        %v4328 = vpack.c.b16 %v2788, %v2786
        %v4329 = vpack.c.b16 %v2789, %v2787
        %v4330 = vpack.c.b16 %v2792, %v2790
        %v4331 = vpack.c.b16 %v2793, %v2791
        %v4332 = vpack.c.b16 %v2796, %v2794
        %v4333 = vpack.c.b16 %v2797, %v2795
        %v4334 = vpack.c.b16 %v2800, %v2798
        %v4335 = vpack.c.b16 %v2801, %v2799
        %v4336 = vpack.c.b16 %v2804, %v2802
        %v4337 = vpack.c.b16 %v2805, %v2803
        %v4338 = vpack.c.b16 %v2808, %v2806
        %v4339 = vpack.c.b16 %v2809, %v2807
        %v4340 = vpack.c.b16 %v2812, %v2810
        %v4341 = vpack.c.b16 %v2813, %v2811
        %v4342 = vpack.c.b16 %v2816, %v2814
        %v4343 = vpack.c.b16 %v2817, %v2815
        %v4344 = vpack.c.b16 %v2820, %v2818
        %v4345 = vpack.c.b16 %v2821, %v2819
        %v4346 = vpack.c.b16 %v2824, %v2822
        %v4347 = vpack.c.b16 %v2825, %v2823
        %v4348 = vpack.c.b16 %v2828, %v2826
        %v4349 = vpack.c.b16 %v2829, %v2827
        %v4350 = vpack.c.b16 %v2832, %v2830
        %v4351 = vpack.c.b16 %v2833, %v2831
        %v4352 = vpack.c.b16 %v2836, %v2834
        %v4353 = vpack.c.b16 %v2837, %v2835
        %v4354 = vpack.c.b16 %v2840, %v2838
        %v4355 = vpack.c.b16 %v2841, %v2839
        %v4356 = vpack.c.b16 %v2844, %v2842
        %v4357 = vpack.c.b16 %v2845, %v2843
        %v4358 = vpack.c.b16 %v2848, %v2846
        %v4359 = vpack.c.b16 %v2849, %v2847
        %v4360 = vpack.c.b16 %v2852, %v2850
        %v4361 = vpack.c.b16 %v2853, %v2851
        %v4362 = vpack.c.b16 %v2856, %v2854
        %v4363 = vpack.c.b16 %v2857, %v2855
        %v4364 = vpack.c.b16 %v2860, %v2858
        %v4365 = vpack.c.b16 %v2861, %v2859
        %v4366 = vpack.c.b16 %v2864, %v2862
        %v4367 = vpack.c.b16 %v2865, %v2863
        %v4368 = vpack.c.b16 %v2868, %v2866
        %v4369 = vpack.c.b16 %v2869, %v2867
        %v4370 = vpack.c.b16 %v2872, %v2870
        %v4371 = vpack.c.b16 %v2873, %v2871
        %v4372 = vpack.c.b16 %v2876, %v2874
        %v4373 = vpack.c.b16 %v2877, %v2875
        %v4374 = vpack.c.b16 %v2880, %v2878
        %v4375 = vpack.c.b16 %v2881, %v2879
        %v4376 = vpack.c.b16 %v2884, %v2882
        %v4377 = vpack.c.b16 %v2885, %v2883
        %v4378 = vpack.c.b16 %v2888, %v2886
        %v4379 = vpack.c.b16 %v2889, %v2887
        %v4380 = vpack.c.b16 %v2892, %v2890
        %v4381 = vpack.c.b16 %v2893, %v2891
        %v4382 = vpack.c.b16 %v2896, %v2894
        %v4383 = vpack.c.b16 %v2897, %v2895
        %v4384 = vpack.c.b16 %v2900, %v2898
        %v4385 = vpack.c.b16 %v2901, %v2899
        %v4386 = vpack.c.b16 %v2904, %v2902
        %v4387 = vpack.c.b16 %v2905, %v2903
        %v4388 = vpack.c.b16 %v2908, %v2906
        %v4389 = vpack.c.b16 %v2909, %v2907
        %v4390 = vpack.c.b16 %v2912, %v2910
        %v4391 = vpack.c.b16 %v2913, %v2911
        %v4392 = vpack.c.b16 %v2916, %v2914
        %v4393 = vpack.c.b16 %v2917, %v2915
        %v4394 = vpack.c.b16 %v2920, %v2918
        %v4395 = vpack.c.b16 %v2921, %v2919
        %v4396 = vpack.c.b16 %v2924, %v2922
        %v4397 = vpack.c.b16 %v2925, %v2923
        %v4398 = vpack.c.b16 %v2928, %v2926
        %v4399 = vpack.c.b16 %v2929, %v2927
        %v4400 = vpack.c.b16 %v2932, %v2930
        %v4401 = vpack.c.b16 %v2933, %v2931
        %v4402 = vpack.c.b16 %v2936, %v2934
        %v4403 = vpack.c.b16 %v2937, %v2935
        %v4404 = vpack.c.b16 %v2940, %v2938
        %v4405 = vpack.c.b16 %v2941, %v2939
        %v4406 = vpack.c.b16 %v2944, %v2942
        %v4407 = vpack.c.b16 %v2945, %v2943
        %v4408 = vpack.c.b16 %v2948, %v2946
        %v4409 = vpack.c.b16 %v2949, %v2947
        %v4410 = vpack.c.b16 %v2952, %v2950
        %v4411 = vpack.c.b16 %v2953, %v2951
        %v4412 = vpack.c.b16 %v2956, %v2954
        %v4413 = vpack.c.b16 %v2957, %v2955
        %v4414 = vpack.c.b16 %v2960, %v2958
        %v4415 = vpack.c.b16 %v2961, %v2959
        %v4416 = vpack.c.b16 %v2964, %v2962
        %v4417 = vpack.c.b16 %v2965, %v2963
        %v4418 = vpack.c.b16 %v2968, %v2966
        %v4419 = vpack.c.b16 %v2969, %v2967
        %v4420 = vpack.c.b16 %v2972, %v2970
        %v4421 = vpack.c.b16 %v2973, %v2971
        %v4422 = vpack.c.b16 %v2976, %v2974
        %v4423 = vpack.c.b16 %v2977, %v2975
        %v4424 = vpack.c.b16 %v2980, %v2978
        %v4425 = vpack.c.b16 %v2981, %v2979
        %v4426 = vpack.c.b16 %v2984, %v2982
        %v4427 = vpack.c.b16 %v2985, %v2983
        %v4428 = vpack.c.b16 %v2988, %v2986
        %v4429 = vpack.c.b16 %v2989, %v2987
        %v4430 = vpack.c.b16 %v2992, %v2990
        %v4431 = vpack.c.b16 %v2993, %v2991
        %v4432 = vpack.c.b16 %v2996, %v2994
        %v4433 = vpack.c.b16 %v2997, %v2995
        %v4434 = vpack.c.b16 %v3000, %v2998
        %v4435 = vpack.c.b16 %v3001, %v2999
        %v4436 = vpack.c.b16 %v3004, %v3002
        %v4437 = vpack.c.b16 %v3005, %v3003
        %v4438 = vpack.c.b16 %v3008, %v3006
        %v4439 = vpack.c.b16 %v3009, %v3007
        %v4440 = vpack.c.b16 %v3012, %v3010
        %v4441 = vpack.c.b16 %v3013, %v3011
        %v4442 = vpack.c.b16 %v3016, %v3014
        %v4443 = vpack.c.b16 %v3017, %v3015
        %v4444 = vpack.c.b16 %v3020, %v3018
        %v4445 = vpack.c.b16 %v3021, %v3019
        %v4446 = vpack.c.b16 %v3024, %v3022
        %v4447 = vpack.c.b16 %v3025, %v3023
        %v4448 = vpack.c.b16 %v3028, %v3026
        %v4449 = vpack.c.b16 %v3029, %v3027
        %v4450 = vpack.c.b16 %v3032, %v3030
        %v4451 = vpack.c.b16 %v3033, %v3031
        %v4452 = vpack.c.b16 %v3036, %v3034
        %v4453 = vpack.c.b16 %v3037, %v3035
        %v4454 = vpack.c.b16 %v3040, %v3038
        %v4455 = vpack.c.b16 %v3041, %v3039
        %v4456 = vpack.c.b16 %v3044, %v3042
        %v4457 = vpack.c.b16 %v3045, %v3043
        %v4458 = vpack.c.b16 %v3048, %v3046
        %v4459 = vpack.c.b16 %v3049, %v3047
        %v4460 = vpack.c.b16 %v3052, %v3050
        %v4461 = vpack.c.b16 %v3053, %v3051
        %v4462 = vpack.c.b16 %v3056, %v3054
        %v4463 = vpack.c.b16 %v3057, %v3055
        %v4464 = vpack.c.b16 %v3060, %v3058
        %v4465 = vpack.c.b16 %v3061, %v3059
        %v4466 = vpack.c.b16 %v3064, %v3062
        %v4467 = vpack.c.b16 %v3065, %v3063
        %v4468 = vpack.c.b16 %v3068, %v3066
        %v4469 = vpack.c.b16 %v3069, %v3067
        %v4470 = vpack.c.b16 %v3072, %v3070
        %v4471 = vpack.c.b16 %v3073, %v3071
        %v4472 = vpack.c.b16 %v3076, %v3074
        %v4473 = vpack.c.b16 %v3077, %v3075
        %v4474 = vpack.c.b16 %v3080, %v3078
        %v4475 = vpack.c.b16 %v3081, %v3079
        %v4476 = vpack.c.b16 %v3084, %v3082
        %v4477 = vpack.c.b16 %v3085, %v3083
        %v4478 = vpack.c.b16 %v3088, %v3086
        %v4479 = vpack.c.b16 %v3089, %v3087
        %v4480 = vpack.c.b16 %v3092, %v3090
        %v4481 = vpack.c.b16 %v3093, %v3091
        %v4482 = vpack.c.b16 %v3096, %v3094
        %v4483 = vpack.c.b16 %v3097, %v3095
        %v4484 = vpack.c.b16 %v3100, %v3098
        %v4485 = vpack.c.b16 %v3101, %v3099
        %v4486 = vpack.c.b16 %v3104, %v3102
        %v4487 = vpack.c.b16 %v3105, %v3103
        %v4488 = vpack.c.b16 %v3108, %v3106
        %v4489 = vpack.c.b16 %v3109, %v3107
        %v4490 = vpack.c.b16 %v3112, %v3110
        %v4491 = vpack.c.b16 %v3113, %v3111
        %v4492 = vpack.c.b16 %v3116, %v3114
        %v4493 = vpack.c.b16 %v3117, %v3115
        %v4494 = vpack.c.b16 %v3120, %v3118
        %v4495 = vpack.c.b16 %v3121, %v3119
        %v4496 = vpack.c.b16 %v3124, %v3122
        %v4497 = vpack.c.b16 %v3125, %v3123
        %v4498 = vpack.c.b16 %v3128, %v3126
        %v4499 = vpack.c.b16 %v3129, %v3127
        %v4500 = vpack.c.b16 %v3132, %v3130
        %v4501 = vpack.c.b16 %v3133, %v3131
        %v4502 = vpack.c.b16 %v3136, %v3134
        %v4503 = vpack.c.b16 %v3137, %v3135
        %v4504 = vpack.c.b16 %v3140, %v3138
        %v4505 = vpack.c.b16 %v3141, %v3139
        %v4506 = vpack.c.b16 %v3144, %v3142
        %v4507 = vpack.c.b16 %v3145, %v3143
        %v4508 = vpack.c.b16 %v3148, %v3146
        %v4509 = vpack.c.b16 %v3149, %v3147
        %v4510 = vpack.c.b16 %v3152, %v3150
        %v4511 = vpack.c.b16 %v3153, %v3151
        %v4512 = vpack.c.b16 %v3156, %v3154
        %v4513 = vpack.c.b16 %v3157, %v3155
        %v4514 = vpack.c.b16 %v3160, %v3158
        %v4515 = vpack.c.b16 %v3161, %v3159
        %v4516 = vpack.c.b16 %v3164, %v3162
        %v4517 = vpack.c.b16 %v3165, %v3163
        %v4518 = vpack.c.b16 %v3168, %v3166
        %v4519 = vpack.c.b16 %v3169, %v3167
        %v4520 = vpack.c.b16 %v3172, %v3170
        %v4521 = vpack.c.b16 %v3173, %v3171
        %v4522 = vpack.c.b16 %v3176, %v3174
        %v4523 = vpack.c.b16 %v3177, %v3175
        %v4524 = vpack.c.b16 %v3180, %v3178
        %v4525 = vpack.c.b16 %v3181, %v3179
        %v4526 = vpack.c.b16 %v3184, %v3182
        %v4527 = vpack.c.b16 %v3185, %v3183
        %v4528 = vpack.c.b16 %v3188, %v3186
        %v4529 = vpack.c.b16 %v3189, %v3187
        %v4530 = vpack.c.b16 %v3192, %v3190
        %v4531 = vpack.c.b16 %v3193, %v3191
        %v4532 = vpack.c.b16 %v3196, %v3194
        %v4533 = vpack.c.b16 %v3197, %v3195
        %v4534 = vpack.c.b16 %v3200, %v3198
        %v4535 = vpack.c.b16 %v3201, %v3199
        %v4536 = vpack.c.b16 %v3204, %v3202
        %v4537 = vpack.c.b16 %v3205, %v3203
        %v4538 = vpack.c.b16 %v3208, %v3206
        %v4539 = vpack.c.b16 %v3209, %v3207
        %v4540 = vpack.c.b16 %v3212, %v3210
        %v4541 = vpack.c.b16 %v3213, %v3211
        %v4542 = vpack.c.b16 %v3216, %v3214
        %v4543 = vpack.c.b16 %v3217, %v3215
        %v4544 = vpack.c.b16 %v3220, %v3218
        %v4545 = vpack.c.b16 %v3221, %v3219
        %v4546 = vpack.c.b16 %v3224, %v3222
        %v4547 = vpack.c.b16 %v3225, %v3223
        %v4548 = vpack.c.b16 %v3228, %v3226
        %v4549 = vpack.c.b16 %v3229, %v3227
        %v4550 = vpack.c.b16 %v3232, %v3230
        %v4551 = vpack.c.b16 %v3233, %v3231
        %v4552 = vpack.c.b16 %v3236, %v3234
        %v4553 = vpack.c.b16 %v3237, %v3235
        %v4554 = vpack.c.b16 %v3240, %v3238
        %v4555 = vpack.c.b16 %v3241, %v3239
        %v4556 = vpack.c.b16 %v3244, %v3242
        %v4557 = vpack.c.b16 %v3245, %v3243
        %v4558 = vpack.c.b16 %v3248, %v3246
        %v4559 = vpack.c.b16 %v3249, %v3247
        %v4560 = vpack.c.b16 %v3252, %v3250
        %v4561 = vpack.c.b16 %v3253, %v3251
        %v4562 = vpack.c.b16 %v3256, %v3254
        %v4563 = vpack.c.b16 %v3257, %v3255
        %v4564 = vpack.c.b16 %v3260, %v3258
        %v4565 = vpack.c.b16 %v3261, %v3259
        %v4566 = vpack.c.b16 %v3264, %v3262
        %v4567 = vpack.c.b16 %v3265, %v3263
        %v4568 = vpack.c.b16 %v3268, %v3266
        %v4569 = vpack.c.b16 %v3269, %v3267
        %v4570 = vpack.c.b16 %v3272, %v3270
        %v4571 = vpack.c.b16 %v3273, %v3271
        %v4572 = vpack.c.b16 %v3276, %v3274
        %v4573 = vpack.c.b16 %v3277, %v3275
        %v4574 = vpack.c.b16 %v3280, %v3278
        %v4575 = vpack.c.b16 %v3281, %v3279
        %v4576 = vpack.c.b16 %v3284, %v3282
        %v4577 = vpack.c.b16 %v3285, %v3283
        %v4578 = vpack.c.b16 %v3288, %v3286
        %v4579 = vpack.c.b16 %v3289, %v3287
        %v4580 = vpack.c.b16 %v3292, %v3290
        %v4581 = vpack.c.b16 %v3293, %v3291
        %v4582 = vpack.c.b16 %v3296, %v3294
        %v4583 = vpack.c.b16 %v3297, %v3295
        %v4584 = vpack.c.b16 %v3300, %v3298
        %v4585 = vpack.c.b16 %v3301, %v3299
        %v4586 = vpack.c.b16 %v3304, %v3302
        %v4587 = vpack.c.b16 %v3305, %v3303
        %v4588 = vpack.c.b16 %v3308, %v3306
        %v4589 = vpack.c.b16 %v3309, %v3307
        %v4590 = vpack.c.b16 %v3312, %v3310
        %v4591 = vpack.c.b16 %v3313, %v3311
        %v4592 = vpack.c.b16 %v3316, %v3314
        %v4593 = vpack.c.b16 %v3317, %v3315
        %v4594 = vpack.c.b16 %v3320, %v3318
        %v4595 = vpack.c.b16 %v3321, %v3319
        %v4596 = vpack.c.b16 %v3324, %v3322
        %v4597 = vpack.c.b16 %v3325, %v3323
        %v4598 = vpack.c.b16 %v3328, %v3326
        %v4599 = vpack.c.b16 %v3329, %v3327
        %v4600 = vpack.c.b16 %v3332, %v3330
        %v4601 = vpack.c.b16 %v3333, %v3331
        %v4602 = vpack.c.b16 %v3336, %v3334
        %v4603 = vpack.c.b16 %v3337, %v3335
        %v4604 = vpack.c.b16 %v3340, %v3338
        %v4605 = vpack.c.b16 %v3341, %v3339
        %v4606 = vpack.c.b16 %v3344, %v3342
        %v4607 = vpack.c.b16 %v3345, %v3343
        %v4608 = vpack.c.b16 %v3348, %v3346
        %v4609 = vpack.c.b16 %v3349, %v3347
        %v4610 = vpack.c.b16 %v3352, %v3350
        %v4611 = vpack.c.b16 %v3353, %v3351
        %v4612 = vpack.c.b16 %v3356, %v3354
        %v4613 = vpack.c.b16 %v3357, %v3355
        %v4614 = vpack.c.b16 %v3360, %v3358
        %v4615 = vpack.c.b16 %v3361, %v3359
        %v4616 = vpack.c.b16 %v3364, %v3362
        %v4617 = vpack.c.b16 %v3365, %v3363
        %v4618 = vpack.c.b16 %v3368, %v3366
        %v4619 = vpack.c.b16 %v3369, %v3367
        %v4620 = vpack.c.b16 %v3372, %v3370
        %v4621 = vpack.c.b16 %v3373, %v3371
        %v4622 = vpack.c.b16 %v3376, %v3374
        %v4623 = vpack.c.b16 %v3377, %v3375
        %v4624 = vpack.c.b16 %v3380, %v3378
        %v4625 = vpack.c.b16 %v3381, %v3379
        %v4626 = vpack.c.b16 %v3384, %v3382
        %v4627 = vpack.c.b16 %v3385, %v3383
        %v4628 = vpack.c.b16 %v3388, %v3386
        %v4629 = vpack.c.b16 %v3389, %v3387
        %v4630 = vpack.c.b16 %v3392, %v3390
        %v4631 = vpack.c.b16 %v3393, %v3391
        %v4632 = vpack.c.b16 %v3396, %v3394
        %v4633 = vpack.c.b16 %v3397, %v3395
        %v4634 = vpack.c.b16 %v3400, %v3398
        %v4635 = vpack.c.b16 %v3401, %v3399
        %v4636 = vpack.c.b16 %v3404, %v3402
        %v4637 = vpack.c.b16 %v3405, %v3403
        %v4638 = vpack.c.b16 %v3408, %v3406
        %v4639 = vpack.c.b16 %v3409, %v3407
        %v4640 = vpack.c.b16 %v3412, %v3410
        %v4641 = vpack.c.b16 %v3413, %v3411
        %v4642 = vpack.c.b16 %v3416, %v3414
        %v4643 = vpack.c.b16 %v3417, %v3415
        %v4644 = vpack.c.b16 %v3420, %v3418
        %v4645 = vpack.c.b16 %v3421, %v3419
        %v4646 = vpack.c.b16 %v3424, %v3422
        %v4647 = vpack.c.b16 %v3425, %v3423
        %v4648 = vpack.c.b16 %v3428, %v3426
        %v4649 = vpack.c.b16 %v3429, %v3427
        %v4650 = vpack.c.b16 %v3432, %v3430
        %v4651 = vpack.c.b16 %v3433, %v3431
        %v4652 = vpack.c.b16 %v3436, %v3434
        %v4653 = vpack.c.b16 %v3437, %v3435
        %v4654 = vpack.c.b16 %v3440, %v3438
        %v4655 = vpack.c.b16 %v3441, %v3439
        %v4656 = vpack.c.b16 %v3444, %v3442
        %v4657 = vpack.c.b16 %v3445, %v3443
        %v4658 = vpack.c.b16 %v3448, %v3446
        %v4659 = vpack.c.b16 %v3449, %v3447
        %v4660 = vpack.c.b16 %v3452, %v3450
        %v4661 = vpack.c.b16 %v3453, %v3451
        %v4662 = vpack.c.b16 %v3456, %v3454
        %v4663 = vpack.c.b16 %v3457, %v3455
        %v4664 = vpack.c.b16 %v3460, %v3458
        %v4665 = vpack.c.b16 %v3461, %v3459
        %v4666 = vpack.c.b16 %v3464, %v3462
        %v4667 = vpack.c.b16 %v3465, %v3463
        %v4668 = vpack.c.b16 %v3468, %v3466
        %v4669 = vpack.c.b16 %v3469, %v3467
        %v4670 = vpack.c.b16 %v3472, %v3470
        %v4671 = vpack.c.b16 %v3473, %v3471
        %v4672 = vpack.c.b16 %v3476, %v3474
        %v4673 = vpack.c.b16 %v3477, %v3475
        %v4674 = vpack.c.b16 %v3480, %v3478
        %v4675 = vpack.c.b16 %v3481, %v3479
        %v4676 = vpack.c.b16 %v3484, %v3482
        %v4677 = vpack.c.b16 %v3485, %v3483
        %v4678 = vpack.c.b16 %v3488, %v3486
        %v4679 = vpack.c.b16 %v3489, %v3487
        %v4680 = vpack.c.b16 %v3492, %v3490
        %v4681 = vpack.c.b16 %v3493, %v3491
        %v4682 = vpack.c.b16 %v3496, %v3494
        %v4683 = vpack.c.b16 %v3497, %v3495
        %v4684 = vpack.c.b16 %v3500, %v3498
        %v4685 = vpack.c.b16 %v3501, %v3499
        %v4686 = vpack.c.b16 %v3504, %v3502
        %v4687 = vpack.c.b16 %v3505, %v3503
        %v4688 = vpack.c.b16 %v3508, %v3506
        %v4689 = vpack.c.b16 %v3509, %v3507
        %v4690 = vpack.c.b16 %v3512, %v3510
        %v4691 = vpack.c.b16 %v3513, %v3511
        %v4692 = vpack.c.b16 %v3516, %v3514
        %v4693 = vpack.c.b16 %v3517, %v3515
        %v4694 = vpack.c.b16 %v3520, %v3518
        %v4695 = vpack.c.b16 %v3521, %v3519
        %v4696 = vpack.c.b16 %v3524, %v3522
        %v4697 = vpack.c.b16 %v3525, %v3523
        %v4698 = vpack.c.b16 %v3528, %v3526
        %v4699 = vpack.c.b16 %v3529, %v3527
        %v4700 = vpack.c.b16 %v3532, %v3530
        %v4701 = vpack.c.b16 %v3533, %v3531
        %v4702 = vpack.c.b16 %v3536, %v3534
        %v4703 = vpack.c.b16 %v3537, %v3535
        %v4704 = vpack.c.b16 %v3540, %v3538
        %v4705 = vpack.c.b16 %v3541, %v3539
        %v4706 = vpack.c.b16 %v3544, %v3542
        %v4707 = vpack.c.b16 %v3545, %v3543
        %v4708 = vpack.c.b16 %v3548, %v3546
        %v4709 = vpack.c.b16 %v3549, %v3547
        %v4710 = vpack.c.b16 %v3552, %v3550
        %v4711 = vpack.c.b16 %v3553, %v3551
        %v4712 = vpack.c.b16 %v3556, %v3554
        %v4713 = vpack.c.b16 %v3557, %v3555
        %v4714 = vpack.c.b16 %v3560, %v3558
        %v4715 = vpack.c.b16 %v3561, %v3559
        %v4716 = vpack.c.b16 %v3564, %v3562
        %v4717 = vpack.c.b16 %v3565, %v3563
        %v4718 = vpack.c.b16 %v3568, %v3566
        %v4719 = vpack.c.b16 %v3569, %v3567
        %v4720 = vpack.c.b16 %v3572, %v3570
        %v4721 = vpack.c.b16 %v3573, %v3571
        %v4722 = vpack.c.b16 %v3576, %v3574
        %v4723 = vpack.c.b16 %v3577, %v3575
        %v4724 = vpack.c.b16 %v3580, %v3578
        %v4725 = vpack.c.b16 %v3581, %v3579
        %v4726 = vpack.c.b16 %v3584, %v3582
        %v4727 = vpack.c.b16 %v3585, %v3583
        %v4728 = vpack.c.b16 %v3588, %v3586
        %v4729 = vpack.c.b16 %v3589, %v3587
        %v4730 = vpack.c.b16 %v3592, %v3590
        %v4731 = vpack.c.b16 %v3593, %v3591
        %v4732 = vpack.c.b16 %v3596, %v3594
        %v4733 = vpack.c.b16 %v3597, %v3595
        %v4734 = vpack.c.b16 %v3600, %v3598
        %v4735 = vpack.c.b16 %v3601, %v3599
        %v4736 = vpack.c.b16 %v3604, %v3602
        %v4737 = vpack.c.b16 %v3605, %v3603
        %v4738 = vpack.c.b16 %v3608, %v3606
        %v4739 = vpack.c.b16 %v3609, %v3607
        %v4740 = vpack.c.b16 %v3612, %v3610
        %v4741 = vpack.c.b16 %v3613, %v3611
        %v4742 = vpack.c.b16 %v3616, %v3614
        %v4743 = vpack.c.b16 %v3617, %v3615
        %v4744 = vpack.c.b16 %v3620, %v3618
        %v4745 = vpack.c.b16 %v3621, %v3619
        %v4746 = vpack.c.b16 %v3624, %v3622
        %v4747 = vpack.c.b16 %v3625, %v3623
        %v4748 = vpack.c.b16 %v3628, %v3626
        %v4749 = vpack.c.b16 %v3629, %v3627
        %v4750 = vpack.c.b16 %v3632, %v3630
        %v4751 = vpack.c.b16 %v3633, %v3631
        %v4752 = vpack.c.b16 %v3636, %v3634
        %v4753 = vpack.c.b16 %v3637, %v3635
        %v4754 = vpack.c.b16 %v3640, %v3638
        %v4755 = vpack.c.b16 %v3641, %v3639
        %v4756 = vpack.c.b16 %v3644, %v3642
        %v4757 = vpack.c.b16 %v3645, %v3643
        %v4758 = vpack.c.b16 %v3648, %v3646
        %v4759 = vpack.c.b16 %v3649, %v3647
        %v4760 = vpack.c.b16 %v3652, %v3650
        %v4761 = vpack.c.b16 %v3653, %v3651
        %v4762 = vpack.c.b16 %v3656, %v3654
        %v4763 = vpack.c.b16 %v3657, %v3655
        %v4764 = vpack.c.b16 %v3660, %v3658
        %v4765 = vpack.c.b16 %v3661, %v3659
        %v4766 = vpack.c.b16 %v3664, %v3662
        %v4767 = vpack.c.b16 %v3665, %v3663
        %v4768 = vpack.c.b16 %v3668, %v3666
        %v4769 = vpack.c.b16 %v3669, %v3667
        %v4770 = vpack.c.b16 %v3672, %v3670
        %v4771 = vpack.c.b16 %v3673, %v3671
        %v4772 = vpack.c.b16 %v3676, %v3674
        %v4773 = vpack.c.b16 %v3677, %v3675
        %v4774 = vpack.c.b16 %v3680, %v3678
        %v4775 = vpack.c.b16 %v3681, %v3679
        %v4776 = vpack.c.b16 %v3684, %v3682
        %v4777 = vpack.c.b16 %v3685, %v3683
        %v4778 = vpack.c.b16 %v3688, %v3686
        %v4779 = vpack.c.b16 %v3689, %v3687
        %v4780 = vpack.c.b16 %v3692, %v3690
        %v4781 = vpack.c.b16 %v3693, %v3691
        %v4782 = vpack.c.b16 %v3696, %v3694
        %v4783 = vpack.c.b16 %v3697, %v3695
        %v4784 = vpack.c.b16 %v3700, %v3698
        %v4785 = vpack.c.b16 %v3701, %v3699
        %v4786 = vpack.c.b16 %v3704, %v3702
        %v4787 = vpack.c.b16 %v3705, %v3703
        %v4788 = vpack.c.b16 %v3708, %v3706
        %v4789 = vpack.c.b16 %v3709, %v3707
        %v4790 = vpack.c.b16 %v3712, %v3710
        %v4791 = vpack.c.b16 %v3713, %v3711
        %v4792 = vpack.c.b16 %v3716, %v3714
        %v4793 = vpack.c.b16 %v3717, %v3715
        %v4794 = vpack.c.b16 %v3720, %v3718
        %v4795 = vpack.c.b16 %v3721, %v3719
        %v4796 = vpack.c.b16 %v3724, %v3722
        %v4797 = vpack.c.b16 %v3725, %v3723
        %v4798 = vpack.c.b16 %v3728, %v3726
        %v4799 = vpack.c.b16 %v3729, %v3727
        %v4800 = vpack.c.b16 %v3732, %v3730
        %v4801 = vpack.c.b16 %v3733, %v3731
        %v4802 = vpack.c.b16 %v3736, %v3734
        %v4803 = vpack.c.b16 %v3737, %v3735
        %v4804 = vpack.c.b16 %v3740, %v3738
        %v4805 = vpack.c.b16 %v3741, %v3739
        %v4806 = vpack.c.b16 %v3744, %v3742
        %v4807 = vpack.c.b16 %v3745, %v3743
        %v4808 = vpack.c.b16 %v3748, %v3746
        %v4809 = vpack.c.b16 %v3749, %v3747
        %v4810 = vpack.c.b16 %v3752, %v3750
        %v4811 = vpack.c.b16 %v3753, %v3751
        %v4812 = vpack.c.b16 %v3756, %v3754
        %v4813 = vpack.c.b16 %v3757, %v3755
        %v4814 = vpack.c.b16 %v3760, %v3758
        %v4815 = vpack.c.b16 %v3761, %v3759
        %v4816 = vpack.c.b16 %v3764, %v3762
        %v4817 = vpack.c.b16 %v3765, %v3763
        %v4818 = vpack.c.b16 %v3768, %v3766
        %v4819 = vpack.c.b16 %v3769, %v3767
        %v4820 = vpack.c.b16 %v3772, %v3770
        %v4821 = vpack.c.b16 %v3773, %v3771
        %v4822 = vpack.c.b16 %v3776, %v3774
        %v4823 = vpack.c.b16 %v3777, %v3775
        %v4824 = vpack.c.b16 %v3780, %v3778
        %v4825 = vpack.c.b16 %v3781, %v3779
        %v4826 = vpack.c.b16 %v3784, %v3782
        %v4827 = vpack.c.b16 %v3785, %v3783
        %v4828 = vpack.c.b16 %v3788, %v3786
        %v4829 = vpack.c.b16 %v3789, %v3787
        %v4830 = vpack.c.b16 %v3792, %v3790
        %v4831 = vpack.c.b16 %v3793, %v3791
        %v4832 = vpack.c.b16 %v3796, %v3794
        %v4833 = vpack.c.b16 %v3797, %v3795
        %v4834 = vpack.c.b16 %v3800, %v3798
        %v4835 = vpack.c.b16 %v3801, %v3799
        %v4836 = vpack.c.b16 %v3804, %v3802
        %v4837 = vpack.c.b16 %v3805, %v3803
        %v4838 = vpack.c.b16 %v3808, %v3806
        %v4839 = vpack.c.b16 %v3809, %v3807
        %v4840 = vpack.c.b16 %v3812, %v3810
        %v4841 = vpack.c.b16 %v3813, %v3811
        %v4842 = vpack.c.b16 %v3816, %v3814
        %v4843 = vpack.c.b16 %v3817, %v3815
        %v4844 = vpack.c.b16 %v3820, %v3818
        %v4845 = vpack.c.b16 %v3821, %v3819
        %v4846 = vpack.c.b16 %v3824, %v3822
        %v4847 = vpack.c.b16 %v3825, %v3823
        %v4848 = vpack.c.b16 %v3828, %v3826
        %v4849 = vpack.c.b16 %v3829, %v3827
        %v4850 = vpack.c.b16 %v3832, %v3830
        %v4851 = vpack.c.b16 %v3833, %v3831
        %v4852 = vpack.c.b16 %v3836, %v3834
        %v4853 = vpack.c.b16 %v3837, %v3835
        %v4854 = vpack.c.b16 %v3840, %v3838
        %v4855 = vpack.c.b16 %v3841, %v3839
        %v4856 = vpack.c.b16 %v3844, %v3842
        %v4857 = vpack.c.b16 %v3845, %v3843
        %v4858 = vpack.c.b16 %v3848, %v3846
        %v4859 = vpack.c.b16 %v3849, %v3847
        %v4860 = vpack.c.b16 %v3852, %v3850
        %v4861 = vpack.c.b16 %v3853, %v3851
        %v4862 = vpack.c.b16 %v3856, %v3854
        %v4863 = vpack.c.b16 %v3857, %v3855
        %v4864 = vpack.c.b16 %v3860, %v3858
        %v4865 = vpack.c.b16 %v3861, %v3859
        %v4866 = vpack.c.b16 %v3864, %v3862
        %v4867 = vpack.c.b16 %v3865, %v3863
        %v4868 = vpack.c.b16 %v3868, %v3866
        %v4869 = vpack.c.b16 %v3869, %v3867
        %v4870 = vpack.c.b16 %v3872, %v3870
        %v4871 = vpack.c.b16 %v3873, %v3871
        %v4872 = vpack.c.b16 %v3876, %v3874
        %v4873 = vpack.c.b16 %v3877, %v3875
        %v4874 = vpack.c.b16 %v3880, %v3878
        %v4875 = vpack.c.b16 %v3881, %v3879
        %v4876 = vpack.c.b16 %v3884, %v3882
        %v4877 = vpack.c.b16 %v3885, %v3883
        %v4878 = vpack.c.b16 %v3888, %v3886
        %v4879 = vpack.c.b16 %v3889, %v3887
        %v4880 = vpack.c.b16 %v3892, %v3890
        %v4881 = vpack.c.b16 %v3893, %v3891
        %v4882 = vpack.c.b16 %v3896, %v3894
        %v4883 = vpack.c.b16 %v3897, %v3895
        %v4884 = vpack.c.b16 %v3900, %v3898
        %v4885 = vpack.c.b16 %v3901, %v3899
        %v4886 = vpack.c.b16 %v3904, %v3902
        %v4887 = vpack.c.b16 %v3905, %v3903
        %v4888 = vpack.c.b16 %v3908, %v3906
        %v4889 = vpack.c.b16 %v3909, %v3907
        %v4890 = vpack.c.b16 %v3912, %v3910
        %v4891 = vpack.c.b16 %v3913, %v3911
        %v4892 = vpack.c.b16 %v3916, %v3914
        %v4893 = vpack.c.b16 %v3917, %v3915
        %v4894 = vpack.c.b16 %v3920, %v3918
        %v4895 = vpack.c.b16 %v3921, %v3919
        %v4896 = vpack.c.b16 %v3924, %v3922
        %v4897 = vpack.c.b16 %v3925, %v3923
        %v4898 = vpack.c.b16 %v3928, %v3926
        %v4899 = vpack.c.b16 %v3929, %v3927
        %v4900 = vpack.c.b16 %v3932, %v3930
        %v4901 = vpack.c.b16 %v3933, %v3931
        %v4902 = vpack.c.b16 %v3936, %v3934
        %v4903 = vpack.c.b16 %v3937, %v3935
        %v4904 = vpack.c.b16 %v3940, %v3938
        %v4905 = vpack.c.b16 %v3941, %v3939
        %v4906 = vpack.c.b16 %v3944, %v3942
        %v4907 = vpack.c.b16 %v3945, %v3943
        %v4908 = vpack.c.b16 %v3948, %v3946
        %v4909 = vpack.c.b16 %v3949, %v3947
        %v4910 = vpack.c.b16 %v3952, %v3950
        %v4911 = vpack.c.b16 %v3953, %v3951
        %v4912 = vpack.c.b16 %v3956, %v3954
        %v4913 = vpack.c.b16 %v3957, %v3955
        %v4914 = vpack.c.b16 %v3960, %v3958
        %v4915 = vpack.c.b16 %v3961, %v3959
        %v4916 = vpack.c.b16 %v3964, %v3962
        %v4917 = vpack.c.b16 %v3965, %v3963
        %v4918 = vpack.c.b16 %v3968, %v3966
        %v4919 = vpack.c.b16 %v3969, %v3967
        %v4920 = vpack.c.b16 %v3972, %v3970
        %v4921 = vpack.c.b16 %v3973, %v3971
        %v4922 = vpack.c.b16 %v3976, %v3974
        %v4923 = vpack.c.b16 %v3977, %v3975
        %v4924 = vpack.c.b16 %v3980, %v3978
        %v4925 = vpack.c.b16 %v3981, %v3979
        %v4926 = vpack.c.b16 %v3984, %v3982
        %v4927 = vpack.c.b16 %v3985, %v3983
        %v4928 = vpack.c.b16 %v3988, %v3986
        %v4929 = vpack.c.b16 %v3989, %v3987
        %v4930 = vpack.c.b16 %v3992, %v3990
        %v4931 = vpack.c.b16 %v3993, %v3991
        %v4932 = vpack.c.b16 %v3996, %v3994
        %v4933 = vpack.c.b16 %v3997, %v3995
        %v4934 = vpack.c.b16 %v4000, %v3998
        %v4935 = vpack.c.b16 %v4001, %v3999
        %v4936 = vpack.c.b16 %v4004, %v4002
        %v4937 = vpack.c.b16 %v4005, %v4003
        %v4938 = vpack.c.b16 %v4008, %v4006
        %v4939 = vpack.c.b16 %v4009, %v4007
        %v4940 = vpack.c.b16 %v4012, %v4010
        %v4941 = vpack.c.b16 %v4013, %v4011
        %v4942 = vpack.c.b16 %v4016, %v4014
        %v4943 = vpack.c.b16 %v4017, %v4015
        %v4944 = vpack.c.b16 %v4020, %v4018
        %v4945 = vpack.c.b16 %v4021, %v4019
        %v4946 = vpack.c.b16 %v4024, %v4022
        %v4947 = vpack.c.b16 %v4025, %v4023
        %v4948 = vpack.c.b16 %v4028, %v4026
        %v4949 = vpack.c.b16 %v4029, %v4027
        %v4950 = vpack.c.b16 %v4032, %v4030
        %v4951 = vpack.c.b16 %v4033, %v4031
        %v4952 = vpack.c.b16 %v4036, %v4034
        %v4953 = vpack.c.b16 %v4037, %v4035
        %v4954 = vpack.c.b16 %v4040, %v4038
        %v4955 = vpack.c.b16 %v4041, %v4039
        %v4956 = vpack.c.b16 %v4044, %v4042
        %v4957 = vpack.c.b16 %v4045, %v4043
        %v4958 = vpack.c.b16 %v4048, %v4046
        %v4959 = vpack.c.b16 %v4049, %v4047
        %v4960 = vpack.c.b16 %v4052, %v4050
        %v4961 = vpack.c.b16 %v4053, %v4051
        %v4962 = vpack.c.b16 %v4056, %v4054
        %v4963 = vpack.c.b16 %v4057, %v4055
        %v4964 = vpack.c.b16 %v4060, %v4058
        %v4965 = vpack.c.b16 %v4061, %v4059
        %v4966 = vpack.c.b16 %v4064, %v4062
        %v4967 = vpack.c.b16 %v4065, %v4063
        %v4968 = vpack.c.b16 %v4068, %v4066
        %v4969 = vpack.c.b16 %v4069, %v4067
        %v4970 = vpack.c.b16 %v4072, %v4070
        %v4971 = vpack.c.b16 %v4073, %v4071
        %v4972 = vpack.c.b16 %v4076, %v4074
        %v4973 = vpack.c.b16 %v4077, %v4075
        %5870 = vmatprep.subr.bf16.mxu0 %v4079
        %5871 = vmatpush1.bf16.msra.mxu0 %v4078
        %5872 = vmatprep.subr.bf16.mxu0 %v4081
        %5873 = vmatpush1.bf16.msra.mxu0 %v4080
        %5874 = vmatprep.subr.bf16.mxu0 %v4083
        %5875 = vmatpush1.bf16.msra.mxu0 %v4082
        %5876 = vmatprep.subr.bf16.mxu0 %v4085
        %5877 = vmatpush1.bf16.msra.mxu0 %v4084
        %5878 = vmatprep.subr.bf16.mxu0 %v4087
        %5879 = vmatpush1.bf16.msra.mxu0 %v4086
        %5880 = vmatprep.subr.bf16.mxu0 %v4089
        %5881 = vmatpush1.bf16.msra.mxu0 %v4088
        %5882 = vmatprep.subr.bf16.mxu0 %v4091
        %5883 = vmatpush1.bf16.msra.mxu0 %v4090
        %5884 = vmatprep.subr.bf16.mxu0 %v4093
        %5885 = vmatpush1.bf16.msra.mxu0 %v4092
        %5886 = vmatprep.subr.bf16.mxu0 %v4095
        %5887 = vmatpush1.bf16.msra.mxu0 %v4094
        %5888 = vmatprep.subr.bf16.mxu0 %v4097
        %5889 = vmatpush1.bf16.msra.mxu0 %v4096
        %5890 = vmatprep.subr.bf16.mxu0 %v4099
        %5891 = vmatpush1.bf16.msra.mxu0 %v4098
        %5892 = vmatprep.subr.bf16.mxu0 %v4101
        %5893 = vmatpush1.bf16.msra.mxu0 %v4100
        %5894 = vmatprep.subr.bf16.mxu0 %v4103
        %5895 = vmatpush1.bf16.msra.mxu0 %v4102
        %5896 = vmatprep.subr.bf16.mxu0 %v4105
        %5897 = vmatpush1.bf16.msra.mxu0 %v4104
        %5898 = vmatprep.subr.bf16.mxu0 %v4107
        %5899 = vmatpush1.bf16.msra.mxu0 %v4106
        %5900 = vmatprep.subr.bf16.mxu0 %v4109
        %5901 = vmatpush1.bf16.msra.mxu0 %v4108
        %5902 = vmatprep.mubr.bf16.mxu0 %v1279
        %5903 = vmatmul.mubr.bf16.gmra.mrb[0].mxu0 %v1278
        %v5904 = vpop.f32.mrb[0].mxu0
        %v5905 = vadd.f32 0.0, %v5904
        %v5906 = vpop.f32.mrb[0].mxu0
        %v5907 = vadd.f32 0.0, %v5906
        %v5908 = vpop.f32.mrb[0].mxu0
        %v5909 = vpop.f32.mrb[0].mxu0
        %5910 = vdwg.mxu0
        %5911 = vmatprep.subr.bf16.mxu0 %v4111
        %5912 = vmatpush1.bf16.msra.mxu0 %v4110
        %5913 = vmatprep.subr.bf16.mxu0 %v4113
        %5914 = vmatpush1.bf16.msra.mxu0 %v4112
        %5915 = vmatprep.subr.bf16.mxu0 %v4115
        %5916 = vmatpush1.bf16.msra.mxu0 %v4114
        %5917 = vmatprep.subr.bf16.mxu0 %v4117
        %5918 = vmatpush1.bf16.msra.mxu0 %v4116
        %5919 = vmatprep.subr.bf16.mxu0 %v4119
        %5920 = vmatpush1.bf16.msra.mxu0 %v4118
        %5921 = vmatprep.subr.bf16.mxu0 %v4121
        %5922 = vmatpush1.bf16.msra.mxu0 %v4120
        %5923 = vmatprep.subr.bf16.mxu0 %v4123
        %5924 = vmatpush1.bf16.msra.mxu0 %v4122
        %5925 = vmatprep.subr.bf16.mxu0 %v4125
        %5926 = vmatpush1.bf16.msra.mxu0 %v4124
        %5927 = vmatprep.subr.bf16.mxu0 %v4127
        %5928 = vmatpush1.bf16.msra.mxu0 %v4126
        %5929 = vmatprep.subr.bf16.mxu0 %v4129
        %5930 = vmatpush1.bf16.msra.mxu0 %v4128
        %5931 = vmatprep.subr.bf16.mxu0 %v4131
        %5932 = vmatpush1.bf16.msra.mxu0 %v4130
        %5933 = vmatprep.subr.bf16.mxu0 %v4133
        %5934 = vmatpush1.bf16.msra.mxu0 %v4132
        %5935 = vmatprep.subr.bf16.mxu0 %v4135
        %5936 = vmatpush1.bf16.msra.mxu0 %v4134
        %5937 = vmatprep.subr.bf16.mxu0 %v4137
        %5938 = vmatpush1.bf16.msra.mxu0 %v4136
        %5939 = vmatprep.subr.bf16.mxu0 %v4139
        %5940 = vmatpush1.bf16.msra.mxu0 %v4138
        %5941 = vmatprep.subr.bf16.mxu0 %v4141
        %5942 = vmatpush1.bf16.msra.mxu0 %v4140
        %5943 = vmatprep.mubr.bf16.mxu0 %v1281
        %5944 = vmatmul.mubr.bf16.gmra.mrb[0].mxu0 %v1280
        %v5945 = vpop.f32.mrb[0].mxu0
        %v5946 = vadd.f32 %v5905, %v5945
        %v5947 = vpop.f32.mrb[0].mxu0
        %v5948 = vadd.f32 %v5907, %v5947
        %v5949 = vpop.f32.mrb[0].mxu0
        %v5950 = vpop.f32.mrb[0].mxu0
        %5951 = vdwg.mxu0
        %5952 = vmatprep.subr.bf16.mxu0 %v4143
        %5953 = vmatpush1.bf16.msra.mxu0 %v4142
        %5954 = vmatprep.subr.bf16.mxu0 %v4145
        %5955 = vmatpush1.bf16.msra.mxu0 %v4144
        %5956 = vmatprep.subr.bf16.mxu0 %v4147
        %5957 = vmatpush1.bf16.msra.mxu0 %v4146
        %5958 = vmatprep.subr.bf16.mxu0 %v4149
        %5959 = vmatpush1.bf16.msra.mxu0 %v4148
        %5960 = vmatprep.subr.bf16.mxu0 %v4151
        %5961 = vmatpush1.bf16.msra.mxu0 %v4150
        %5962 = vmatprep.subr.bf16.mxu0 %v4153
        %5963 = vmatpush1.bf16.msra.mxu0 %v4152
        %5964 = vmatprep.subr.bf16.mxu0 %v4155
        %5965 = vmatpush1.bf16.msra.mxu0 %v4154
        %5966 = vmatprep.subr.bf16.mxu0 %v4157
        %5967 = vmatpush1.bf16.msra.mxu0 %v4156
        %5968 = vmatprep.subr.bf16.mxu0 %v4159
        %5969 = vmatpush1.bf16.msra.mxu0 %v4158
        %5970 = vmatprep.subr.bf16.mxu0 %v4161
        %5971 = vmatpush1.bf16.msra.mxu0 %v4160
        %5972 = vmatprep.subr.bf16.mxu0 %v4163
        %5973 = vmatpush1.bf16.msra.mxu0 %v4162
        %5974 = vmatprep.subr.bf16.mxu0 %v4165
        %5975 = vmatpush1.bf16.msra.mxu0 %v4164
        %5976 = vmatprep.subr.bf16.mxu0 %v4167
        %5977 = vmatpush1.bf16.msra.mxu0 %v4166
        %5978 = vmatprep.subr.bf16.mxu0 %v4169
        %5979 = vmatpush1.bf16.msra.mxu0 %v4168
        %5980 = vmatprep.subr.bf16.mxu0 %v4171
        %5981 = vmatpush1.bf16.msra.mxu0 %v4170
        %5982 = vmatprep.subr.bf16.mxu0 %v4173
        %5983 = vmatpush1.bf16.msra.mxu0 %v4172
        %5984 = vmatprep.mubr.bf16.mxu0 %v1283
        %5985 = vmatmul.mubr.bf16.gmra.mrb[0].mxu0 %v1282
        %v5986 = vpop.f32.mrb[0].mxu0
        %v5987 = vadd.f32 %v5946, %v5986
        %v5988 = vpop.f32.mrb[0].mxu0
        %v5989 = vadd.f32 %v5948, %v5988
        %v5990 = vpop.f32.mrb[0].mxu0
        %v5991 = vpop.f32.mrb[0].mxu0
        %5992 = vdwg.mxu0
        %5993 = vmatprep.subr.bf16.mxu0 %v4175
        %5994 = vmatpush1.bf16.msra.mxu0 %v4174
        %5995 = vmatprep.subr.bf16.mxu0 %v4177
        %5996 = vmatpush1.bf16.msra.mxu0 %v4176
        %5997 = vmatprep.subr.bf16.mxu0 %v4179
        %5998 = vmatpush1.bf16.msra.mxu0 %v4178
        %5999 = vmatprep.subr.bf16.mxu0 %v4181
        %6000 = vmatpush1.bf16.msra.mxu0 %v4180
        %6001 = vmatprep.subr.bf16.mxu0 %v4183
        %6002 = vmatpush1.bf16.msra.mxu0 %v4182
        %6003 = vmatprep.subr.bf16.mxu0 %v4185
        %6004 = vmatpush1.bf16.msra.mxu0 %v4184
        %6005 = vmatprep.subr.bf16.mxu0 %v4187
        %6006 = vmatpush1.bf16.msra.mxu0 %v4186
        %6007 = vmatprep.subr.bf16.mxu0 %v4189
        %6008 = vmatpush1.bf16.msra.mxu0 %v4188
        %6009 = vmatprep.subr.bf16.mxu0 %v4191
        %6010 = vmatpush1.bf16.msra.mxu0 %v4190
        %6011 = vmatprep.subr.bf16.mxu0 %v4193
        %6012 = vmatpush1.bf16.msra.mxu0 %v4192
        %6013 = vmatprep.subr.bf16.mxu0 %v4195
        %6014 = vmatpush1.bf16.msra.mxu0 %v4194
        %6015 = vmatprep.subr.bf16.mxu0 %v4197
        %6016 = vmatpush1.bf16.msra.mxu0 %v4196
        %6017 = vmatprep.subr.bf16.mxu0 %v4199
        %6018 = vmatpush1.bf16.msra.mxu0 %v4198
        %6019 = vmatprep.subr.bf16.mxu0 %v4201
        %6020 = vmatpush1.bf16.msra.mxu0 %v4200
        %6021 = vmatprep.subr.bf16.mxu0 %v4203
        %6022 = vmatpush1.bf16.msra.mxu0 %v4202
        %6023 = vmatprep.subr.bf16.mxu0 %v4205
        %6024 = vmatpush1.bf16.msra.mxu0 %v4204
        %6025 = vmatprep.mubr.bf16.mxu0 %v1285
        %6026 = vmatmul.mubr.bf16.gmra.mrb[0].mxu0 %v1284
        %v6027 = vpop.f32.mrb[0].mxu0
        %v6028 = vadd.f32 %v5987, %v6027
        %v6029 = vpop.f32.mrb[0].mxu0
        %v6030 = vadd.f32 %v5989, %v6029
        %v6031 = vpop.f32.mrb[0].mxu0
        %v6032 = vpop.f32.mrb[0].mxu0
        %6033 = vdwg.mxu0
        %6034 = vmatprep.subr.bf16.mxu0 %v4207
        %6035 = vmatpush1.bf16.msra.mxu0 %v4206
        %6036 = vmatprep.subr.bf16.mxu0 %v4209
        %6037 = vmatpush1.bf16.msra.mxu0 %v4208
        %6038 = vmatprep.subr.bf16.mxu0 %v4211
        %6039 = vmatpush1.bf16.msra.mxu0 %v4210
        %6040 = vmatprep.subr.bf16.mxu0 %v4213
        %6041 = vmatpush1.bf16.msra.mxu0 %v4212
        %6042 = vmatprep.subr.bf16.mxu0 %v4215
        %6043 = vmatpush1.bf16.msra.mxu0 %v4214
        %6044 = vmatprep.subr.bf16.mxu0 %v4217
        %6045 = vmatpush1.bf16.msra.mxu0 %v4216
        %6046 = vmatprep.subr.bf16.mxu0 %v4219
        %6047 = vmatpush1.bf16.msra.mxu0 %v4218
        %6048 = vmatprep.subr.bf16.mxu0 %v4221
        %6049 = vmatpush1.bf16.msra.mxu0 %v4220
        %6050 = vmatprep.subr.bf16.mxu0 %v4223
        %6051 = vmatpush1.bf16.msra.mxu0 %v4222
        %6052 = vmatprep.subr.bf16.mxu0 %v4225
        %6053 = vmatpush1.bf16.msra.mxu0 %v4224
        %6054 = vmatprep.subr.bf16.mxu0 %v4227
        %6055 = vmatpush1.bf16.msra.mxu0 %v4226
        %6056 = vmatprep.subr.bf16.mxu0 %v4229
        %6057 = vmatpush1.bf16.msra.mxu0 %v4228
        %6058 = vmatprep.subr.bf16.mxu0 %v4231
        %6059 = vmatpush1.bf16.msra.mxu0 %v4230
        %6060 = vmatprep.subr.bf16.mxu0 %v4233
        %6061 = vmatpush1.bf16.msra.mxu0 %v4232
        %6062 = vmatprep.subr.bf16.mxu0 %v4235
        %6063 = vmatpush1.bf16.msra.mxu0 %v4234
        %6064 = vmatprep.subr.bf16.mxu0 %v4237
        %6065 = vmatpush1.bf16.msra.mxu0 %v4236
        %6066 = vmatprep.mubr.bf16.mxu0 %v1287
        %6067 = vmatmul.mubr.bf16.gmra.mrb[0].mxu0 %v1286
        %v6068 = vpop.f32.mrb[0].mxu0
        %v6069 = vadd.f32 %v6028, %v6068
        %v6070 = vpop.f32.mrb[0].mxu0
        %v6071 = vadd.f32 %v6030, %v6070
        %v6072 = vpop.f32.mrb[0].mxu0
        %v6073 = vpop.f32.mrb[0].mxu0
        %6074 = vdwg.mxu0
        %6075 = vmatprep.subr.bf16.mxu0 %v4239
        %6076 = vmatpush1.bf16.msra.mxu0 %v4238
        %6077 = vmatprep.subr.bf16.mxu0 %v4241
        %6078 = vmatpush1.bf16.msra.mxu0 %v4240
        %6079 = vmatprep.subr.bf16.mxu0 %v4243
        %6080 = vmatpush1.bf16.msra.mxu0 %v4242
        %6081 = vmatprep.subr.bf16.mxu0 %v4245
        %6082 = vmatpush1.bf16.msra.mxu0 %v4244
        %6083 = vmatprep.subr.bf16.mxu0 %v4247
        %6084 = vmatpush1.bf16.msra.mxu0 %v4246
        %6085 = vmatprep.subr.bf16.mxu0 %v4249
        %6086 = vmatpush1.bf16.msra.mxu0 %v4248
        %6087 = vmatprep.subr.bf16.mxu0 %v4251
        %6088 = vmatpush1.bf16.msra.mxu0 %v4250
        %6089 = vmatprep.subr.bf16.mxu0 %v4253
        %6090 = vmatpush1.bf16.msra.mxu0 %v4252
        %6091 = vmatprep.subr.bf16.mxu0 %v4255
        %6092 = vmatpush1.bf16.msra.mxu0 %v4254
        %6093 = vmatprep.subr.bf16.mxu0 %v4257
        %6094 = vmatpush1.bf16.msra.mxu0 %v4256
        %6095 = vmatprep.subr.bf16.mxu0 %v4259
        %6096 = vmatpush1.bf16.msra.mxu0 %v4258
        %6097 = vmatprep.subr.bf16.mxu0 %v4261
        %6098 = vmatpush1.bf16.msra.mxu0 %v4260
        %6099 = vmatprep.subr.bf16.mxu0 %v4263
        %6100 = vmatpush1.bf16.msra.mxu0 %v4262
        %6101 = vmatprep.subr.bf16.mxu0 %v4265
        %6102 = vmatpush1.bf16.msra.mxu0 %v4264
        %6103 = vmatprep.subr.bf16.mxu0 %v4267
        %6104 = vmatpush1.bf16.msra.mxu0 %v4266
        %6105 = vmatprep.subr.bf16.mxu0 %v4269
        %6106 = vmatpush1.bf16.msra.mxu0 %v4268
        %6107 = vmatprep.mubr.bf16.mxu0 %v1289
        %6108 = vmatmul.mubr.bf16.gmra.mrb[0].mxu0 %v1288
        %v6109 = vpop.f32.mrb[0].mxu0
        %v6110 = vadd.f32 %v6069, %v6109
        %v6111 = vpop.f32.mrb[0].mxu0
        %v6112 = vadd.f32 %v6071, %v6111
        %v6113 = vpop.f32.mrb[0].mxu0
        %v6114 = vpop.f32.mrb[0].mxu0
        %6115 = vdwg.mxu0
        %6116 = vmatprep.subr.bf16.mxu0 %v4271
        %6117 = vmatpush1.bf16.msra.mxu0 %v4270
        %6118 = vmatprep.subr.bf16.mxu0 %v4273
        %6119 = vmatpush1.bf16.msra.mxu0 %v4272
        %6120 = vmatprep.subr.bf16.mxu0 %v4275
        %6121 = vmatpush1.bf16.msra.mxu0 %v4274
        %6122 = vmatprep.subr.bf16.mxu0 %v4277
        %6123 = vmatpush1.bf16.msra.mxu0 %v4276
        %6124 = vmatprep.subr.bf16.mxu0 %v4279
        %6125 = vmatpush1.bf16.msra.mxu0 %v4278
        %6126 = vmatprep.subr.bf16.mxu0 %v4281
        %6127 = vmatpush1.bf16.msra.mxu0 %v4280
        %6128 = vmatprep.subr.bf16.mxu0 %v4283
        %6129 = vmatpush1.bf16.msra.mxu0 %v4282
        %6130 = vmatprep.subr.bf16.mxu0 %v4285
        %6131 = vmatpush1.bf16.msra.mxu0 %v4284
        %6132 = vmatprep.subr.bf16.mxu0 %v4287
        %6133 = vmatpush1.bf16.msra.mxu0 %v4286
        %6134 = vmatprep.subr.bf16.mxu0 %v4289
        %6135 = vmatpush1.bf16.msra.mxu0 %v4288
        %6136 = vmatprep.subr.bf16.mxu0 %v4291
        %6137 = vmatpush1.bf16.msra.mxu0 %v4290
        %6138 = vmatprep.subr.bf16.mxu0 %v4293
        %6139 = vmatpush1.bf16.msra.mxu0 %v4292
        %6140 = vmatprep.subr.bf16.mxu0 %v4295
        %6141 = vmatpush1.bf16.msra.mxu0 %v4294
        %6142 = vmatprep.subr.bf16.mxu0 %v4297
        %6143 = vmatpush1.bf16.msra.mxu0 %v4296
        %6144 = vmatprep.subr.bf16.mxu0 %v4299
        %6145 = vmatpush1.bf16.msra.mxu0 %v4298
        %6146 = vmatprep.subr.bf16.mxu0 %v4301
        %6147 = vmatpush1.bf16.msra.mxu0 %v4300
        %6148 = vmatprep.mubr.bf16.mxu0 %v1291
        %6149 = vmatmul.mubr.bf16.gmra.mrb[0].mxu0 %v1290
        %v6150 = vpop.f32.mrb[0].mxu0
        %v6151 = vadd.f32 %v6110, %v6150
        %v6152 = vpop.f32.mrb[0].mxu0
        %v6153 = vadd.f32 %v6112, %v6152
        %v6154 = vpop.f32.mrb[0].mxu0
        %v6155 = vpop.f32.mrb[0].mxu0
        %6156 = vdwg.mxu0
        %6157 = vmatprep.subr.bf16.mxu0 %v4303
        %6158 = vmatpush1.bf16.msra.mxu0 %v4302
        %6159 = vmatprep.subr.bf16.mxu0 %v4305
        %6160 = vmatpush1.bf16.msra.mxu0 %v4304
        %6161 = vmatprep.subr.bf16.mxu0 %v4307
        %6162 = vmatpush1.bf16.msra.mxu0 %v4306
        %6163 = vmatprep.subr.bf16.mxu0 %v4309
        %6164 = vmatpush1.bf16.msra.mxu0 %v4308
        %6165 = vmatprep.subr.bf16.mxu0 %v4311
        %6166 = vmatpush1.bf16.msra.mxu0 %v4310
        %6167 = vmatprep.subr.bf16.mxu0 %v4313
        %6168 = vmatpush1.bf16.msra.mxu0 %v4312
        %6169 = vmatprep.subr.bf16.mxu0 %v4315
        %6170 = vmatpush1.bf16.msra.mxu0 %v4314
        %6171 = vmatprep.subr.bf16.mxu0 %v4317
        %6172 = vmatpush1.bf16.msra.mxu0 %v4316
        %6173 = vmatprep.subr.bf16.mxu0 %v4319
        %6174 = vmatpush1.bf16.msra.mxu0 %v4318
        %6175 = vmatprep.subr.bf16.mxu0 %v4321
        %6176 = vmatpush1.bf16.msra.mxu0 %v4320
        %6177 = vmatprep.subr.bf16.mxu0 %v4323
        %6178 = vmatpush1.bf16.msra.mxu0 %v4322
        %6179 = vmatprep.subr.bf16.mxu0 %v4325
        %6180 = vmatpush1.bf16.msra.mxu0 %v4324
        %6181 = vmatprep.subr.bf16.mxu0 %v4327
        %6182 = vmatpush1.bf16.msra.mxu0 %v4326
        %6183 = vmatprep.subr.bf16.mxu0 %v4329
        %6184 = vmatpush1.bf16.msra.mxu0 %v4328
        %6185 = vmatprep.subr.bf16.mxu0 %v4331
        %6186 = vmatpush1.bf16.msra.mxu0 %v4330
        %6187 = vmatprep.subr.bf16.mxu0 %v4333
        %6188 = vmatpush1.bf16.msra.mxu0 %v4332
        %6189 = vmatprep.mubr.bf16.mxu0 %v1293
        %6190 = vmatmul.mubr.bf16.gmra.mrb[0].mxu0 %v1292
        %v6191 = vpop.f32.mrb[0].mxu0
        %v6192 = vadd.f32 %v6151, %v6191
        %v6193 = vpop.f32.mrb[0].mxu0
        %v6194 = vadd.f32 %v6153, %v6193
        %v6195 = vpop.f32.mrb[0].mxu0
        %v6196 = vpop.f32.mrb[0].mxu0
        %6197 = vdwg.mxu0
        %6198 = vmatprep.subr.bf16.mxu0 %v4335
        %6199 = vmatpush1.bf16.msra.mxu0 %v4334
        %6200 = vmatprep.subr.bf16.mxu0 %v4337
        %6201 = vmatpush1.bf16.msra.mxu0 %v4336
        %6202 = vmatprep.subr.bf16.mxu0 %v4339
        %6203 = vmatpush1.bf16.msra.mxu0 %v4338
        %6204 = vmatprep.subr.bf16.mxu0 %v4341
        %6205 = vmatpush1.bf16.msra.mxu0 %v4340
        %6206 = vmatprep.subr.bf16.mxu0 %v4343
        %6207 = vmatpush1.bf16.msra.mxu0 %v4342
        %6208 = vmatprep.subr.bf16.mxu0 %v4345
        %6209 = vmatpush1.bf16.msra.mxu0 %v4344
        %6210 = vmatprep.subr.bf16.mxu0 %v4347
        %6211 = vmatpush1.bf16.msra.mxu0 %v4346
        %6212 = vmatprep.subr.bf16.mxu0 %v4349
        %6213 = vmatpush1.bf16.msra.mxu0 %v4348
        %6214 = vmatprep.subr.bf16.mxu0 %v4351
        %6215 = vmatpush1.bf16.msra.mxu0 %v4350
        %6216 = vmatprep.subr.bf16.mxu0 %v4353
        %6217 = vmatpush1.bf16.msra.mxu0 %v4352
        %6218 = vmatprep.subr.bf16.mxu0 %v4355
        %6219 = vmatpush1.bf16.msra.mxu0 %v4354
        %6220 = vmatprep.subr.bf16.mxu0 %v4357
        %6221 = vmatpush1.bf16.msra.mxu0 %v4356
        %6222 = vmatprep.subr.bf16.mxu0 %v4359
        %6223 = vmatpush1.bf16.msra.mxu0 %v4358
        %6224 = vmatprep.subr.bf16.mxu0 %v4361
        %6225 = vmatpush1.bf16.msra.mxu0 %v4360
        %6226 = vmatprep.subr.bf16.mxu0 %v4363
        %6227 = vmatpush1.bf16.msra.mxu0 %v4362
        %6228 = vmatprep.subr.bf16.mxu0 %v4365
        %6229 = vmatpush1.bf16.msra.mxu0 %v4364
        %6230 = vmatprep.mubr.bf16.mxu0 %v1295
        %6231 = vmatmul.mubr.bf16.gmra.mrb[0].mxu0 %v1294
        %v6232 = vpop.f32.mrb[0].mxu0
        %v6233 = vadd.f32 %v6192, %v6232
        %v6234 = vpop.f32.mrb[0].mxu0
        %v6235 = vadd.f32 %v6194, %v6234
        %v6236 = vpop.f32.mrb[0].mxu0
        %v6237 = vpop.f32.mrb[0].mxu0
        %6238 = vdwg.mxu0
        %6239 = vmatprep.subr.bf16.mxu0 %v4367
        %6240 = vmatpush1.bf16.msra.mxu0 %v4366
        %6241 = vmatprep.subr.bf16.mxu0 %v4369
        %6242 = vmatpush1.bf16.msra.mxu0 %v4368
        %6243 = vmatprep.subr.bf16.mxu0 %v4371
        %6244 = vmatpush1.bf16.msra.mxu0 %v4370
        %6245 = vmatprep.subr.bf16.mxu0 %v4373
        %6246 = vmatpush1.bf16.msra.mxu0 %v4372
        %6247 = vmatprep.subr.bf16.mxu0 %v4375
        %6248 = vmatpush1.bf16.msra.mxu0 %v4374
        %6249 = vmatprep.subr.bf16.mxu0 %v4377
        %6250 = vmatpush1.bf16.msra.mxu0 %v4376
        %6251 = vmatprep.subr.bf16.mxu0 %v4379
        %6252 = vmatpush1.bf16.msra.mxu0 %v4378
        %6253 = vmatprep.subr.bf16.mxu0 %v4381
        %6254 = vmatpush1.bf16.msra.mxu0 %v4380
        %6255 = vmatprep.subr.bf16.mxu0 %v4383
        %6256 = vmatpush1.bf16.msra.mxu0 %v4382
        %6257 = vmatprep.subr.bf16.mxu0 %v4385
        %6258 = vmatpush1.bf16.msra.mxu0 %v4384
        %6259 = vmatprep.subr.bf16.mxu0 %v4387
        %6260 = vmatpush1.bf16.msra.mxu0 %v4386
        %6261 = vmatprep.subr.bf16.mxu0 %v4389
        %6262 = vmatpush1.bf16.msra.mxu0 %v4388
        %6263 = vmatprep.subr.bf16.mxu0 %v4391
        %6264 = vmatpush1.bf16.msra.mxu0 %v4390
        %6265 = vmatprep.subr.bf16.mxu0 %v4393
        %6266 = vmatpush1.bf16.msra.mxu0 %v4392
        %6267 = vmatprep.subr.bf16.mxu0 %v4395
        %6268 = vmatpush1.bf16.msra.mxu0 %v4394
        %6269 = vmatprep.subr.bf16.mxu0 %v4397
        %6270 = vmatpush1.bf16.msra.mxu0 %v4396
        %6271 = vmatprep.mubr.bf16.mxu0 %v1297
        %6272 = vmatmul.mubr.bf16.gmra.mrb[0].mxu0 %v1296
        %v6273 = vpop.f32.mrb[0].mxu0
        %v6274 = vadd.f32 %v6233, %v6273
        %v6275 = vpop.f32.mrb[0].mxu0
        %v6276 = vadd.f32 %v6235, %v6275
        %v6277 = vpop.f32.mrb[0].mxu0
        %v6278 = vpop.f32.mrb[0].mxu0
        %6279 = vdwg.mxu0
        %6280 = vmatprep.subr.bf16.mxu0 %v4399
        %6281 = vmatpush1.bf16.msra.mxu0 %v4398
        %6282 = vmatprep.subr.bf16.mxu0 %v4401
        %6283 = vmatpush1.bf16.msra.mxu0 %v4400
        %6284 = vmatprep.subr.bf16.mxu0 %v4403
        %6285 = vmatpush1.bf16.msra.mxu0 %v4402
        %6286 = vmatprep.subr.bf16.mxu0 %v4405
        %6287 = vmatpush1.bf16.msra.mxu0 %v4404
        %6288 = vmatprep.subr.bf16.mxu0 %v4407
        %6289 = vmatpush1.bf16.msra.mxu0 %v4406
        %6290 = vmatprep.subr.bf16.mxu0 %v4409
        %6291 = vmatpush1.bf16.msra.mxu0 %v4408
        %6292 = vmatprep.subr.bf16.mxu0 %v4411
        %6293 = vmatpush1.bf16.msra.mxu0 %v4410
        %6294 = vmatprep.subr.bf16.mxu0 %v4413
        %6295 = vmatpush1.bf16.msra.mxu0 %v4412
        %6296 = vmatprep.subr.bf16.mxu0 %v4415
        %6297 = vmatpush1.bf16.msra.mxu0 %v4414
        %6298 = vmatprep.subr.bf16.mxu0 %v4417
        %6299 = vmatpush1.bf16.msra.mxu0 %v4416
        %6300 = vmatprep.subr.bf16.mxu0 %v4419
        %6301 = vmatpush1.bf16.msra.mxu0 %v4418
        %6302 = vmatprep.subr.bf16.mxu0 %v4421
        %6303 = vmatpush1.bf16.msra.mxu0 %v4420
        %6304 = vmatprep.subr.bf16.mxu0 %v4423
        %6305 = vmatpush1.bf16.msra.mxu0 %v4422
        %6306 = vmatprep.subr.bf16.mxu0 %v4425
        %6307 = vmatpush1.bf16.msra.mxu0 %v4424
        %6308 = vmatprep.subr.bf16.mxu0 %v4427
        %6309 = vmatpush1.bf16.msra.mxu0 %v4426
        %6310 = vmatprep.subr.bf16.mxu0 %v4429
        %6311 = vmatpush1.bf16.msra.mxu0 %v4428
        %6312 = vmatprep.mubr.bf16.mxu0 %v1299
        %6313 = vmatmul.mubr.bf16.gmra.mrb[0].mxu0 %v1298
        %v6314 = vpop.f32.mrb[0].mxu0
        %v6315 = vadd.f32 %v6274, %v6314
        %v6316 = vpop.f32.mrb[0].mxu0
        %v6317 = vadd.f32 %v6276, %v6316
        %v6318 = vpop.f32.mrb[0].mxu0
        %v6319 = vpop.f32.mrb[0].mxu0
        %6320 = vdwg.mxu0
        %6321 = vmatprep.subr.bf16.mxu0 %v4431
        %6322 = vmatpush1.bf16.msra.mxu0 %v4430
        %6323 = vmatprep.subr.bf16.mxu0 %v4433
        %6324 = vmatpush1.bf16.msra.mxu0 %v4432
        %6325 = vmatprep.subr.bf16.mxu0 %v4435
        %6326 = vmatpush1.bf16.msra.mxu0 %v4434
        %6327 = vmatprep.subr.bf16.mxu0 %v4437
        %6328 = vmatpush1.bf16.msra.mxu0 %v4436
        %6329 = vmatprep.subr.bf16.mxu0 %v4439
        %6330 = vmatpush1.bf16.msra.mxu0 %v4438
        %6331 = vmatprep.subr.bf16.mxu0 %v4441
        %6332 = vmatpush1.bf16.msra.mxu0 %v4440
        %6333 = vmatprep.subr.bf16.mxu0 %v4443
        %6334 = vmatpush1.bf16.msra.mxu0 %v4442
        %6335 = vmatprep.subr.bf16.mxu0 %v4445
        %6336 = vmatpush1.bf16.msra.mxu0 %v4444
        %6337 = vmatprep.subr.bf16.mxu0 %v4447
        %6338 = vmatpush1.bf16.msra.mxu0 %v4446
        %6339 = vmatprep.subr.bf16.mxu0 %v4449
        %6340 = vmatpush1.bf16.msra.mxu0 %v4448
        %6341 = vmatprep.subr.bf16.mxu0 %v4451
        %6342 = vmatpush1.bf16.msra.mxu0 %v4450
        %6343 = vmatprep.subr.bf16.mxu0 %v4453
        %6344 = vmatpush1.bf16.msra.mxu0 %v4452
        %6345 = vmatprep.subr.bf16.mxu0 %v4455
        %6346 = vmatpush1.bf16.msra.mxu0 %v4454
        %6347 = vmatprep.subr.bf16.mxu0 %v4457
        %6348 = vmatpush1.bf16.msra.mxu0 %v4456
        %6349 = vmatprep.subr.bf16.mxu0 %v4459
        %6350 = vmatpush1.bf16.msra.mxu0 %v4458
        %6351 = vmatprep.subr.bf16.mxu0 %v4461
        %6352 = vmatpush1.bf16.msra.mxu0 %v4460
        %6353 = vmatprep.mubr.bf16.mxu0 %v1301
        %6354 = vmatmul.mubr.bf16.gmra.mrb[0].mxu0 %v1300
        %v6355 = vpop.f32.mrb[0].mxu0
        %v6356 = vadd.f32 %v6315, %v6355
        %v6357 = vpop.f32.mrb[0].mxu0
        %v6358 = vadd.f32 %v6317, %v6357
        %v6359 = vpop.f32.mrb[0].mxu0
        %v6360 = vpop.f32.mrb[0].mxu0
        %6361 = vdwg.mxu0
        %6362 = vmatprep.subr.bf16.mxu0 %v4463
        %6363 = vmatpush1.bf16.msra.mxu0 %v4462
        %6364 = vmatprep.subr.bf16.mxu0 %v4465
        %6365 = vmatpush1.bf16.msra.mxu0 %v4464
        %6366 = vmatprep.subr.bf16.mxu0 %v4467
        %6367 = vmatpush1.bf16.msra.mxu0 %v4466
        %6368 = vmatprep.subr.bf16.mxu0 %v4469
        %6369 = vmatpush1.bf16.msra.mxu0 %v4468
        %6370 = vmatprep.subr.bf16.mxu0 %v4471
        %6371 = vmatpush1.bf16.msra.mxu0 %v4470
        %6372 = vmatprep.subr.bf16.mxu0 %v4473
        %6373 = vmatpush1.bf16.msra.mxu0 %v4472
        %6374 = vmatprep.subr.bf16.mxu0 %v4475
        %6375 = vmatpush1.bf16.msra.mxu0 %v4474
        %6376 = vmatprep.subr.bf16.mxu0 %v4477
        %6377 = vmatpush1.bf16.msra.mxu0 %v4476
        %6378 = vmatprep.subr.bf16.mxu0 %v4479
        %6379 = vmatpush1.bf16.msra.mxu0 %v4478
        %6380 = vmatprep.subr.bf16.mxu0 %v4481
        %6381 = vmatpush1.bf16.msra.mxu0 %v4480
        %6382 = vmatprep.subr.bf16.mxu0 %v4483
        %6383 = vmatpush1.bf16.msra.mxu0 %v4482
        %6384 = vmatprep.subr.bf16.mxu0 %v4485
        %6385 = vmatpush1.bf16.msra.mxu0 %v4484
        %6386 = vmatprep.subr.bf16.mxu0 %v4487
        %6387 = vmatpush1.bf16.msra.mxu0 %v4486
        %6388 = vmatprep.subr.bf16.mxu0 %v4489
        %6389 = vmatpush1.bf16.msra.mxu0 %v4488
        %6390 = vmatprep.subr.bf16.mxu0 %v4491
        %6391 = vmatpush1.bf16.msra.mxu0 %v4490
        %6392 = vmatprep.subr.bf16.mxu0 %v4493
        %6393 = vmatpush1.bf16.msra.mxu0 %v4492
        %6394 = vmatprep.mubr.bf16.mxu0 %v1303
        %6395 = vmatmul.mubr.bf16.gmra.mrb[0].mxu0 %v1302
        %v6396 = vpop.f32.mrb[0].mxu0
        %v6397 = vadd.f32 %v6356, %v6396
        %v6398 = vpop.f32.mrb[0].mxu0
        %v6399 = vadd.f32 %v6358, %v6398
        %v6400 = vpop.f32.mrb[0].mxu0
        %v6401 = vpop.f32.mrb[0].mxu0
        %6402 = vdwg.mxu0
        %6403 = vmatprep.subr.bf16.mxu0 %v4495
        %6404 = vmatpush1.bf16.msra.mxu0 %v4494
        %6405 = vmatprep.subr.bf16.mxu0 %v4497
        %6406 = vmatpush1.bf16.msra.mxu0 %v4496
        %6407 = vmatprep.subr.bf16.mxu0 %v4499
        %6408 = vmatpush1.bf16.msra.mxu0 %v4498
        %6409 = vmatprep.subr.bf16.mxu0 %v4501
        %6410 = vmatpush1.bf16.msra.mxu0 %v4500
        %6411 = vmatprep.subr.bf16.mxu0 %v4503
        %6412 = vmatpush1.bf16.msra.mxu0 %v4502
        %6413 = vmatprep.subr.bf16.mxu0 %v4505
        %6414 = vmatpush1.bf16.msra.mxu0 %v4504
        %6415 = vmatprep.subr.bf16.mxu0 %v4507
        %6416 = vmatpush1.bf16.msra.mxu0 %v4506
        %6417 = vmatprep.subr.bf16.mxu0 %v4509
        %6418 = vmatpush1.bf16.msra.mxu0 %v4508
        %6419 = vmatprep.subr.bf16.mxu0 %v4511
        %6420 = vmatpush1.bf16.msra.mxu0 %v4510
        %6421 = vmatprep.subr.bf16.mxu0 %v4513
        %6422 = vmatpush1.bf16.msra.mxu0 %v4512
        %6423 = vmatprep.subr.bf16.mxu0 %v4515
        %6424 = vmatpush1.bf16.msra.mxu0 %v4514
        %6425 = vmatprep.subr.bf16.mxu0 %v4517
        %6426 = vmatpush1.bf16.msra.mxu0 %v4516
        %6427 = vmatprep.subr.bf16.mxu0 %v4519
        %6428 = vmatpush1.bf16.msra.mxu0 %v4518
        %6429 = vmatprep.subr.bf16.mxu0 %v4521
        %6430 = vmatpush1.bf16.msra.mxu0 %v4520
        %6431 = vmatprep.subr.bf16.mxu0 %v4523
        %6432 = vmatpush1.bf16.msra.mxu0 %v4522
        %6433 = vmatprep.subr.bf16.mxu0 %v4525
        %6434 = vmatpush1.bf16.msra.mxu0 %v4524
        %6435 = vmatprep.mubr.bf16.mxu0 %v1305
        %6436 = vmatmul.mubr.bf16.gmra.mrb[0].mxu0 %v1304
        %v6437 = vpop.f32.mrb[0].mxu0
        %v6438 = vadd.f32 %v6397, %v6437
        %v6439 = vpop.f32.mrb[0].mxu0
        %v6440 = vadd.f32 %v6399, %v6439
        %v6441 = vpop.f32.mrb[0].mxu0
        %v6442 = vpop.f32.mrb[0].mxu0
        %6443 = vdwg.mxu0
        %6444 = vmatprep.subr.bf16.mxu0 %v4527
        %6445 = vmatpush1.bf16.msra.mxu0 %v4526
        %6446 = vmatprep.subr.bf16.mxu0 %v4529
        %6447 = vmatpush1.bf16.msra.mxu0 %v4528
        %6448 = vmatprep.subr.bf16.mxu0 %v4531
        %6449 = vmatpush1.bf16.msra.mxu0 %v4530
        %6450 = vmatprep.subr.bf16.mxu0 %v4533
        %6451 = vmatpush1.bf16.msra.mxu0 %v4532
        %6452 = vmatprep.subr.bf16.mxu0 %v4535
        %6453 = vmatpush1.bf16.msra.mxu0 %v4534
        %6454 = vmatprep.subr.bf16.mxu0 %v4537
        %6455 = vmatpush1.bf16.msra.mxu0 %v4536
        %6456 = vmatprep.subr.bf16.mxu0 %v4539
        %6457 = vmatpush1.bf16.msra.mxu0 %v4538
        %6458 = vmatprep.subr.bf16.mxu0 %v4541
        %6459 = vmatpush1.bf16.msra.mxu0 %v4540
        %6460 = vmatprep.subr.bf16.mxu0 %v4543
        %6461 = vmatpush1.bf16.msra.mxu0 %v4542
        %6462 = vmatprep.subr.bf16.mxu0 %v4545
        %6463 = vmatpush1.bf16.msra.mxu0 %v4544
        %6464 = vmatprep.subr.bf16.mxu0 %v4547
        %6465 = vmatpush1.bf16.msra.mxu0 %v4546
        %6466 = vmatprep.subr.bf16.mxu0 %v4549
        %6467 = vmatpush1.bf16.msra.mxu0 %v4548
        %6468 = vmatprep.subr.bf16.mxu0 %v4551
        %6469 = vmatpush1.bf16.msra.mxu0 %v4550
        %6470 = vmatprep.subr.bf16.mxu0 %v4553
        %6471 = vmatpush1.bf16.msra.mxu0 %v4552
        %6472 = vmatprep.subr.bf16.mxu0 %v4555
        %6473 = vmatpush1.bf16.msra.mxu0 %v4554
        %6474 = vmatprep.subr.bf16.mxu0 %v4557
        %6475 = vmatpush1.bf16.msra.mxu0 %v4556
        %6476 = vmatprep.mubr.bf16.mxu0 %v1307
        %6477 = vmatmul.mubr.bf16.gmra.mrb[0].mxu0 %v1306
        %v6478 = vpop.f32.mrb[0].mxu0
        %v6479 = vadd.f32 %v6438, %v6478
        %v6480 = vpop.f32.mrb[0].mxu0
        %v6481 = vadd.f32 %v6440, %v6480
        %v6482 = vpop.f32.mrb[0].mxu0
        %v6483 = vpop.f32.mrb[0].mxu0
        %6484 = vdwg.mxu0
        %6485 = vmatprep.subr.bf16.mxu0 %v4559
        %6486 = vmatpush1.bf16.msra.mxu0 %v4558
        %6487 = vmatprep.subr.bf16.mxu0 %v4561
        %6488 = vmatpush1.bf16.msra.mxu0 %v4560
        %6489 = vmatprep.subr.bf16.mxu0 %v4563
        %6490 = vmatpush1.bf16.msra.mxu0 %v4562
        %6491 = vmatprep.subr.bf16.mxu0 %v4565
        %6492 = vmatpush1.bf16.msra.mxu0 %v4564
        %6493 = vmatprep.subr.bf16.mxu0 %v4567
        %6494 = vmatpush1.bf16.msra.mxu0 %v4566
        %6495 = vmatprep.subr.bf16.mxu0 %v4569
        %6496 = vmatpush1.bf16.msra.mxu0 %v4568
        %6497 = vmatprep.subr.bf16.mxu0 %v4571
        %6498 = vmatpush1.bf16.msra.mxu0 %v4570
        %6499 = vmatprep.subr.bf16.mxu0 %v4573
        %6500 = vmatpush1.bf16.msra.mxu0 %v4572
        %6501 = vmatprep.subr.bf16.mxu0 %v4575
        %6502 = vmatpush1.bf16.msra.mxu0 %v4574
        %6503 = vmatprep.subr.bf16.mxu0 %v4577
        %6504 = vmatpush1.bf16.msra.mxu0 %v4576
        %6505 = vmatprep.subr.bf16.mxu0 %v4579
        %6506 = vmatpush1.bf16.msra.mxu0 %v4578
        %6507 = vmatprep.subr.bf16.mxu0 %v4581
        %6508 = vmatpush1.bf16.msra.mxu0 %v4580
        %6509 = vmatprep.subr.bf16.mxu0 %v4583
        %6510 = vmatpush1.bf16.msra.mxu0 %v4582
        %6511 = vmatprep.subr.bf16.mxu0 %v4585
        %6512 = vmatpush1.bf16.msra.mxu0 %v4584
        %6513 = vmatprep.subr.bf16.mxu0 %v4587
        %6514 = vmatpush1.bf16.msra.mxu0 %v4586
        %6515 = vmatprep.subr.bf16.mxu0 %v4589
        %6516 = vmatpush1.bf16.msra.mxu0 %v4588
        %6517 = vmatprep.mubr.bf16.mxu0 %v1309
        %6518 = vmatmul.mubr.bf16.gmra.mrb[0].mxu0 %v1308
        %v6519 = vpop.f32.mrb[0].mxu0
        %v6520 = vadd.f32 %v6479, %v6519
        %v6521 = vpop.f32.mrb[0].mxu0
        %v6522 = vadd.f32 %v6481, %v6521
        %v6523 = vpop.f32.mrb[0].mxu0
        %v6524 = vpop.f32.mrb[0].mxu0
        %6525 = vdwg.mxu0
        %6526 = vmatprep.subr.bf16.mxu0 %v4591
        %6527 = vmatpush1.bf16.msra.mxu0 %v4590
        %6528 = vmatprep.subr.bf16.mxu0 %v4593
        %6529 = vmatpush1.bf16.msra.mxu0 %v4592
        %6530 = vmatprep.subr.bf16.mxu0 %v4595
        %6531 = vmatpush1.bf16.msra.mxu0 %v4594
        %6532 = vmatprep.subr.bf16.mxu0 %v4597
        %6533 = vmatpush1.bf16.msra.mxu0 %v4596
        %6534 = vmatprep.subr.bf16.mxu0 %v4599
        %6535 = vmatpush1.bf16.msra.mxu0 %v4598
        %6536 = vmatprep.subr.bf16.mxu0 %v4601
        %6537 = vmatpush1.bf16.msra.mxu0 %v4600
        %6538 = vmatprep.subr.bf16.mxu0 %v4603
        %6539 = vmatpush1.bf16.msra.mxu0 %v4602
        %6540 = vmatprep.subr.bf16.mxu0 %v4605
        %6541 = vmatpush1.bf16.msra.mxu0 %v4604
        %6542 = vmatprep.subr.bf16.mxu0 %v4607
        %6543 = vmatpush1.bf16.msra.mxu0 %v4606
        %6544 = vmatprep.subr.bf16.mxu0 %v4609
        %6545 = vmatpush1.bf16.msra.mxu0 %v4608
        %6546 = vmatprep.subr.bf16.mxu0 %v4611
        %6547 = vmatpush1.bf16.msra.mxu0 %v4610
        %6548 = vmatprep.subr.bf16.mxu0 %v4613
        %6549 = vmatpush1.bf16.msra.mxu0 %v4612
        %6550 = vmatprep.subr.bf16.mxu0 %v4615
        %6551 = vmatpush1.bf16.msra.mxu0 %v4614
        %6552 = vmatprep.subr.bf16.mxu0 %v4617
        %6553 = vmatpush1.bf16.msra.mxu0 %v4616
        %6554 = vmatprep.subr.bf16.mxu0 %v4619
        %6555 = vmatpush1.bf16.msra.mxu0 %v4618
        %6556 = vmatprep.subr.bf16.mxu0 %v4621
        %6557 = vmatpush1.bf16.msra.mxu0 %v4620
        %6558 = vmatprep.mubr.bf16.mxu0 %v1311
        %6559 = vmatmul.mubr.bf16.gmra.mrb[0].mxu0 %v1310
        %v6560 = vpop.f32.mrb[0].mxu0
        %v6561 = vadd.f32 %v6520, %v6560
        %v6562 = vpop.f32.mrb[0].mxu0
        %v6563 = vadd.f32 %v6522, %v6562
        %v6564 = vpop.f32.mrb[0].mxu0
        %v6565 = vpop.f32.mrb[0].mxu0
        %6566 = vdwg.mxu0
        %6567 = vmatprep.subr.bf16.mxu0 %v4623
        %6568 = vmatpush1.bf16.msra.mxu0 %v4622
        %6569 = vmatprep.subr.bf16.mxu0 %v4625
        %6570 = vmatpush1.bf16.msra.mxu0 %v4624
        %6571 = vmatprep.subr.bf16.mxu0 %v4627
        %6572 = vmatpush1.bf16.msra.mxu0 %v4626
        %6573 = vmatprep.subr.bf16.mxu0 %v4629
        %6574 = vmatpush1.bf16.msra.mxu0 %v4628
        %6575 = vmatprep.subr.bf16.mxu0 %v4631
        %6576 = vmatpush1.bf16.msra.mxu0 %v4630
        %6577 = vmatprep.subr.bf16.mxu0 %v4633
        %6578 = vmatpush1.bf16.msra.mxu0 %v4632
        %6579 = vmatprep.subr.bf16.mxu0 %v4635
        %6580 = vmatpush1.bf16.msra.mxu0 %v4634
        %6581 = vmatprep.subr.bf16.mxu0 %v4637
        %6582 = vmatpush1.bf16.msra.mxu0 %v4636
        %6583 = vmatprep.subr.bf16.mxu0 %v4639
        %6584 = vmatpush1.bf16.msra.mxu0 %v4638
        %6585 = vmatprep.subr.bf16.mxu0 %v4641
        %6586 = vmatpush1.bf16.msra.mxu0 %v4640
        %6587 = vmatprep.subr.bf16.mxu0 %v4643
        %6588 = vmatpush1.bf16.msra.mxu0 %v4642
        %6589 = vmatprep.subr.bf16.mxu0 %v4645
        %6590 = vmatpush1.bf16.msra.mxu0 %v4644
        %6591 = vmatprep.subr.bf16.mxu0 %v4647
        %6592 = vmatpush1.bf16.msra.mxu0 %v4646
        %6593 = vmatprep.subr.bf16.mxu0 %v4649
        %6594 = vmatpush1.bf16.msra.mxu0 %v4648
        %6595 = vmatprep.subr.bf16.mxu0 %v4651
        %6596 = vmatpush1.bf16.msra.mxu0 %v4650
        %6597 = vmatprep.subr.bf16.mxu0 %v4653
        %6598 = vmatpush1.bf16.msra.mxu0 %v4652
        %6599 = vmatprep.mubr.bf16.mxu0 %v1313
        %6600 = vmatmul.mubr.bf16.gmra.mrb[0].mxu0 %v1312
        %v6601 = vpop.f32.mrb[0].mxu0
        %v6602 = vadd.f32 %v6561, %v6601
        %v6603 = vpop.f32.mrb[0].mxu0
        %v6604 = vadd.f32 %v6563, %v6603
        %v6605 = vpop.f32.mrb[0].mxu0
        %v6606 = vpop.f32.mrb[0].mxu0
        %6607 = vdwg.mxu0
        %6608 = vmatprep.subr.bf16.mxu0 %v4655
        %6609 = vmatpush1.bf16.msra.mxu0 %v4654
        %6610 = vmatprep.subr.bf16.mxu0 %v4657
        %6611 = vmatpush1.bf16.msra.mxu0 %v4656
        %6612 = vmatprep.subr.bf16.mxu0 %v4659
        %6613 = vmatpush1.bf16.msra.mxu0 %v4658
        %6614 = vmatprep.subr.bf16.mxu0 %v4661
        %6615 = vmatpush1.bf16.msra.mxu0 %v4660
        %6616 = vmatprep.subr.bf16.mxu0 %v4663
        %6617 = vmatpush1.bf16.msra.mxu0 %v4662
        %6618 = vmatprep.subr.bf16.mxu0 %v4665
        %6619 = vmatpush1.bf16.msra.mxu0 %v4664
        %6620 = vmatprep.subr.bf16.mxu0 %v4667
        %6621 = vmatpush1.bf16.msra.mxu0 %v4666
        %6622 = vmatprep.subr.bf16.mxu0 %v4669
        %6623 = vmatpush1.bf16.msra.mxu0 %v4668
        %6624 = vmatprep.subr.bf16.mxu0 %v4671
        %6625 = vmatpush1.bf16.msra.mxu0 %v4670
        %6626 = vmatprep.subr.bf16.mxu0 %v4673
        %6627 = vmatpush1.bf16.msra.mxu0 %v4672
        %6628 = vmatprep.subr.bf16.mxu0 %v4675
        %6629 = vmatpush1.bf16.msra.mxu0 %v4674
        %6630 = vmatprep.subr.bf16.mxu0 %v4677
        %6631 = vmatpush1.bf16.msra.mxu0 %v4676
        %6632 = vmatprep.subr.bf16.mxu0 %v4679
        %6633 = vmatpush1.bf16.msra.mxu0 %v4678
        %6634 = vmatprep.subr.bf16.mxu0 %v4681
        %6635 = vmatpush1.bf16.msra.mxu0 %v4680
        %6636 = vmatprep.subr.bf16.mxu0 %v4683
        %6637 = vmatpush1.bf16.msra.mxu0 %v4682
        %6638 = vmatprep.subr.bf16.mxu0 %v4685
        %6639 = vmatpush1.bf16.msra.mxu0 %v4684
        %6640 = vmatprep.mubr.bf16.mxu0 %v1315
        %6641 = vmatmul.mubr.bf16.gmra.mrb[0].mxu0 %v1314
        %v6642 = vpop.f32.mrb[0].mxu0
        %v6643 = vadd.f32 %v6602, %v6642
        %v6644 = vpop.f32.mrb[0].mxu0
        %v6645 = vadd.f32 %v6604, %v6644
        %v6646 = vpop.f32.mrb[0].mxu0
        %v6647 = vpop.f32.mrb[0].mxu0
        %6648 = vdwg.mxu0
        %6649 = vmatprep.subr.bf16.mxu0 %v4687
        %6650 = vmatpush1.bf16.msra.mxu0 %v4686
        %6651 = vmatprep.subr.bf16.mxu0 %v4689
        %6652 = vmatpush1.bf16.msra.mxu0 %v4688
        %6653 = vmatprep.subr.bf16.mxu0 %v4691
        %6654 = vmatpush1.bf16.msra.mxu0 %v4690
        %6655 = vmatprep.subr.bf16.mxu0 %v4693
        %6656 = vmatpush1.bf16.msra.mxu0 %v4692
        %6657 = vmatprep.subr.bf16.mxu0 %v4695
        %6658 = vmatpush1.bf16.msra.mxu0 %v4694
        %6659 = vmatprep.subr.bf16.mxu0 %v4697
        %6660 = vmatpush1.bf16.msra.mxu0 %v4696
        %6661 = vmatprep.subr.bf16.mxu0 %v4699
        %6662 = vmatpush1.bf16.msra.mxu0 %v4698
        %6663 = vmatprep.subr.bf16.mxu0 %v4701
        %6664 = vmatpush1.bf16.msra.mxu0 %v4700
        %6665 = vmatprep.subr.bf16.mxu0 %v4703
        %6666 = vmatpush1.bf16.msra.mxu0 %v4702
        %6667 = vmatprep.subr.bf16.mxu0 %v4705
        %6668 = vmatpush1.bf16.msra.mxu0 %v4704
        %6669 = vmatprep.subr.bf16.mxu0 %v4707
        %6670 = vmatpush1.bf16.msra.mxu0 %v4706
        %6671 = vmatprep.subr.bf16.mxu0 %v4709
        %6672 = vmatpush1.bf16.msra.mxu0 %v4708
        %6673 = vmatprep.subr.bf16.mxu0 %v4711
        %6674 = vmatpush1.bf16.msra.mxu0 %v4710
        %6675 = vmatprep.subr.bf16.mxu0 %v4713
        %6676 = vmatpush1.bf16.msra.mxu0 %v4712
        %6677 = vmatprep.subr.bf16.mxu0 %v4715
        %6678 = vmatpush1.bf16.msra.mxu0 %v4714
        %6679 = vmatprep.subr.bf16.mxu0 %v4717
        %6680 = vmatpush1.bf16.msra.mxu0 %v4716
        %6681 = vmatprep.mubr.bf16.mxu0 %v1317
        %6682 = vmatmul.mubr.bf16.gmra.mrb[0].mxu0 %v1316
        %v6683 = vpop.f32.mrb[0].mxu0
        %v6684 = vadd.f32 %v6643, %v6683
        %v6685 = vpop.f32.mrb[0].mxu0
        %v6686 = vadd.f32 %v6645, %v6685
        %v6687 = vpop.f32.mrb[0].mxu0
        %v6688 = vpop.f32.mrb[0].mxu0
        %6689 = vdwg.mxu0
        %6690 = vmatprep.subr.bf16.mxu0 %v4719
        %6691 = vmatpush1.bf16.msra.mxu0 %v4718
        %6692 = vmatprep.subr.bf16.mxu0 %v4721
        %6693 = vmatpush1.bf16.msra.mxu0 %v4720
        %6694 = vmatprep.subr.bf16.mxu0 %v4723
        %6695 = vmatpush1.bf16.msra.mxu0 %v4722
        %6696 = vmatprep.subr.bf16.mxu0 %v4725
        %6697 = vmatpush1.bf16.msra.mxu0 %v4724
        %6698 = vmatprep.subr.bf16.mxu0 %v4727
        %6699 = vmatpush1.bf16.msra.mxu0 %v4726
        %6700 = vmatprep.subr.bf16.mxu0 %v4729
        %6701 = vmatpush1.bf16.msra.mxu0 %v4728
        %6702 = vmatprep.subr.bf16.mxu0 %v4731
        %6703 = vmatpush1.bf16.msra.mxu0 %v4730
        %6704 = vmatprep.subr.bf16.mxu0 %v4733
        %6705 = vmatpush1.bf16.msra.mxu0 %v4732
        %6706 = vmatprep.subr.bf16.mxu0 %v4735
        %6707 = vmatpush1.bf16.msra.mxu0 %v4734
        %6708 = vmatprep.subr.bf16.mxu0 %v4737
        %6709 = vmatpush1.bf16.msra.mxu0 %v4736
        %6710 = vmatprep.subr.bf16.mxu0 %v4739
        %6711 = vmatpush1.bf16.msra.mxu0 %v4738
        %6712 = vmatprep.subr.bf16.mxu0 %v4741
        %6713 = vmatpush1.bf16.msra.mxu0 %v4740
        %6714 = vmatprep.subr.bf16.mxu0 %v4743
        %6715 = vmatpush1.bf16.msra.mxu0 %v4742
        %6716 = vmatprep.subr.bf16.mxu0 %v4745
        %6717 = vmatpush1.bf16.msra.mxu0 %v4744
        %6718 = vmatprep.subr.bf16.mxu0 %v4747
        %6719 = vmatpush1.bf16.msra.mxu0 %v4746
        %6720 = vmatprep.subr.bf16.mxu0 %v4749
        %6721 = vmatpush1.bf16.msra.mxu0 %v4748
        %6722 = vmatprep.mubr.bf16.mxu0 %v1319
        %6723 = vmatmul.mubr.bf16.gmra.mrb[0].mxu0 %v1318
        %v6724 = vpop.f32.mrb[0].mxu0
        %v6725 = vadd.f32 %v6684, %v6724
        %v6726 = vpop.f32.mrb[0].mxu0
        %v6727 = vadd.f32 %v6686, %v6726
        %v6728 = vpop.f32.mrb[0].mxu0
        %v6729 = vpop.f32.mrb[0].mxu0
        %6730 = vdwg.mxu0
        %6731 = vmatprep.subr.bf16.mxu0 %v4751
        %6732 = vmatpush1.bf16.msra.mxu0 %v4750
        %6733 = vmatprep.subr.bf16.mxu0 %v4753
        %6734 = vmatpush1.bf16.msra.mxu0 %v4752
        %6735 = vmatprep.subr.bf16.mxu0 %v4755
        %6736 = vmatpush1.bf16.msra.mxu0 %v4754
        %6737 = vmatprep.subr.bf16.mxu0 %v4757
        %6738 = vmatpush1.bf16.msra.mxu0 %v4756
        %6739 = vmatprep.subr.bf16.mxu0 %v4759
        %6740 = vmatpush1.bf16.msra.mxu0 %v4758
        %6741 = vmatprep.subr.bf16.mxu0 %v4761
        %6742 = vmatpush1.bf16.msra.mxu0 %v4760
        %6743 = vmatprep.subr.bf16.mxu0 %v4763
        %6744 = vmatpush1.bf16.msra.mxu0 %v4762
        %6745 = vmatprep.subr.bf16.mxu0 %v4765
        %6746 = vmatpush1.bf16.msra.mxu0 %v4764
        %6747 = vmatprep.subr.bf16.mxu0 %v4767
        %6748 = vmatpush1.bf16.msra.mxu0 %v4766
        %6749 = vmatprep.subr.bf16.mxu0 %v4769
        %6750 = vmatpush1.bf16.msra.mxu0 %v4768
        %6751 = vmatprep.subr.bf16.mxu0 %v4771
        %6752 = vmatpush1.bf16.msra.mxu0 %v4770
        %6753 = vmatprep.subr.bf16.mxu0 %v4773
        %6754 = vmatpush1.bf16.msra.mxu0 %v4772
        %6755 = vmatprep.subr.bf16.mxu0 %v4775
        %6756 = vmatpush1.bf16.msra.mxu0 %v4774
        %6757 = vmatprep.subr.bf16.mxu0 %v4777
        %6758 = vmatpush1.bf16.msra.mxu0 %v4776
        %6759 = vmatprep.subr.bf16.mxu0 %v4779
        %6760 = vmatpush1.bf16.msra.mxu0 %v4778
        %6761 = vmatprep.subr.bf16.mxu0 %v4781
        %6762 = vmatpush1.bf16.msra.mxu0 %v4780
        %6763 = vmatprep.mubr.bf16.mxu0 %v1321
        %6764 = vmatmul.mubr.bf16.gmra.mrb[0].mxu0 %v1320
        %v6765 = vpop.f32.mrb[0].mxu0
        %v6766 = vadd.f32 %v6725, %v6765
        %v6767 = vpop.f32.mrb[0].mxu0
        %v6768 = vadd.f32 %v6727, %v6767
        %v6769 = vpop.f32.mrb[0].mxu0
        %v6770 = vpop.f32.mrb[0].mxu0
        %6771 = vdwg.mxu0
        %6772 = vmatprep.subr.bf16.mxu0 %v4783
        %6773 = vmatpush1.bf16.msra.mxu0 %v4782
        %6774 = vmatprep.subr.bf16.mxu0 %v4785
        %6775 = vmatpush1.bf16.msra.mxu0 %v4784
        %6776 = vmatprep.subr.bf16.mxu0 %v4787
        %6777 = vmatpush1.bf16.msra.mxu0 %v4786
        %6778 = vmatprep.subr.bf16.mxu0 %v4789
        %6779 = vmatpush1.bf16.msra.mxu0 %v4788
        %6780 = vmatprep.subr.bf16.mxu0 %v4791
        %6781 = vmatpush1.bf16.msra.mxu0 %v4790
        %6782 = vmatprep.subr.bf16.mxu0 %v4793
        %6783 = vmatpush1.bf16.msra.mxu0 %v4792
        %6784 = vmatprep.subr.bf16.mxu0 %v4795
        %6785 = vmatpush1.bf16.msra.mxu0 %v4794
        %6786 = vmatprep.subr.bf16.mxu0 %v4797
        %6787 = vmatpush1.bf16.msra.mxu0 %v4796
        %6788 = vmatprep.subr.bf16.mxu0 %v4799
        %6789 = vmatpush1.bf16.msra.mxu0 %v4798
        %6790 = vmatprep.subr.bf16.mxu0 %v4801
        %6791 = vmatpush1.bf16.msra.mxu0 %v4800
        %6792 = vmatprep.subr.bf16.mxu0 %v4803
        %6793 = vmatpush1.bf16.msra.mxu0 %v4802
        %6794 = vmatprep.subr.bf16.mxu0 %v4805
        %6795 = vmatpush1.bf16.msra.mxu0 %v4804
        %6796 = vmatprep.subr.bf16.mxu0 %v4807
        %6797 = vmatpush1.bf16.msra.mxu0 %v4806
        %6798 = vmatprep.subr.bf16.mxu0 %v4809
        %6799 = vmatpush1.bf16.msra.mxu0 %v4808
        %6800 = vmatprep.subr.bf16.mxu0 %v4811
        %6801 = vmatpush1.bf16.msra.mxu0 %v4810
        %6802 = vmatprep.subr.bf16.mxu0 %v4813
        %6803 = vmatpush1.bf16.msra.mxu0 %v4812
        %6804 = vmatprep.mubr.bf16.mxu0 %v1323
        %6805 = vmatmul.mubr.bf16.gmra.mrb[0].mxu0 %v1322
        %v6806 = vpop.f32.mrb[0].mxu0
        %v6807 = vadd.f32 %v6766, %v6806
        %v6808 = vpop.f32.mrb[0].mxu0
        %v6809 = vadd.f32 %v6768, %v6808
        %v6810 = vpop.f32.mrb[0].mxu0
        %v6811 = vpop.f32.mrb[0].mxu0
        %6812 = vdwg.mxu0
        %6813 = vmatprep.subr.bf16.mxu0 %v4815
        %6814 = vmatpush1.bf16.msra.mxu0 %v4814
        %6815 = vmatprep.subr.bf16.mxu0 %v4817
        %6816 = vmatpush1.bf16.msra.mxu0 %v4816
        %6817 = vmatprep.subr.bf16.mxu0 %v4819
        %6818 = vmatpush1.bf16.msra.mxu0 %v4818
        %6819 = vmatprep.subr.bf16.mxu0 %v4821
        %6820 = vmatpush1.bf16.msra.mxu0 %v4820
        %6821 = vmatprep.subr.bf16.mxu0 %v4823
        %6822 = vmatpush1.bf16.msra.mxu0 %v4822
        %6823 = vmatprep.subr.bf16.mxu0 %v4825
        %6824 = vmatpush1.bf16.msra.mxu0 %v4824
        %6825 = vmatprep.subr.bf16.mxu0 %v4827
        %6826 = vmatpush1.bf16.msra.mxu0 %v4826
        %6827 = vmatprep.subr.bf16.mxu0 %v4829
        %6828 = vmatpush1.bf16.msra.mxu0 %v4828
        %6829 = vmatprep.subr.bf16.mxu0 %v4831
        %6830 = vmatpush1.bf16.msra.mxu0 %v4830
        %6831 = vmatprep.subr.bf16.mxu0 %v4833
        %6832 = vmatpush1.bf16.msra.mxu0 %v4832
        %6833 = vmatprep.subr.bf16.mxu0 %v4835
        %6834 = vmatpush1.bf16.msra.mxu0 %v4834
        %6835 = vmatprep.subr.bf16.mxu0 %v4837
        %6836 = vmatpush1.bf16.msra.mxu0 %v4836
        %6837 = vmatprep.subr.bf16.mxu0 %v4839
        %6838 = vmatpush1.bf16.msra.mxu0 %v4838
        %6839 = vmatprep.subr.bf16.mxu0 %v4841
        %6840 = vmatpush1.bf16.msra.mxu0 %v4840
        %6841 = vmatprep.subr.bf16.mxu0 %v4843
        %6842 = vmatpush1.bf16.msra.mxu0 %v4842
        %6843 = vmatprep.subr.bf16.mxu0 %v4845
        %6844 = vmatpush1.bf16.msra.mxu0 %v4844
        %6845 = vmatprep.mubr.bf16.mxu0 %v1325
        %6846 = vmatmul.mubr.bf16.gmra.mrb[0].mxu0 %v1324
        %v6847 = vpop.f32.mrb[0].mxu0
        %v6848 = vadd.f32 %v6807, %v6847
        %v6849 = vpop.f32.mrb[0].mxu0
        %v6850 = vadd.f32 %v6809, %v6849
        %v6851 = vpop.f32.mrb[0].mxu0
        %v6852 = vpop.f32.mrb[0].mxu0
        %6853 = vdwg.mxu0
        %6854 = vmatprep.subr.bf16.mxu0 %v4847
        %6855 = vmatpush1.bf16.msra.mxu0 %v4846
        %6856 = vmatprep.subr.bf16.mxu0 %v4849
        %6857 = vmatpush1.bf16.msra.mxu0 %v4848
        %6858 = vmatprep.subr.bf16.mxu0 %v4851
        %6859 = vmatpush1.bf16.msra.mxu0 %v4850
        %6860 = vmatprep.subr.bf16.mxu0 %v4853
        %6861 = vmatpush1.bf16.msra.mxu0 %v4852
        %6862 = vmatprep.subr.bf16.mxu0 %v4855
        %6863 = vmatpush1.bf16.msra.mxu0 %v4854
        %6864 = vmatprep.subr.bf16.mxu0 %v4857
        %6865 = vmatpush1.bf16.msra.mxu0 %v4856
        %6866 = vmatprep.subr.bf16.mxu0 %v4859
        %6867 = vmatpush1.bf16.msra.mxu0 %v4858
        %6868 = vmatprep.subr.bf16.mxu0 %v4861
        %6869 = vmatpush1.bf16.msra.mxu0 %v4860
        %6870 = vmatprep.subr.bf16.mxu0 %v4863
        %6871 = vmatpush1.bf16.msra.mxu0 %v4862
        %6872 = vmatprep.subr.bf16.mxu0 %v4865
        %6873 = vmatpush1.bf16.msra.mxu0 %v4864
        %6874 = vmatprep.subr.bf16.mxu0 %v4867
        %6875 = vmatpush1.bf16.msra.mxu0 %v4866
        %6876 = vmatprep.subr.bf16.mxu0 %v4869
        %6877 = vmatpush1.bf16.msra.mxu0 %v4868
        %6878 = vmatprep.subr.bf16.mxu0 %v4871
        %6879 = vmatpush1.bf16.msra.mxu0 %v4870
        %6880 = vmatprep.subr.bf16.mxu0 %v4873
        %6881 = vmatpush1.bf16.msra.mxu0 %v4872
        %6882 = vmatprep.subr.bf16.mxu0 %v4875
        %6883 = vmatpush1.bf16.msra.mxu0 %v4874
        %6884 = vmatprep.subr.bf16.mxu0 %v4877
        %6885 = vmatpush1.bf16.msra.mxu0 %v4876
        %6886 = vmatprep.mubr.bf16.mxu0 %v1327
        %6887 = vmatmul.mubr.bf16.gmra.mrb[0].mxu0 %v1326
        %v6888 = vpop.f32.mrb[0].mxu0
        %v6889 = vadd.f32 %v6848, %v6888
        %v6890 = vpop.f32.mrb[0].mxu0
        %v6891 = vadd.f32 %v6850, %v6890
        %v6892 = vpop.f32.mrb[0].mxu0
        %v6893 = vpop.f32.mrb[0].mxu0
        %6894 = vdwg.mxu0
        %6895 = vmatprep.subr.bf16.mxu0 %v4879
        %6896 = vmatpush1.bf16.msra.mxu0 %v4878
        %6897 = vmatprep.subr.bf16.mxu0 %v4881
        %6898 = vmatpush1.bf16.msra.mxu0 %v4880
        %6899 = vmatprep.subr.bf16.mxu0 %v4883
        %6900 = vmatpush1.bf16.msra.mxu0 %v4882
        %6901 = vmatprep.subr.bf16.mxu0 %v4885
        %6902 = vmatpush1.bf16.msra.mxu0 %v4884
        %6903 = vmatprep.subr.bf16.mxu0 %v4887
        %6904 = vmatpush1.bf16.msra.mxu0 %v4886
        %6905 = vmatprep.subr.bf16.mxu0 %v4889
        %6906 = vmatpush1.bf16.msra.mxu0 %v4888
        %6907 = vmatprep.subr.bf16.mxu0 %v4891
        %6908 = vmatpush1.bf16.msra.mxu0 %v4890
        %6909 = vmatprep.subr.bf16.mxu0 %v4893
        %6910 = vmatpush1.bf16.msra.mxu0 %v4892
        %6911 = vmatprep.subr.bf16.mxu0 %v4895
        %6912 = vmatpush1.bf16.msra.mxu0 %v4894
        %6913 = vmatprep.subr.bf16.mxu0 %v4897
        %6914 = vmatpush1.bf16.msra.mxu0 %v4896
        %6915 = vmatprep.subr.bf16.mxu0 %v4899
        %6916 = vmatpush1.bf16.msra.mxu0 %v4898
        %6917 = vmatprep.subr.bf16.mxu0 %v4901
        %6918 = vmatpush1.bf16.msra.mxu0 %v4900
        %6919 = vmatprep.subr.bf16.mxu0 %v4903
        %6920 = vmatpush1.bf16.msra.mxu0 %v4902
        %6921 = vmatprep.subr.bf16.mxu0 %v4905
        %6922 = vmatpush1.bf16.msra.mxu0 %v4904
        %6923 = vmatprep.subr.bf16.mxu0 %v4907
        %6924 = vmatpush1.bf16.msra.mxu0 %v4906
        %6925 = vmatprep.subr.bf16.mxu0 %v4909
        %6926 = vmatpush1.bf16.msra.mxu0 %v4908
        %6927 = vmatprep.mubr.bf16.mxu0 %v1329
        %6928 = vmatmul.mubr.bf16.gmra.mrb[0].mxu0 %v1328
        %v6929 = vpop.f32.mrb[0].mxu0
        %v6930 = vadd.f32 %v6889, %v6929
        %v6931 = vpop.f32.mrb[0].mxu0
        %v6932 = vadd.f32 %v6891, %v6931
        %v6933 = vpop.f32.mrb[0].mxu0
        %v6934 = vpop.f32.mrb[0].mxu0
        %6935 = vdwg.mxu0
        %6936 = vmatprep.subr.bf16.mxu0 %v4911
        %6937 = vmatpush1.bf16.msra.mxu0 %v4910
        %6938 = vmatprep.subr.bf16.mxu0 %v4913
        %6939 = vmatpush1.bf16.msra.mxu0 %v4912
        %6940 = vmatprep.subr.bf16.mxu0 %v4915
        %6941 = vmatpush1.bf16.msra.mxu0 %v4914
        %6942 = vmatprep.subr.bf16.mxu0 %v4917
        %6943 = vmatpush1.bf16.msra.mxu0 %v4916
        %6944 = vmatprep.subr.bf16.mxu0 %v4919
        %6945 = vmatpush1.bf16.msra.mxu0 %v4918
        %6946 = vmatprep.subr.bf16.mxu0 %v4921
        %6947 = vmatpush1.bf16.msra.mxu0 %v4920
        %6948 = vmatprep.subr.bf16.mxu0 %v4923
        %6949 = vmatpush1.bf16.msra.mxu0 %v4922
        %6950 = vmatprep.subr.bf16.mxu0 %v4925
        %6951 = vmatpush1.bf16.msra.mxu0 %v4924
        %6952 = vmatprep.subr.bf16.mxu0 %v4927
        %6953 = vmatpush1.bf16.msra.mxu0 %v4926
        %6954 = vmatprep.subr.bf16.mxu0 %v4929
        %6955 = vmatpush1.bf16.msra.mxu0 %v4928
        %6956 = vmatprep.subr.bf16.mxu0 %v4931
        %6957 = vmatpush1.bf16.msra.mxu0 %v4930
        %6958 = vmatprep.subr.bf16.mxu0 %v4933
        %6959 = vmatpush1.bf16.msra.mxu0 %v4932
        %6960 = vmatprep.subr.bf16.mxu0 %v4935
        %6961 = vmatpush1.bf16.msra.mxu0 %v4934
        %6962 = vmatprep.subr.bf16.mxu0 %v4937
        %6963 = vmatpush1.bf16.msra.mxu0 %v4936
        %6964 = vmatprep.subr.bf16.mxu0 %v4939
        %6965 = vmatpush1.bf16.msra.mxu0 %v4938
        %6966 = vmatprep.subr.bf16.mxu0 %v4941
        %6967 = vmatpush1.bf16.msra.mxu0 %v4940
        %6968 = vmatprep.mubr.bf16.mxu0 %v1331
        %6969 = vmatmul.mubr.bf16.gmra.mrb[0].mxu0 %v1330
        %v6970 = vpop.f32.mrb[0].mxu0
        %v6971 = vadd.f32 %v6930, %v6970
        %v6972 = vpop.f32.mrb[0].mxu0
        %v6973 = vadd.f32 %v6932, %v6972
        %v6974 = vpop.f32.mrb[0].mxu0
        %v6975 = vpop.f32.mrb[0].mxu0
        %6976 = vdwg.mxu0
        %6977 = vmatprep.subr.bf16.mxu0 %v4943
        %6978 = vmatpush1.bf16.msra.mxu0 %v4942
        %6979 = vmatprep.subr.bf16.mxu0 %v4945
        %6980 = vmatpush1.bf16.msra.mxu0 %v4944
        %6981 = vmatprep.subr.bf16.mxu0 %v4947
        %6982 = vmatpush1.bf16.msra.mxu0 %v4946
        %6983 = vmatprep.subr.bf16.mxu0 %v4949
        %6984 = vmatpush1.bf16.msra.mxu0 %v4948
        %6985 = vmatprep.subr.bf16.mxu0 %v4951
        %6986 = vmatpush1.bf16.msra.mxu0 %v4950
        %6987 = vmatprep.subr.bf16.mxu0 %v4953
        %6988 = vmatpush1.bf16.msra.mxu0 %v4952
        %6989 = vmatprep.subr.bf16.mxu0 %v4955
        %6990 = vmatpush1.bf16.msra.mxu0 %v4954
        %6991 = vmatprep.subr.bf16.mxu0 %v4957
        %6992 = vmatpush1.bf16.msra.mxu0 %v4956
        %6993 = vmatprep.subr.bf16.mxu0 %v4959
        %6994 = vmatpush1.bf16.msra.mxu0 %v4958
        %6995 = vmatprep.subr.bf16.mxu0 %v4961
        %6996 = vmatpush1.bf16.msra.mxu0 %v4960
        %6997 = vmatprep.subr.bf16.mxu0 %v4963
        %6998 = vmatpush1.bf16.msra.mxu0 %v4962
        %6999 = vmatprep.subr.bf16.mxu0 %v4965
        %7000 = vmatpush1.bf16.msra.mxu0 %v4964
        %7001 = vmatprep.subr.bf16.mxu0 %v4967
        %7002 = vmatpush1.bf16.msra.mxu0 %v4966
        %7003 = vmatprep.subr.bf16.mxu0 %v4969
        %7004 = vmatpush1.bf16.msra.mxu0 %v4968
        %7005 = vmatprep.subr.bf16.mxu0 %v4971
        %7006 = vmatpush1.bf16.msra.mxu0 %v4970
        %7007 = vmatprep.subr.bf16.mxu0 %v4973
        %7008 = vmatpush1.bf16.msra.mxu0 %v4972
        %7009 = vmatprep.mubr.bf16.mxu0 %v1333
        %7010 = vmatmul.mubr.bf16.gmra.mrb[0].mxu0 %v1332
        %v7011 = vpop.f32.mrb[0].mxu0
        %v7012 = vadd.f32 %v6971, %v7011
        %v7013 = vpop.f32.mrb[0].mxu0
        %v7014 = vadd.f32 %v6973, %v7013
        %v7015 = vpop.f32.mrb[0].mxu0
        %v7016 = vpop.f32.mrb[0].mxu0
        %7017 = vdwg.mxu0
        %v7018 = vadd.f32 %v296, %v7012
        %v7019 = vadd.f32 %v297, %v7014
        %7020 = vst [vmem:[#allocation2] sm:$0xff] %v7018
        %7021 = vst [vmem:[#allocation2 + $0x8] sm:$0xff] %v7019
        %p7022 = scmp.eq.s32.totalorder %s20, 1
        // Predicated region
        $region57: #{enc_deca_au_forward.1} parent=39 // pred_check
          %p7023 = pneg %p7022
        $region58: #{enc_deca_au_forward.1} parent=39 // pred_check_branch
          %7025 = sbr.rel (%p7023) target = $region60
        $region59: #{enc_deca_au_forward.1} parent=39 // pred_region
          %v7026 = vld [vmem:[#allocation2] sm:$0xff]
          %v7027 = vld [vmem:[#allocation2 + $0x8] sm:$0xff]
          %v7028 = vld [vmem:[#allocation5] sm:$0x3]
          %v7030 = vlaneseq
          %v7031 = vshrl.u32 %v7030, 7
          %v7032 = vsub.s32 0, %v7031
          %v7033 = vrot.slane %v7028, %v7032
          %v7034 = vlaneseq
          %v7035 = vshrl.u32 %v7034, 7
          %v7036 = vsub.s32 1, %v7035
          %v7037 = vrot.slane %v7028, %v7036
          %v7040 = vadd.f32 %v7026, %v7033
          %v7041 = vadd.f32 %v7027, %v7037
          %v7042 = vmax.f32 %v7040, 0.0
          %v7043 = vmax.f32 %v7041, 0.0
          %v7044 = vpack.c.bf16 %v7042, %v7042
          %v7045 = vpack.c.bf16 %v7043, %v7043
          %v7046 = vld [vmem:[%s3] sm:$0xff]
          %v7047 = vld [vmem:[%s3 + $0x8] sm:$0xff]
          %v7048 = vld [vmem:[%s3 + $0x10] sm:$0xff]
          %v7049 = vld [vmem:[%s3 + $0x18] sm:$0xff]
          %v7050 = vld [vmem:[%s3 + $0x20] sm:$0xff]
          %v7051 = vld [vmem:[%s3 + $0x28] sm:$0xff]
          %v7052 = vld [vmem:[%s3 + $0x30] sm:$0xff]
          %v7053 = vld [vmem:[%s3 + $0x38] sm:$0xff]
          %v7054 = vld [vmem:[%s3 + $0x40] sm:$0xff]
          %v7055 = vld [vmem:[%s3 + $0x48] sm:$0xff]
          %v7056 = vld [vmem:[%s3 + $0x50] sm:$0xff]
          %v7057 = vld [vmem:[%s3 + $0x58] sm:$0xff]
          %v7058 = vld [vmem:[%s3 + $0x60] sm:$0xff]
          %v7059 = vld [vmem:[%s3 + $0x68] sm:$0xff]
          %v7060 = vld [vmem:[%s3 + $0x70] sm:$0xff]
          %v7061 = vld [vmem:[%s3 + $0x78] sm:$0xff]
          %v7062 = vld [vmem:[%s3 + $0x80] sm:$0xff]
          %v7063 = vld [vmem:[%s3 + $0x88] sm:$0xff]
          %v7064 = vld [vmem:[%s3 + $0x90] sm:$0xff]
          %v7065 = vld [vmem:[%s3 + $0x98] sm:$0xff]
          %v7066 = vld [vmem:[%s3 + $0xa0] sm:$0xff]
          %v7067 = vld [vmem:[%s3 + $0xa8] sm:$0xff]
          %v7068 = vld [vmem:[%s3 + $0xb0] sm:$0xff]
          %v7069 = vld [vmem:[%s3 + $0xb8] sm:$0xff]
          %v7070 = vld [vmem:[%s3 + $0xc0] sm:$0xff]
          %v7071 = vld [vmem:[%s3 + $0xc8] sm:$0xff]
          %v7072 = vld [vmem:[%s3 + $0xd0] sm:$0xff]
          %v7073 = vld [vmem:[%s3 + $0xd8] sm:$0xff]
          %v7074 = vld [vmem:[%s3 + $0xe0] sm:$0xff]
          %v7075 = vld [vmem:[%s3 + $0xe8] sm:$0xff]
          %v7076 = vld [vmem:[%s3 + $0xf0] sm:$0xff]
          %v7077 = vld [vmem:[%s3 + $0xf8] sm:$0xff]
          %v7078 = vld [vmem:[#allocation7] sm:$0x3]
          %v7080 = vlaneseq
          %v7081 = vshrl.u32 %v7080, 7
          %v7082 = vsub.s32 0, %v7081
          %v7083 = vrot.slane %v7078, %v7082
          %v7084 = vlaneseq
          %v7085 = vshrl.u32 %v7084, 7
          %v7086 = vsub.s32 1, %v7085
          %v7087 = vrot.slane %v7078, %v7086
          %v7122 = vunpack.c.l.b16 %v7046
          %v7123 = vunpack.c.h.b16 %v7046
          %v7124 = vunpack.c.l.b16 %v7047
          %v7125 = vunpack.c.h.b16 %v7047
          %v7126 = vunpack.c.l.b16 %v7048
          %v7127 = vunpack.c.h.b16 %v7048
          %v7128 = vunpack.c.l.b16 %v7049
          %v7129 = vunpack.c.h.b16 %v7049
          %v7130 = vunpack.c.l.b16 %v7050
          %v7131 = vunpack.c.h.b16 %v7050
          %v7132 = vunpack.c.l.b16 %v7051
          %v7133 = vunpack.c.h.b16 %v7051
          %v7134 = vunpack.c.l.b16 %v7052
          %v7135 = vunpack.c.h.b16 %v7052
          %v7136 = vunpack.c.l.b16 %v7053
          %v7137 = vunpack.c.h.b16 %v7053
          %v7138 = vunpack.c.l.b16 %v7054
          %v7139 = vunpack.c.h.b16 %v7054
          %v7140 = vunpack.c.l.b16 %v7055
          %v7141 = vunpack.c.h.b16 %v7055
          %v7142 = vunpack.c.l.b16 %v7056
          %v7143 = vunpack.c.h.b16 %v7056
          %v7144 = vunpack.c.l.b16 %v7057
          %v7145 = vunpack.c.h.b16 %v7057
          %v7146 = vunpack.c.l.b16 %v7058
          %v7147 = vunpack.c.h.b16 %v7058
          %v7148 = vunpack.c.l.b16 %v7059
          %v7149 = vunpack.c.h.b16 %v7059
          %v7150 = vunpack.c.l.b16 %v7060
          %v7151 = vunpack.c.h.b16 %v7060
          %v7152 = vunpack.c.l.b16 %v7061
          %v7153 = vunpack.c.h.b16 %v7061
          %v7154 = vunpack.c.l.b16 %v7062
          %v7155 = vunpack.c.h.b16 %v7062
          %v7156 = vunpack.c.l.b16 %v7063
          %v7157 = vunpack.c.h.b16 %v7063
          %v7158 = vunpack.c.l.b16 %v7064
          %v7159 = vunpack.c.h.b16 %v7064
          %v7160 = vunpack.c.l.b16 %v7065
          %v7161 = vunpack.c.h.b16 %v7065
          %v7162 = vunpack.c.l.b16 %v7066
          %v7163 = vunpack.c.h.b16 %v7066
          %v7164 = vunpack.c.l.b16 %v7067
          %v7165 = vunpack.c.h.b16 %v7067
          %v7166 = vunpack.c.l.b16 %v7068
          %v7167 = vunpack.c.h.b16 %v7068
          %v7168 = vunpack.c.l.b16 %v7069
          %v7169 = vunpack.c.h.b16 %v7069
          %v7170 = vunpack.c.l.b16 %v7070
          %v7171 = vunpack.c.h.b16 %v7070
          %v7172 = vunpack.c.l.b16 %v7071
          %v7173 = vunpack.c.h.b16 %v7071
          %v7174 = vunpack.c.l.b16 %v7072
          %v7175 = vunpack.c.h.b16 %v7072
          %v7176 = vunpack.c.l.b16 %v7073
          %v7177 = vunpack.c.h.b16 %v7073
          %v7178 = vunpack.c.l.b16 %v7074
          %v7179 = vunpack.c.h.b16 %v7074
          %v7180 = vunpack.c.l.b16 %v7075
          %v7181 = vunpack.c.h.b16 %v7075
          %v7182 = vunpack.c.l.b16 %v7076
          %v7183 = vunpack.c.h.b16 %v7076
          %v7184 = vunpack.c.l.b16 %v7077
          %v7185 = vunpack.c.h.b16 %v7077
          %v7186 = vpack.c.b16 %v7124, %v7122
          %v7187 = vpack.c.b16 %v7125, %v7123
          %v7188 = vpack.c.b16 %v7128, %v7126
          %v7189 = vpack.c.b16 %v7129, %v7127
          %v7190 = vpack.c.b16 %v7132, %v7130
          %v7191 = vpack.c.b16 %v7133, %v7131
          %v7192 = vpack.c.b16 %v7136, %v7134
          %v7193 = vpack.c.b16 %v7137, %v7135
          %v7194 = vpack.c.b16 %v7140, %v7138
          %v7195 = vpack.c.b16 %v7141, %v7139
          %v7196 = vpack.c.b16 %v7144, %v7142
          %v7197 = vpack.c.b16 %v7145, %v7143
          %v7198 = vpack.c.b16 %v7148, %v7146
          %v7199 = vpack.c.b16 %v7149, %v7147
          %v7200 = vpack.c.b16 %v7152, %v7150
          %v7201 = vpack.c.b16 %v7153, %v7151
          %v7202 = vpack.c.b16 %v7156, %v7154
          %v7203 = vpack.c.b16 %v7157, %v7155
          %v7204 = vpack.c.b16 %v7160, %v7158
          %v7205 = vpack.c.b16 %v7161, %v7159
          %v7206 = vpack.c.b16 %v7164, %v7162
          %v7207 = vpack.c.b16 %v7165, %v7163
          %v7208 = vpack.c.b16 %v7168, %v7166
          %v7209 = vpack.c.b16 %v7169, %v7167
          %v7210 = vpack.c.b16 %v7172, %v7170
          %v7211 = vpack.c.b16 %v7173, %v7171
          %v7212 = vpack.c.b16 %v7176, %v7174
          %v7213 = vpack.c.b16 %v7177, %v7175
          %v7214 = vpack.c.b16 %v7180, %v7178
          %v7215 = vpack.c.b16 %v7181, %v7179
          %v7216 = vpack.c.b16 %v7184, %v7182
          %v7217 = vpack.c.b16 %v7185, %v7183
          %7250 = vmatprep.subr.bf16.mxu0 %v7187
          %7251 = vmatpush1.bf16.msra.mxu0 %v7186
          %7252 = vmatprep.subr.bf16.mxu0 %v7189
          %7253 = vmatpush1.bf16.msra.mxu0 %v7188
          %7254 = vmatprep.subr.bf16.mxu0 %v7191
          %7255 = vmatpush1.bf16.msra.mxu0 %v7190
          %7256 = vmatprep.subr.bf16.mxu0 %v7193
          %7257 = vmatpush1.bf16.msra.mxu0 %v7192
          %7258 = vmatprep.subr.bf16.mxu0 %v7195
          %7259 = vmatpush1.bf16.msra.mxu0 %v7194
          %7260 = vmatprep.subr.bf16.mxu0 %v7197
          %7261 = vmatpush1.bf16.msra.mxu0 %v7196
          %7262 = vmatprep.subr.bf16.mxu0 %v7199
          %7263 = vmatpush1.bf16.msra.mxu0 %v7198
          %7264 = vmatprep.subr.bf16.mxu0 %v7201
          %7265 = vmatpush1.bf16.msra.mxu0 %v7200
          %7266 = vmatprep.subr.bf16.mxu0 %v7203
          %7267 = vmatpush1.bf16.msra.mxu0 %v7202
          %7268 = vmatprep.subr.bf16.mxu0 %v7205
          %7269 = vmatpush1.bf16.msra.mxu0 %v7204
          %7270 = vmatprep.subr.bf16.mxu0 %v7207
          %7271 = vmatpush1.bf16.msra.mxu0 %v7206
          %7272 = vmatprep.subr.bf16.mxu0 %v7209
          %7273 = vmatpush1.bf16.msra.mxu0 %v7208
          %7274 = vmatprep.subr.bf16.mxu0 %v7211
          %7275 = vmatpush1.bf16.msra.mxu0 %v7210
          %7276 = vmatprep.subr.bf16.mxu0 %v7213
          %7277 = vmatpush1.bf16.msra.mxu0 %v7212
          %7278 = vmatprep.subr.bf16.mxu0 %v7215
          %7279 = vmatpush1.bf16.msra.mxu0 %v7214
          %7280 = vmatprep.subr.bf16.mxu0 %v7217
          %7281 = vmatpush1.bf16.msra.mxu0 %v7216
          %7282 = vmatprep.mubr.bf16.mxu0 %v7045
          %7283 = vmatmul.mubr.bf16.gmra.mrb[0].mxu0 %v7044
          %v7284 = vpop.f32.mrb[0].mxu0
          %v7285 = vadd.f32 %v7083, %v7284
          %v7286 = vpop.f32.mrb[0].mxu0
          %v7287 = vadd.f32 %v7087, %v7286
          %v7288 = vpop.f32.mrb[0].mxu0
          %v7289 = vpop.f32.mrb[0].mxu0
          %7290 = vdwg.mxu0
          %7291 = vst [vmem:[%s5] sm:$0xff] %v7285
          %vm7292 = vcmask 433152
          %7293 = vst.msk [vmem:[%s5 + $0x8] sm:$0xff] %vm7292, %v7287
        $region60: #{enc_deca_au_forward.1} parent=39 // pred_fallthru
          _
        // Predicated region
        $region61: #{enc_deca_au_forward.1} parent=39 // pred_check
          %p7294 = pneg %p143
        $region62: #{enc_deca_au_forward.1} parent=39 // pred_check_branch
          %7296 = sbr.rel (%p7294) target = $region64
        $region63: #{enc_deca_au_forward.1} parent=39 // pred_region
          _
        $region64: #{enc_deca_au_forward.1} parent=39 // pred_fallthru
          _
        // Predicated region
        $region65: #{enc_deca_au_forward.1} parent=39 // pred_check
          %p7297 = pneg %p143
        $region66: #{enc_deca_au_forward.1} parent=39 // pred_check_branch
          %7299 = sbr.rel (%p7297) target = $region68
        $region67: #{enc_deca_au_forward.1} parent=39 // pred_region
          _
        $region68: #{enc_deca_au_forward.1} parent=39 // pred_fallthru
          _
      $region40: #{enc_deca_au_forward.1} parent=5 // pred_fallthru
        _
      %p7300 = scmp.le.s32.totalorder 2, %s15
      // Predicated region
      $region69: #{enc_deca_au_forward.1} parent=5 // pred_check
        %p7301 = pneg %p7300
      $region70: #{enc_deca_au_forward.1} parent=5 // pred_check_branch
        %7303 = sbr.rel (%p7301) target = $region72
      $region71: #{enc_deca_au_forward.1} parent=5 // pred_region
        %s7304 = ssub.s32 %s15, 2
      $region72: #{enc_deca_au_forward.1} parent=5 // pred_fallthru
        _
    $region6: #{enc_deca_au_forward.1} parent=1 // loop_footer
      %s19 = sadd.s32 1, %s15
    $region7: #{enc_deca_au_forward.1} parent=1 // loop_footer_branch
      %14 = sbr.rel target = $region3
    $region8: #{enc_deca_au_forward.1} parent=1 // loop_exit
      _
    %7305 = vsyncpa [#allocation4], 1
    %s7306 = scalar_lea.sflag [#allocation4], 1
    %7307 = vsyncpa %s7306, 1
    %7308 = vsyncpa [#allocation6], 1

</llo_original>
